<compile_context>
chip_gen: v6e
topology: v6e:2x2x1
jax: 0.10.0
libtpu: 0.0.40
codegen_flags: <defaults>
</compile_context>

<pallas_src>
import jax
import jax.numpy as jnp
from jax.experimental import pallas as pl
from jax.experimental.pallas import tpu as pltpu

# ----------------------------- model config ---------------------------------
B, S, H = 2, 8, 32           # batch, seq, hidden_size (bert.config.hidden_size)
NUM_HEADS = 4
HEAD_DIM = H // NUM_HEADS
NUM_BERT_LAYERS = 2
FF_DIM = 64
VOCAB = 100
VOCAB_PAD = 128              # pad the vocab axis to a full lane width (zeros)
MAX_POS = 16
TYPE_VOCAB = 2
CLS_HIDDEN = 32              # classifier hidden_dim
CLS_LAYERS = 2               # classifier num_layers (ReLU hidden activation)
N_CLASSES = 4
LN_EPS = 1e-12
ATTN_SCALE = 1.0 / (HEAD_DIM ** 0.5)
DROPOUT_RATE = 0.0           # dropout_rate=0 -> Dropout layers not added


# ------------------------- fused forward-pass kernel -------------------------
def _bert_classifier_kernel(
    ids_ref, maskf_ref, mask_bd_ref, pos_type_ref,
    word_emb_ref, emb_ln_g_ref, emb_ln_b_ref,
    w_qkv_ref, b_qkv_ref, wo_ref, bo_ref, ln1_g_ref, ln1_b_ref,
    w1_ref, b1_ref, w2_ref, b2_ref, ln2_g_ref, ln2_b_ref,
    cls_w0_ref, cls_b0_ref, cls_w1_ref, cls_b1_ref, cls_wout_ref, cls_bout_ref,
    logits_ref,
):
    f32 = jnp.float32
    bf16 = jnp.bfloat16

    def layer_norm(x, g, b):
        mu = jnp.mean(x, axis=-1, keepdims=True)
        xc = x - mu
        var = jnp.mean(xc * xc, axis=-1, keepdims=True)
        return xc * jax.lax.rsqrt(var + LN_EPS) * g + b

    def mm(x, w):
        # bf16 at the MXU inputs, f32 accumulation.
        return jnp.dot(x.astype(bf16), w.astype(bf16), preferred_element_type=f32)

    def gelu(y):  # tanh-approx GELU (tanh runs on the EUP slot)
        return 0.5 * y * (1.0 + jnp.tanh(0.7978845608028654
                                         * (y + 0.044715 * y * y * y)))

    # --- embeddings: in-kernel one-hot gather (exact, f32) + pos/type + LN ---
    ids = ids_ref[...]                                            # (B*S, 1) int32
    vocab_iota = jax.lax.broadcasted_iota(jnp.int32, (B * S, VOCAB_PAD), 1)
    onehot = (vocab_iota == ids).astype(f32)                      # (B*S, VOCAB_PAD)
    emb = jnp.dot(onehot, word_emb_ref[...], preferred_element_type=f32)
    x = layer_norm(emb + pos_type_ref[...],
                   emb_ln_g_ref[...], emb_ln_b_ref[...])          # (B*S, H)

    # additive attention mask, one row per batch element
    neg_mask = (1.0 - maskf_ref[...]) * -1e9                      # (B, S)

    # --- transformer encoder layers (post-LN BERT style), weights VMEM-resident
    for l in range(NUM_BERT_LAYERS):
        qkv = mm(x, w_qkv_ref[l]) + b_qkv_ref[l]                  # (B*S, 3H)

        ctx_batches = []
        for b in range(B):
            r0 = b * S
            heads = []
            for h in range(NUM_HEADS):
                c0 = h * HEAD_DIM
                q = qkv[r0:r0 + S, c0:c0 + HEAD_DIM]
                k = qkv[r0:r0 + S, H + c0:H + c0 + HEAD_DIM]
                v = qkv[r0:r0 + S, 2 * H + c0:2 * H + c0 + HEAD_DIM]
                s = jnp.einsum("qd,kd->qk", q.astype(bf16), k.astype(bf16),
                               preferred_element_type=f32) * ATTN_SCALE
                s = s + neg_mask[b:b + 1, :]                      # (S,S) + (1,S)
                s = s - jnp.max(s, axis=-1, keepdims=True)        # f32 softmax
                p = jnp.exp(s)
                p = p * pl.reciprocal(jnp.sum(p, axis=-1, keepdims=True),
                                      approx=True)
                heads.append(jnp.dot(p.astype(bf16), v.astype(bf16),
                                     preferred_element_type=f32))  # (S, HEAD_DIM)
            ctx_batches.append(jnp.concatenate(heads, axis=1))    # (S, H)
        ctx = jnp.concatenate(ctx_batches, axis=0)                # (B*S, H)

        attn_out = mm(ctx, wo_ref[l]) + bo_ref[l]
        x = layer_norm(x + attn_out, ln1_g_ref[l], ln1_b_ref[l])  # residual + LN

        ffh = gelu(mm(x, w1_ref[l]) + b1_ref[l])                  # (B*S, FF_DIM)
        ff = mm(ffh, w2_ref[l]) + b2_ref[l]
        x = layer_norm(x + ff, ln2_g_ref[l], ln2_b_ref[l])

    # --- masked mean pooling over valid tokens (block-diagonal mask matmul) ---
    mask_bd = mask_bd_ref[...]                                    # (B, B*S)
    num = jnp.dot(mask_bd, x, preferred_element_type=f32)         # (B, H)
    den = jnp.maximum(jnp.sum(mask_bd, axis=-1, keepdims=True), 1.0)
    pooled = num * pl.reciprocal(den, approx=True)

    # --- classifier MLP (ReLU hidden activation, dropout_rate = 0) ---
    hcls = jnp.maximum(mm(pooled, cls_w0_ref[...]) + cls_b0_ref[...], 0.0)
    hcls = jnp.maximum(mm(hcls, cls_w1_ref[...]) + cls_b1_ref[...], 0.0)
    logits_ref[...] = mm(hcls, cls_wout_ref[...]) + cls_bout_ref[...]


# ------------------------------ parameters -----------------------------------
def init_params(key):
    keys = iter(jax.random.split(key, 64))

    def dense(shape, dtype=jnp.float32):
        return (0.02 * jax.random.normal(next(keys), shape, jnp.float32)).astype(dtype)

    L = NUM_BERT_LAYERS
    word = jnp.zeros((VOCAB_PAD, H), jnp.float32).at[:VOCAB].set(dense((VOCAB, H)))
    return {
        # embeddings (kept f32; one-hot gather stays exact)
        "word_emb": word,
        "pos_emb": dense((MAX_POS, H)),
        "type_emb": dense((TYPE_VOCAB, H)),
        "emb_ln_g": jnp.ones((1, H), jnp.float32),
        "emb_ln_b": jnp.zeros((1, H), jnp.float32),
        # per-layer weights stacked on a leading layer axis; matmul weights bf16
        "w_qkv": dense((L, H, 3 * H), jnp.bfloat16),   # wq | wk | wv fused
        "b_qkv": jnp.zeros((L, 1, 3 * H), jnp.float32),
        "wo": dense((L, H, H), jnp.bfloat16),
        "bo": jnp.zeros((L, 1, H), jnp.float32),
        "ln1_g": jnp.ones((L, 1, H), jnp.float32),
        "ln1_b": jnp.zeros((L, 1, H), jnp.float32),
        "w1": dense((L, H, FF_DIM), jnp.bfloat16),
        "b1": jnp.zeros((L, 1, FF_DIM), jnp.float32),
        "w2": dense((L, FF_DIM, H), jnp.bfloat16),
        "b2": jnp.zeros((L, 1, H), jnp.float32),
        "ln2_g": jnp.ones((L, 1, H), jnp.float32),
        "ln2_b": jnp.zeros((L, 1, H), jnp.float32),
        # classifier: Linear(H, CLS_HIDDEN)+ReLU, Linear(CLS_HIDDEN, CLS_HIDDEN)+ReLU,
        # Linear(CLS_HIDDEN, N_CLASSES)   (CLS_LAYERS = 2, dropout = 0)
        "cls_w0": dense((H, CLS_HIDDEN), jnp.bfloat16),
        "cls_b0": jnp.zeros((1, CLS_HIDDEN), jnp.float32),
        "cls_w1": dense((CLS_HIDDEN, CLS_HIDDEN), jnp.bfloat16),
        "cls_b1": jnp.zeros((1, CLS_HIDDEN), jnp.float32),
        "cls_wout": dense((CLS_HIDDEN, N_CLASSES), jnp.bfloat16),
        "cls_bout": jnp.zeros((1, N_CLASSES), jnp.float32),
    }


# ------------------------------ forward pass ----------------------------------
@jax.jit
def bert_classifier_forward(params, input_ids, attention_mask):
    maskf = attention_mask.astype(jnp.float32)                    # (B, S)
    ids = input_ids.astype(jnp.int32).reshape(B * S, 1)           # (B*S, 1)

    # block-diagonal pooling mask: mask_bd[b, b*S + s] = maskf[b, s]
    mask_bd = (jnp.eye(B, dtype=jnp.float32)[:, :, None]
               * maskf[None, :, :]).reshape(B, B * S)             # (B, B*S)

    # position + token-type(=0) embeddings, broadcast to every batch row
    pos_type = jnp.tile(params["pos_emb"][:S] + params["type_emb"][0:1, :],
                        (B, 1))                                   # (B*S, H)

    inputs = (
        ids, maskf, mask_bd, pos_type,
        params["word_emb"], params["emb_ln_g"], params["emb_ln_b"],
        params["w_qkv"], params["b_qkv"], params["wo"], params["bo"],
        params["ln1_g"], params["ln1_b"],
        params["w1"], params["b1"], params["w2"], params["b2"],
        params["ln2_g"], params["ln2_b"],
        params["cls_w0"], params["cls_b0"],
        params["cls_w1"], params["cls_b1"],
        params["cls_wout"], params["cls_bout"],
    )

    # whole arrays resident in VMEM (everything is tiny: < 0.2 MiB total)
    in_specs = [pl.BlockSpec(a.shape, (lambda i, nd=a.ndim: (0,) * nd))
                for a in inputs]

    return pl.pallas_call(
        _bert_classifier_kernel,
        out_shape=jax.ShapeDtypeStruct((B, N_CLASSES), jnp.float32),
        grid=(1,),
        in_specs=in_specs,
        out_specs=pl.BlockSpec((B, N_CLASSES), lambda i: (0, 0)),
        compiler_params=pltpu.CompilerParams(
            dimension_semantics=("arbitrary",)),
    )(*inputs)


# ---------------------------------- main --------------------------------------
if __name__ == "__main__":
    key = jax.random.PRNGKey(0)
    k_param, k_ids = jax.random.split(key)

    params = init_params(k_param)
    input_ids = jax.random.randint(k_ids, (B, S), 0, VOCAB, dtype=jnp.int32)
    attention_mask = jnp.array([[1, 1, 1, 1, 1, 1, 1, 1],
                                [1, 1, 1, 1, 1, 0, 0, 0]], dtype=jnp.int32)

    logits = bert_classifier_forward(params, input_ids, attention_mask)
    logits = jax.block_until_ready(logits)

    assert logits.shape == (B, N_CLASSES)
    assert bool(jnp.all(jnp.isfinite(logits)))
    print("KERNEL_OK")
</pallas_src>

<mosaic_0001>
module attributes {stable_mosaic.version = 11 : i64} {
  func.func @_bert_classifier_kernel(%arg0: i32, %arg1: memref<16x1xi32, #tpu.memory_space<vmem>>, %arg2: memref<2x8xf32, #tpu.memory_space<vmem>>, %arg3: memref<2x16xf32, #tpu.memory_space<vmem>>, %arg4: memref<16x32xf32, #tpu.memory_space<vmem>>, %arg5: memref<128x32xf32, #tpu.memory_space<vmem>>, %arg6: memref<1x32xf32, #tpu.memory_space<vmem>>, %arg7: memref<1x32xf32, #tpu.memory_space<vmem>>, %arg8: memref<2x32x96xbf16, #tpu.memory_space<vmem>>, %arg9: memref<2x1x96xf32, #tpu.memory_space<vmem>>, %arg10: memref<2x32x32xbf16, #tpu.memory_space<vmem>>, %arg11: memref<2x1x32xf32, #tpu.memory_space<vmem>>, %arg12: memref<2x1x32xf32, #tpu.memory_space<vmem>>, %arg13: memref<2x1x32xf32, #tpu.memory_space<vmem>>, %arg14: memref<2x32x64xbf16, #tpu.memory_space<vmem>>, %arg15: memref<2x1x64xf32, #tpu.memory_space<vmem>>, %arg16: memref<2x64x32xbf16, #tpu.memory_space<vmem>>, %arg17: memref<2x1x32xf32, #tpu.memory_space<vmem>>, %arg18: memref<2x1x32xf32, #tpu.memory_space<vmem>>, %arg19: memref<2x1x32xf32, #tpu.memory_space<vmem>>, %arg20: memref<32x32xbf16, #tpu.memory_space<vmem>>, %arg21: memref<1x32xf32, #tpu.memory_space<vmem>>, %arg22: memref<32x32xbf16, #tpu.memory_space<vmem>>, %arg23: memref<1x32xf32, #tpu.memory_space<vmem>>, %arg24: memref<32x4xbf16, #tpu.memory_space<vmem>>, %arg25: memref<1x4xf32, #tpu.memory_space<vmem>>, %arg26: memref<2x4xf32, #tpu.memory_space<vmem>>) attributes {dimension_semantics = [#tpu.dimension_semantics<arbitrary>], iteration_bounds = array<i64: 1>, scalar_prefetch = 0 : i64, scratch_operands = 0 : i64, tpu.core_type = #tpu.core_type<tc>, window_params = [{pipeline_mode = #tpu.pipeline_mode<synchronous>, transform_indices = @transform_0, window_bounds = array<i64: 16, 1>}, {pipeline_mode = #tpu.pipeline_mode<synchronous>, transform_indices = @transform_1, window_bounds = array<i64: 2, 8>}, {pipeline_mode = #tpu.pipeline_mode<synchronous>, transform_indices = @transform_2, window_bounds = array<i64: 2, 16>}, {pipeline_mode = #tpu.pipeline_mode<synchronous>, transform_indices = @transform_3, window_bounds = array<i64: 16, 32>}, {pipeline_mode = #tpu.pipeline_mode<synchronous>, transform_indices = @transform_4, window_bounds = array<i64: 128, 32>}, {pipeline_mode = #tpu.pipeline_mode<synchronous>, transform_indices = @transform_5, window_bounds = array<i64: 1, 32>}, {pipeline_mode = #tpu.pipeline_mode<synchronous>, transform_indices = @transform_6, window_bounds = array<i64: 1, 32>}, {pipeline_mode = #tpu.pipeline_mode<synchronous>, transform_indices = @transform_7, window_bounds = array<i64: 2, 32, 96>}, {pipeline_mode = #tpu.pipeline_mode<synchronous>, transform_indices = @transform_8, window_bounds = array<i64: 2, 1, 96>}, {pipeline_mode = #tpu.pipeline_mode<synchronous>, transform_indices = @transform_9, window_bounds = array<i64: 2, 32, 32>}, {pipeline_mode = #tpu.pipeline_mode<synchronous>, transform_indices = @transform_10, window_bounds = array<i64: 2, 1, 32>}, {pipeline_mode = #tpu.pipeline_mode<synchronous>, transform_indices = @transform_11, window_bounds = array<i64: 2, 1, 32>}, {pipeline_mode = #tpu.pipeline_mode<synchronous>, transform_indices = @transform_12, window_bounds = array<i64: 2, 1, 32>}, {pipeline_mode = #tpu.pipeline_mode<synchronous>, transform_indices = @transform_13, window_bounds = array<i64: 2, 32, 64>}, {pipeline_mode = #tpu.pipeline_mode<synchronous>, transform_indices = @transform_14, window_bounds = array<i64: 2, 1, 64>}, {pipeline_mode = #tpu.pipeline_mode<synchronous>, transform_indices = @transform_15, window_bounds = array<i64: 2, 64, 32>}, {pipeline_mode = #tpu.pipeline_mode<synchronous>, transform_indices = @transform_16, window_bounds = array<i64: 2, 1, 32>}, {pipeline_mode = #tpu.pipeline_mode<synchronous>, transform_indices = @transform_17, window_bounds = array<i64: 2, 1, 32>}, {pipeline_mode = #tpu.pipeline_mode<synchronous>, transform_indices = @transform_18, window_bounds = array<i64: 2, 1, 32>}, {pipeline_mode = #tpu.pipeline_mode<synchronous>, transform_indices = @transform_19, window_bounds = array<i64: 32, 32>}, {pipeline_mode = #tpu.pipeline_mode<synchronous>, transform_indices = @transform_20, window_bounds = array<i64: 1, 32>}, {pipeline_mode = #tpu.pipeline_mode<synchronous>, transform_indices = @transform_21, window_bounds = array<i64: 32, 32>}, {pipeline_mode = #tpu.pipeline_mode<synchronous>, transform_indices = @transform_22, window_bounds = array<i64: 1, 32>}, {pipeline_mode = #tpu.pipeline_mode<synchronous>, transform_indices = @transform_23, window_bounds = array<i64: 32, 4>}, {pipeline_mode = #tpu.pipeline_mode<synchronous>, transform_indices = @transform_24, window_bounds = array<i64: 1, 4>}, {pipeline_mode = #tpu.pipeline_mode<synchronous>, transform_indices = @transform_25, window_bounds = array<i64: 2, 4>}]} {
    %c0 = arith.constant 0 : index
    %c0_0 = arith.constant 0 : index
    %0 = vector.load %arg1[%c0, %c0_0] : memref<16x1xi32, #tpu.memory_space<vmem>>, vector<16x1xi32>
    %1 = tpu.iota {dimensions = array<i32: 1>} : vector<16x128xi32>
    %2 = vector.broadcast %0 : vector<16x1xi32> to vector<16x128xi32>
    %3 = arith.cmpi eq, %1, %2 : vector<16x128xi32>
    %4 = arith.extui %3 : vector<16x128xi1> to vector<16x128xi32>
    %5 = arith.sitofp %4 : vector<16x128xi32> to vector<16x128xf32>
    %c0_1 = arith.constant 0 : index
    %c0_2 = arith.constant 0 : index
    %6 = vector.load %arg5[%c0_1, %c0_2] : memref<128x32xf32, #tpu.memory_space<vmem>>, vector<128x32xf32>
    %cst = arith.constant dense<0.000000e+00> : vector<16x32xf32>
    %7 = tpu.matmul %5, %6, %cst {dimension_numbers = #tpu.dot_dimension_numbers<[1], [0], [0], [1], [0, 0, 1, 1], [], []>} : vector<16x128xf32>, vector<128x32xf32>, vector<16x32xf32> -> vector<16x32xf32>
    %c0_3 = arith.constant 0 : index
    %c0_4 = arith.constant 0 : index
    %8 = vector.load %arg4[%c0_3, %c0_4] : memref<16x32xf32, #tpu.memory_space<vmem>>, vector<16x32xf32>
    %9 = arith.addf %7, %8 : vector<16x32xf32>
    %c0_5 = arith.constant 0 : index
    %c0_6 = arith.constant 0 : index
    %10 = vector.load %arg6[%c0_5, %c0_6] : memref<1x32xf32, #tpu.memory_space<vmem>>, vector<1x32xf32>
    %c0_7 = arith.constant 0 : index
    %c0_8 = arith.constant 0 : index
    %11 = vector.load %arg7[%c0_7, %c0_8] : memref<1x32xf32, #tpu.memory_space<vmem>>, vector<1x32xf32>
    %cst_9 = arith.constant dense<0.000000e+00> : vector<16xf32>
    %12 = vector.multi_reduction <add>, %9, %cst_9 [1] : vector<16x32xf32> to vector<16xf32>
    %13 = vector.shape_cast %12 : vector<16xf32> to vector<16x1xf32>
    %cst_10 = arith.constant 3.200000e+01 : f32
    %14 = vector.broadcast %cst_10 : f32 to vector<16x1xf32>
    %15 = arith.divf %13, %14 : vector<16x1xf32>
    %16 = vector.broadcast %15 : vector<16x1xf32> to vector<16x32xf32>
    %17 = arith.subf %9, %16 : vector<16x32xf32>
    %18 = arith.mulf %17, %17 : vector<16x32xf32>
    %cst_11 = arith.constant dense<0.000000e+00> : vector<16xf32>
    %19 = vector.multi_reduction <add>, %18, %cst_11 [1] : vector<16x32xf32> to vector<16xf32>
    %20 = vector.shape_cast %19 : vector<16xf32> to vector<16x1xf32>
    %cst_12 = arith.constant 3.200000e+01 : f32
    %21 = vector.broadcast %cst_12 : f32 to vector<16x1xf32>
    %22 = arith.divf %20, %21 : vector<16x1xf32>
    %cst_13 = arith.constant 9.99999996E-13 : f32
    %23 = vector.broadcast %cst_13 : f32 to vector<16x1xf32>
    %24 = arith.addf %22, %23 : vector<16x1xf32>
    %25 = math.rsqrt %24 : vector<16x1xf32>
    %26 = vector.broadcast %25 : vector<16x1xf32> to vector<16x32xf32>
    %27 = arith.mulf %17, %26 : vector<16x32xf32>
    %28 = vector.broadcast %10 : vector<1x32xf32> to vector<16x32xf32>
    %29 = arith.mulf %27, %28 : vector<16x32xf32>
    %30 = vector.broadcast %11 : vector<1x32xf32> to vector<16x32xf32>
    %31 = arith.addf %29, %30 : vector<16x32xf32>
    %c0_14 = arith.constant 0 : index
    %c0_15 = arith.constant 0 : index
    %32 = vector.load %arg2[%c0_14, %c0_15] : memref<2x8xf32, #tpu.memory_space<vmem>>, vector<2x8xf32>
    %cst_16 = arith.constant 1.000000e+00 : f32
    %33 = vector.broadcast %cst_16 : f32 to vector<2x8xf32>
    %34 = arith.subf %33, %32 : vector<2x8xf32>
    %cst_17 = arith.constant -1.000000e+09 : f32
    %35 = vector.broadcast %cst_17 : f32 to vector<2x8xf32>
    %36 = arith.mulf %34, %35 : vector<2x8xf32>
    %c0_18 = arith.constant 0 : index
    %c0_19 = arith.constant 0 : index
    %c0_20 = arith.constant 0 : index
    %37 = vector.load %arg8[%c0_18, %c0_19, %c0_20] : memref<2x32x96xbf16, #tpu.memory_space<vmem>>, vector<1x32x96xbf16>
    %38 = vector.shape_cast %37 : vector<1x32x96xbf16> to vector<32x96xbf16>
    %39 = arith.truncf %31 : vector<16x32xf32> to vector<16x32xbf16>
    %cst_21 = arith.constant dense<0.000000e+00> : vector<16x96xf32>
    %40 = tpu.matmul %39, %38, %cst_21 {dimension_numbers = #tpu.dot_dimension_numbers<[1], [0], [0], [1], [0, 0, 1, 1], [], []>} : vector<16x32xbf16>, vector<32x96xbf16>, vector<16x96xf32> -> vector<16x96xf32>
    %c0_22 = arith.constant 0 : index
    %c0_23 = arith.constant 0 : index
    %c0_24 = arith.constant 0 : index
    %41 = vector.load %arg9[%c0_22, %c0_23, %c0_24] : memref<2x1x96xf32, #tpu.memory_space<vmem>>, vector<1x1x96xf32>
    %42 = vector.shape_cast %41 : vector<1x1x96xf32> to vector<1x96xf32>
    %43 = vector.broadcast %42 : vector<1x96xf32> to vector<16x96xf32>
    %44 = arith.addf %40, %43 : vector<16x96xf32>
    %45 = vector.extract_strided_slice %44 {offsets = [0, 0], sizes = [8, 8], strides = [1, 1]} : vector<16x96xf32> to vector<8x8xf32>
    %46 = vector.extract_strided_slice %44 {offsets = [0, 32], sizes = [8, 8], strides = [1, 1]} : vector<16x96xf32> to vector<8x8xf32>
    %47 = vector.extract_strided_slice %44 {offsets = [0, 64], sizes = [8, 8], strides = [1, 1]} : vector<16x96xf32> to vector<8x8xf32>
    %48 = arith.truncf %45 : vector<8x8xf32> to vector<8x8xbf16>
    %49 = arith.truncf %46 : vector<8x8xf32> to vector<8x8xbf16>
    "tpu.trace_start"() <{level = 10 : i32, message = "qd,kd->qk"}> : () -> ()
    %cst_25 = arith.constant dense<0.000000e+00> : vector<8x8xf32>
    %50 = tpu.matmul %48, %49, %cst_25 {dimension_numbers = #tpu.dot_dimension_numbers<[1], [1], [0], [0], [0, 0, 1, 0], [], []>} : vector<8x8xbf16>, vector<8x8xbf16>, vector<8x8xf32> -> vector<8x8xf32>
    "tpu.trace_stop"() : () -> ()
    %cst_26 = arith.constant 0.353553385 : f32
    %51 = vector.broadcast %cst_26 : f32 to vector<8x8xf32>
    %52 = arith.mulf %50, %51 : vector<8x8xf32>
    %53 = vector.extract_strided_slice %36 {offsets = [0, 0], sizes = [1, 8], strides = [1, 1]} : vector<2x8xf32> to vector<1x8xf32>
    %54 = vector.broadcast %53 : vector<1x8xf32> to vector<8x8xf32>
    %55 = arith.addf %52, %54 : vector<8x8xf32>
    %cst_27 = arith.constant dense<0xFF800000> : vector<8xf32>
    %56 = vector.multi_reduction <maximumf>, %55, %cst_27 [1] : vector<8x8xf32> to vector<8xf32>
    %57 = vector.shape_cast %56 : vector<8xf32> to vector<8x1xf32>
    %58 = vector.broadcast %57 : vector<8x1xf32> to vector<8x8xf32>
    %59 = arith.subf %55, %58 : vector<8x8xf32>
    %60 = math.exp %59 : vector<8x8xf32>
    %cst_28 = arith.constant dense<0.000000e+00> : vector<8xf32>
    %61 = vector.multi_reduction <add>, %60, %cst_28 [1] : vector<8x8xf32> to vector<8xf32>
    %62 = vector.shape_cast %61 : vector<8xf32> to vector<8x1xf32>
    %63 = tpu.reciprocal %62 {approx = true} : vector<8x1xf32> -> vector<8x1xf32>
    %64 = vector.broadcast %63 : vector<8x1xf32> to vector<8x8xf32>
    %65 = arith.mulf %60, %64 : vector<8x8xf32>
    %66 = arith.truncf %65 : vector<8x8xf32> to vector<8x8xbf16>
    %67 = arith.truncf %47 : vector<8x8xf32> to vector<8x8xbf16>
    %cst_29 = arith.constant dense<0.000000e+00> : vector<8x8xf32>
    %68 = tpu.matmul %66, %67, %cst_29 {dimension_numbers = #tpu.dot_dimension_numbers<[1], [0], [0], [1], [0, 0, 1, 1], [], []>} : vector<8x8xbf16>, vector<8x8xbf16>, vector<8x8xf32> -> vector<8x8xf32>
    %69 = vector.extract_strided_slice %44 {offsets = [0, 8], sizes = [8, 8], strides = [1, 1]} : vector<16x96xf32> to vector<8x8xf32>
    %70 = vector.extract_strided_slice %44 {offsets = [0, 40], sizes = [8, 8], strides = [1, 1]} : vector<16x96xf32> to vector<8x8xf32>
    %71 = vector.extract_strided_slice %44 {offsets = [0, 72], sizes = [8, 8], strides = [1, 1]} : vector<16x96xf32> to vector<8x8xf32>
    %72 = arith.truncf %69 : vector<8x8xf32> to vector<8x8xbf16>
    %73 = arith.truncf %70 : vector<8x8xf32> to vector<8x8xbf16>
    "tpu.trace_start"() <{level = 10 : i32, message = "qd,kd->qk"}> : () -> ()
    %cst_30 = arith.constant dense<0.000000e+00> : vector<8x8xf32>
    %74 = tpu.matmul %72, %73, %cst_30 {dimension_numbers = #tpu.dot_dimension_numbers<[1], [1], [0], [0], [0, 0, 1, 0], [], []>} : vector<8x8xbf16>, vector<8x8xbf16>, vector<8x8xf32> -> vector<8x8xf32>
    "tpu.trace_stop"() : () -> ()
    %cst_31 = arith.constant 0.353553385 : f32
    %75 = vector.broadcast %cst_31 : f32 to vector<8x8xf32>
    %76 = arith.mulf %74, %75 : vector<8x8xf32>
    %77 = vector.extract_strided_slice %36 {offsets = [0, 0], sizes = [1, 8], strides = [1, 1]} : vector<2x8xf32> to vector<1x8xf32>
    %78 = vector.broadcast %77 : vector<1x8xf32> to vector<8x8xf32>
    %79 = arith.addf %76, %78 : vector<8x8xf32>
    %cst_32 = arith.constant dense<0xFF800000> : vector<8xf32>
    %80 = vector.multi_reduction <maximumf>, %79, %cst_32 [1] : vector<8x8xf32> to vector<8xf32>
    %81 = vector.shape_cast %80 : vector<8xf32> to vector<8x1xf32>
    %82 = vector.broadcast %81 : vector<8x1xf32> to vector<8x8xf32>
    %83 = arith.subf %79, %82 : vector<8x8xf32>
    %84 = math.exp %83 : vector<8x8xf32>
    %cst_33 = arith.constant dense<0.000000e+00> : vector<8xf32>
    %85 = vector.multi_reduction <add>, %84, %cst_33 [1] : vector<8x8xf32> to vector<8xf32>
    %86 = vector.shape_cast %85 : vector<8xf32> to vector<8x1xf32>
    %87 = tpu.reciprocal %86 {approx = true} : vector<8x1xf32> -> vector<8x1xf32>
    %88 = vector.broadcast %87 : vector<8x1xf32> to vector<8x8xf32>
    %89 = arith.mulf %84, %88 : vector<8x8xf32>
    %90 = arith.truncf %89 : vector<8x8xf32> to vector<8x8xbf16>
    %91 = arith.truncf %71 : vector<8x8xf32> to vector<8x8xbf16>
    %cst_34 = arith.constant dense<0.000000e+00> : vector<8x8xf32>
    %92 = tpu.matmul %90, %91, %cst_34 {dimension_numbers = #tpu.dot_dimension_numbers<[1], [0], [0], [1], [0, 0, 1, 1], [], []>} : vector<8x8xbf16>, vector<8x8xbf16>, vector<8x8xf32> -> vector<8x8xf32>
    %93 = vector.extract_strided_slice %44 {offsets = [0, 16], sizes = [8, 8], strides = [1, 1]} : vector<16x96xf32> to vector<8x8xf32>
    %94 = vector.extract_strided_slice %44 {offsets = [0, 48], sizes = [8, 8], strides = [1, 1]} : vector<16x96xf32> to vector<8x8xf32>
    %95 = vector.extract_strided_slice %44 {offsets = [0, 80], sizes = [8, 8], strides = [1, 1]} : vector<16x96xf32> to vector<8x8xf32>
    %96 = arith.truncf %93 : vector<8x8xf32> to vector<8x8xbf16>
    %97 = arith.truncf %94 : vector<8x8xf32> to vector<8x8xbf16>
    "tpu.trace_start"() <{level = 10 : i32, message = "qd,kd->qk"}> : () -> ()
    %cst_35 = arith.constant dense<0.000000e+00> : vector<8x8xf32>
    %98 = tpu.matmul %96, %97, %cst_35 {dimension_numbers = #tpu.dot_dimension_numbers<[1], [1], [0], [0], [0, 0, 1, 0], [], []>} : vector<8x8xbf16>, vector<8x8xbf16>, vector<8x8xf32> -> vector<8x8xf32>
    "tpu.trace_stop"() : () -> ()
    %cst_36 = arith.constant 0.353553385 : f32
    %99 = vector.broadcast %cst_36 : f32 to vector<8x8xf32>
    %100 = arith.mulf %98, %99 : vector<8x8xf32>
    %101 = vector.extract_strided_slice %36 {offsets = [0, 0], sizes = [1, 8], strides = [1, 1]} : vector<2x8xf32> to vector<1x8xf32>
    %102 = vector.broadcast %101 : vector<1x8xf32> to vector<8x8xf32>
    %103 = arith.addf %100, %102 : vector<8x8xf32>
    %cst_37 = arith.constant dense<0xFF800000> : vector<8xf32>
    %104 = vector.multi_reduction <maximumf>, %103, %cst_37 [1] : vector<8x8xf32> to vector<8xf32>
    %105 = vector.shape_cast %104 : vector<8xf32> to vector<8x1xf32>
    %106 = vector.broadcast %105 : vector<8x1xf32> to vector<8x8xf32>
    %107 = arith.subf %103, %106 : vector<8x8xf32>
    %108 = math.exp %107 : vector<8x8xf32>
    %cst_38 = arith.constant dense<0.000000e+00> : vector<8xf32>
    %109 = vector.multi_reduction <add>, %108, %cst_38 [1] : vector<8x8xf32> to vector<8xf32>
    %110 = vector.shape_cast %109 : vector<8xf32> to vector<8x1xf32>
    %111 = tpu.reciprocal %110 {approx = true} : vector<8x1xf32> -> vector<8x1xf32>
    %112 = vector.broadcast %111 : vector<8x1xf32> to vector<8x8xf32>
    %113 = arith.mulf %108, %112 : vector<8x8xf32>
    %114 = arith.truncf %113 : vector<8x8xf32> to vector<8x8xbf16>
    %115 = arith.truncf %95 : vector<8x8xf32> to vector<8x8xbf16>
    %cst_39 = arith.constant dense<0.000000e+00> : vector<8x8xf32>
    %116 = tpu.matmul %114, %115, %cst_39 {dimension_numbers = #tpu.dot_dimension_numbers<[1], [0], [0], [1], [0, 0, 1, 1], [], []>} : vector<8x8xbf16>, vector<8x8xbf16>, vector<8x8xf32> -> vector<8x8xf32>
    %117 = vector.extract_strided_slice %44 {offsets = [0, 24], sizes = [8, 8], strides = [1, 1]} : vector<16x96xf32> to vector<8x8xf32>
    %118 = vector.extract_strided_slice %44 {offsets = [0, 56], sizes = [8, 8], strides = [1, 1]} : vector<16x96xf32> to vector<8x8xf32>
    %119 = vector.extract_strided_slice %44 {offsets = [0, 88], sizes = [8, 8], strides = [1, 1]} : vector<16x96xf32> to vector<8x8xf32>
    %120 = arith.truncf %117 : vector<8x8xf32> to vector<8x8xbf16>
    %121 = arith.truncf %118 : vector<8x8xf32> to vector<8x8xbf16>
    "tpu.trace_start"() <{level = 10 : i32, message = "qd,kd->qk"}> : () -> ()
    %cst_40 = arith.constant dense<0.000000e+00> : vector<8x8xf32>
    %122 = tpu.matmul %120, %121, %cst_40 {dimension_numbers = #tpu.dot_dimension_numbers<[1], [1], [0], [0], [0, 0, 1, 0], [], []>} : vector<8x8xbf16>, vector<8x8xbf16>, vector<8x8xf32> -> vector<8x8xf32>
    "tpu.trace_stop"() : () -> ()
    %cst_41 = arith.constant 0.353553385 : f32
    %123 = vector.broadcast %cst_41 : f32 to vector<8x8xf32>
    %124 = arith.mulf %122, %123 : vector<8x8xf32>
    %125 = vector.extract_strided_slice %36 {offsets = [0, 0], sizes = [1, 8], strides = [1, 1]} : vector<2x8xf32> to vector<1x8xf32>
    %126 = vector.broadcast %125 : vector<1x8xf32> to vector<8x8xf32>
    %127 = arith.addf %124, %126 : vector<8x8xf32>
    %cst_42 = arith.constant dense<0xFF800000> : vector<8xf32>
    %128 = vector.multi_reduction <maximumf>, %127, %cst_42 [1] : vector<8x8xf32> to vector<8xf32>
    %129 = vector.shape_cast %128 : vector<8xf32> to vector<8x1xf32>
    %130 = vector.broadcast %129 : vector<8x1xf32> to vector<8x8xf32>
    %131 = arith.subf %127, %130 : vector<8x8xf32>
    %132 = math.exp %131 : vector<8x8xf32>
    %cst_43 = arith.constant dense<0.000000e+00> : vector<8xf32>
    %133 = vector.multi_reduction <add>, %132, %cst_43 [1] : vector<8x8xf32> to vector<8xf32>
    %134 = vector.shape_cast %133 : vector<8xf32> to vector<8x1xf32>
    %135 = tpu.reciprocal %134 {approx = true} : vector<8x1xf32> -> vector<8x1xf32>
    %136 = vector.broadcast %135 : vector<8x1xf32> to vector<8x8xf32>
    %137 = arith.mulf %132, %136 : vector<8x8xf32>
    %138 = arith.truncf %137 : vector<8x8xf32> to vector<8x8xbf16>
    %139 = arith.truncf %119 : vector<8x8xf32> to vector<8x8xbf16>
    %cst_44 = arith.constant dense<0.000000e+00> : vector<8x8xf32>
    %140 = tpu.matmul %138, %139, %cst_44 {dimension_numbers = #tpu.dot_dimension_numbers<[1], [0], [0], [1], [0, 0, 1, 1], [], []>} : vector<8x8xbf16>, vector<8x8xbf16>, vector<8x8xf32> -> vector<8x8xf32>
    %141 = tpu.concatenate %68, %92, %116, %140 in 1 : vector<8x8xf32>, vector<8x8xf32>, vector<8x8xf32>, vector<8x8xf32> -> vector<8x32xf32>
    %142 = vector.extract_strided_slice %44 {offsets = [8, 0], sizes = [8, 8], strides = [1, 1]} : vector<16x96xf32> to vector<8x8xf32>
    %143 = vector.extract_strided_slice %44 {offsets = [8, 32], sizes = [8, 8], strides = [1, 1]} : vector<16x96xf32> to vector<8x8xf32>
    %144 = vector.extract_strided_slice %44 {offsets = [8, 64], sizes = [8, 8], strides = [1, 1]} : vector<16x96xf32> to vector<8x8xf32>
    %145 = arith.truncf %142 : vector<8x8xf32> to vector<8x8xbf16>
    %146 = arith.truncf %143 : vector<8x8xf32> to vector<8x8xbf16>
    "tpu.trace_start"() <{level = 10 : i32, message = "qd,kd->qk"}> : () -> ()
    %cst_45 = arith.constant dense<0.000000e+00> : vector<8x8xf32>
    %147 = tpu.matmul %145, %146, %cst_45 {dimension_numbers = #tpu.dot_dimension_numbers<[1], [1], [0], [0], [0, 0, 1, 0], [], []>} : vector<8x8xbf16>, vector<8x8xbf16>, vector<8x8xf32> -> vector<8x8xf32>
    "tpu.trace_stop"() : () -> ()
    %cst_46 = arith.constant 0.353553385 : f32
    %148 = vector.broadcast %cst_46 : f32 to vector<8x8xf32>
    %149 = arith.mulf %147, %148 : vector<8x8xf32>
    %150 = vector.extract_strided_slice %36 {offsets = [1, 0], sizes = [1, 8], strides = [1, 1]} : vector<2x8xf32> to vector<1x8xf32>
    %151 = vector.broadcast %150 : vector<1x8xf32> to vector<8x8xf32>
    %152 = arith.addf %149, %151 : vector<8x8xf32>
    %cst_47 = arith.constant dense<0xFF800000> : vector<8xf32>
    %153 = vector.multi_reduction <maximumf>, %152, %cst_47 [1] : vector<8x8xf32> to vector<8xf32>
    %154 = vector.shape_cast %153 : vector<8xf32> to vector<8x1xf32>
    %155 = vector.broadcast %154 : vector<8x1xf32> to vector<8x8xf32>
    %156 = arith.subf %152, %155 : vector<8x8xf32>
    %157 = math.exp %156 : vector<8x8xf32>
    %cst_48 = arith.constant dense<0.000000e+00> : vector<8xf32>
    %158 = vector.multi_reduction <add>, %157, %cst_48 [1] : vector<8x8xf32> to vector<8xf32>
    %159 = vector.shape_cast %158 : vector<8xf32> to vector<8x1xf32>
    %160 = tpu.reciprocal %159 {approx = true} : vector<8x1xf32> -> vector<8x1xf32>
    %161 = vector.broadcast %160 : vector<8x1xf32> to vector<8x8xf32>
    %162 = arith.mulf %157, %161 : vector<8x8xf32>
    %163 = arith.truncf %162 : vector<8x8xf32> to vector<8x8xbf16>
    %164 = arith.truncf %144 : vector<8x8xf32> to vector<8x8xbf16>
    %cst_49 = arith.constant dense<0.000000e+00> : vector<8x8xf32>
    %165 = tpu.matmul %163, %164, %cst_49 {dimension_numbers = #tpu.dot_dimension_numbers<[1], [0], [0], [1], [0, 0, 1, 1], [], []>} : vector<8x8xbf16>, vector<8x8xbf16>, vector<8x8xf32> -> vector<8x8xf32>
    %166 = vector.extract_strided_slice %44 {offsets = [8, 8], sizes = [8, 8], strides = [1, 1]} : vector<16x96xf32> to vector<8x8xf32>
    %167 = vector.extract_strided_slice %44 {offsets = [8, 40], sizes = [8, 8], strides = [1, 1]} : vector<16x96xf32> to vector<8x8xf32>
    %168 = vector.extract_strided_slice %44 {offsets = [8, 72], sizes = [8, 8], strides = [1, 1]} : vector<16x96xf32> to vector<8x8xf32>
    %169 = arith.truncf %166 : vector<8x8xf32> to vector<8x8xbf16>
    %170 = arith.truncf %167 : vector<8x8xf32> to vector<8x8xbf16>
    "tpu.trace_start"() <{level = 10 : i32, message = "qd,kd->qk"}> : () -> ()
    %cst_50 = arith.constant dense<0.000000e+00> : vector<8x8xf32>
    %171 = tpu.matmul %169, %170, %cst_50 {dimension_numbers = #tpu.dot_dimension_numbers<[1], [1], [0], [0], [0, 0, 1, 0], [], []>} : vector<8x8xbf16>, vector<8x8xbf16>, vector<8x8xf32> -> vector<8x8xf32>
    "tpu.trace_stop"() : () -> ()
    %cst_51 = arith.constant 0.353553385 : f32
    %172 = vector.broadcast %cst_51 : f32 to vector<8x8xf32>
    %173 = arith.mulf %171, %172 : vector<8x8xf32>
    %174 = vector.extract_strided_slice %36 {offsets = [1, 0], sizes = [1, 8], strides = [1, 1]} : vector<2x8xf32> to vector<1x8xf32>
    %175 = vector.broadcast %174 : vector<1x8xf32> to vector<8x8xf32>
    %176 = arith.addf %173, %175 : vector<8x8xf32>
    %cst_52 = arith.constant dense<0xFF800000> : vector<8xf32>
    %177 = vector.multi_reduction <maximumf>, %176, %cst_52 [1] : vector<8x8xf32> to vector<8xf32>
    %178 = vector.shape_cast %177 : vector<8xf32> to vector<8x1xf32>
    %179 = vector.broadcast %178 : vector<8x1xf32> to vector<8x8xf32>
    %180 = arith.subf %176, %179 : vector<8x8xf32>
    %181 = math.exp %180 : vector<8x8xf32>
    %cst_53 = arith.constant dense<0.000000e+00> : vector<8xf32>
    %182 = vector.multi_reduction <add>, %181, %cst_53 [1] : vector<8x8xf32> to vector<8xf32>
    %183 = vector.shape_cast %182 : vector<8xf32> to vector<8x1xf32>
    %184 = tpu.reciprocal %183 {approx = true} : vector<8x1xf32> -> vector<8x1xf32>
    %185 = vector.broadcast %184 : vector<8x1xf32> to vector<8x8xf32>
    %186 = arith.mulf %181, %185 : vector<8x8xf32>
    %187 = arith.truncf %186 : vector<8x8xf32> to vector<8x8xbf16>
    %188 = arith.truncf %168 : vector<8x8xf32> to vector<8x8xbf16>
    %cst_54 = arith.constant dense<0.000000e+00> : vector<8x8xf32>
    %189 = tpu.matmul %187, %188, %cst_54 {dimension_numbers = #tpu.dot_dimension_numbers<[1], [0], [0], [1], [0, 0, 1, 1], [], []>} : vector<8x8xbf16>, vector<8x8xbf16>, vector<8x8xf32> -> vector<8x8xf32>
    %190 = vector.extract_strided_slice %44 {offsets = [8, 16], sizes = [8, 8], strides = [1, 1]} : vector<16x96xf32> to vector<8x8xf32>
    %191 = vector.extract_strided_slice %44 {offsets = [8, 48], sizes = [8, 8], strides = [1, 1]} : vector<16x96xf32> to vector<8x8xf32>
    %192 = vector.extract_strided_slice %44 {offsets = [8, 80], sizes = [8, 8], strides = [1, 1]} : vector<16x96xf32> to vector<8x8xf32>
    %193 = arith.truncf %190 : vector<8x8xf32> to vector<8x8xbf16>
    %194 = arith.truncf %191 : vector<8x8xf32> to vector<8x8xbf16>
    "tpu.trace_start"() <{level = 10 : i32, message = "qd,kd->qk"}> : () -> ()
    %cst_55 = arith.constant dense<0.000000e+00> : vector<8x8xf32>
    %195 = tpu.matmul %193, %194, %cst_55 {dimension_numbers = #tpu.dot_dimension_numbers<[1], [1], [0], [0], [0, 0, 1, 0], [], []>} : vector<8x8xbf16>, vector<8x8xbf16>, vector<8x8xf32> -> vector<8x8xf32>
    "tpu.trace_stop"() : () -> ()
    %cst_56 = arith.constant 0.353553385 : f32
    %196 = vector.broadcast %cst_56 : f32 to vector<8x8xf32>
    %197 = arith.mulf %195, %196 : vector<8x8xf32>
    %198 = vector.extract_strided_slice %36 {offsets = [1, 0], sizes = [1, 8], strides = [1, 1]} : vector<2x8xf32> to vector<1x8xf32>
    %199 = vector.broadcast %198 : vector<1x8xf32> to vector<8x8xf32>
    %200 = arith.addf %197, %199 : vector<8x8xf32>
    %cst_57 = arith.constant dense<0xFF800000> : vector<8xf32>
    %201 = vector.multi_reduction <maximumf>, %200, %cst_57 [1] : vector<8x8xf32> to vector<8xf32>
    %202 = vector.shape_cast %201 : vector<8xf32> to vector<8x1xf32>
    %203 = vector.broadcast %202 : vector<8x1xf32> to vector<8x8xf32>
    %204 = arith.subf %200, %203 : vector<8x8xf32>
    %205 = math.exp %204 : vector<8x8xf32>
    %cst_58 = arith.constant dense<0.000000e+00> : vector<8xf32>
    %206 = vector.multi_reduction <add>, %205, %cst_58 [1] : vector<8x8xf32> to vector<8xf32>
    %207 = vector.shape_cast %206 : vector<8xf32> to vector<8x1xf32>
    %208 = tpu.reciprocal %207 {approx = true} : vector<8x1xf32> -> vector<8x1xf32>
    %209 = vector.broadcast %208 : vector<8x1xf32> to vector<8x8xf32>
    %210 = arith.mulf %205, %209 : vector<8x8xf32>
    %211 = arith.truncf %210 : vector<8x8xf32> to vector<8x8xbf16>
    %212 = arith.truncf %192 : vector<8x8xf32> to vector<8x8xbf16>
    %cst_59 = arith.constant dense<0.000000e+00> : vector<8x8xf32>
    %213 = tpu.matmul %211, %212, %cst_59 {dimension_numbers = #tpu.dot_dimension_numbers<[1], [0], [0], [1], [0, 0, 1, 1], [], []>} : vector<8x8xbf16>, vector<8x8xbf16>, vector<8x8xf32> -> vector<8x8xf32>
    %214 = vector.extract_strided_slice %44 {offsets = [8, 24], sizes = [8, 8], strides = [1, 1]} : vector<16x96xf32> to vector<8x8xf32>
    %215 = vector.extract_strided_slice %44 {offsets = [8, 56], sizes = [8, 8], strides = [1, 1]} : vector<16x96xf32> to vector<8x8xf32>
    %216 = vector.extract_strided_slice %44 {offsets = [8, 88], sizes = [8, 8], strides = [1, 1]} : vector<16x96xf32> to vector<8x8xf32>
    %217 = arith.truncf %214 : vector<8x8xf32> to vector<8x8xbf16>
    %218 = arith.truncf %215 : vector<8x8xf32> to vector<8x8xbf16>
    "tpu.trace_start"() <{level = 10 : i32, message = "qd,kd->qk"}> : () -> ()
    %cst_60 = arith.constant dense<0.000000e+00> : vector<8x8xf32>
    %219 = tpu.matmul %217, %218, %cst_60 {dimension_numbers = #tpu.dot_dimension_numbers<[1], [1], [0], [0], [0, 0, 1, 0], [], []>} : vector<8x8xbf16>, vector<8x8xbf16>, vector<8x8xf32> -> vector<8x8xf32>
    "tpu.trace_stop"() : () -> ()
    %cst_61 = arith.constant 0.353553385 : f32
    %220 = vector.broadcast %cst_61 : f32 to vector<8x8xf32>
    %221 = arith.mulf %219, %220 : vector<8x8xf32>
    %222 = vector.extract_strided_slice %36 {offsets = [1, 0], sizes = [1, 8], strides = [1, 1]} : vector<2x8xf32> to vector<1x8xf32>
    %223 = vector.broadcast %222 : vector<1x8xf32> to vector<8x8xf32>
    %224 = arith.addf %221, %223 : vector<8x8xf32>
    %cst_62 = arith.constant dense<0xFF800000> : vector<8xf32>
    %225 = vector.multi_reduction <maximumf>, %224, %cst_62 [1] : vector<8x8xf32> to vector<8xf32>
    %226 = vector.shape_cast %225 : vector<8xf32> to vector<8x1xf32>
    %227 = vector.broadcast %226 : vector<8x1xf32> to vector<8x8xf32>
    %228 = arith.subf %224, %227 : vector<8x8xf32>
    %229 = math.exp %228 : vector<8x8xf32>
    %cst_63 = arith.constant dense<0.000000e+00> : vector<8xf32>
    %230 = vector.multi_reduction <add>, %229, %cst_63 [1] : vector<8x8xf32> to vector<8xf32>
    %231 = vector.shape_cast %230 : vector<8xf32> to vector<8x1xf32>
    %232 = tpu.reciprocal %231 {approx = true} : vector<8x1xf32> -> vector<8x1xf32>
    %233 = vector.broadcast %232 : vector<8x1xf32> to vector<8x8xf32>
    %234 = arith.mulf %229, %233 : vector<8x8xf32>
    %235 = arith.truncf %234 : vector<8x8xf32> to vector<8x8xbf16>
    %236 = arith.truncf %216 : vector<8x8xf32> to vector<8x8xbf16>
    %cst_64 = arith.constant dense<0.000000e+00> : vector<8x8xf32>
    %237 = tpu.matmul %235, %236, %cst_64 {dimension_numbers = #tpu.dot_dimension_numbers<[1], [0], [0], [1], [0, 0, 1, 1], [], []>} : vector<8x8xbf16>, vector<8x8xbf16>, vector<8x8xf32> -> vector<8x8xf32>
    %238 = tpu.concatenate %165, %189, %213, %237 in 1 : vector<8x8xf32>, vector<8x8xf32>, vector<8x8xf32>, vector<8x8xf32> -> vector<8x32xf32>
    %239 = tpu.concatenate %141, %238 in 0 : vector<8x32xf32>, vector<8x32xf32> -> vector<16x32xf32>
    %c0_65 = arith.constant 0 : index
    %c0_66 = arith.constant 0 : index
    %c0_67 = arith.constant 0 : index
    %240 = vector.load %arg10[%c0_65, %c0_66, %c0_67] : memref<2x32x32xbf16, #tpu.memory_space<vmem>>, vector<1x32x32xbf16>
    %241 = vector.shape_cast %240 : vector<1x32x32xbf16> to vector<32x32xbf16>
    %242 = arith.truncf %239 : vector<16x32xf32> to vector<16x32xbf16>
    %cst_68 = arith.constant dense<0.000000e+00> : vector<16x32xf32>
    %243 = tpu.matmul %242, %241, %cst_68 {dimension_numbers = #tpu.dot_dimension_numbers<[1], [0], [0], [1], [0, 0, 1, 1], [], []>} : vector<16x32xbf16>, vector<32x32xbf16>, vector<16x32xf32> -> vector<16x32xf32>
    %c0_69 = arith.constant 0 : index
    %c0_70 = arith.constant 0 : index
    %c0_71 = arith.constant 0 : index
    %244 = vector.load %arg11[%c0_69, %c0_70, %c0_71] : memref<2x1x32xf32, #tpu.memory_space<vmem>>, vector<1x1x32xf32>
    %245 = vector.shape_cast %244 : vector<1x1x32xf32> to vector<1x32xf32>
    %246 = vector.broadcast %245 : vector<1x32xf32> to vector<16x32xf32>
    %247 = arith.addf %243, %246 : vector<16x32xf32>
    %248 = arith.addf %31, %247 : vector<16x32xf32>
    %c0_72 = arith.constant 0 : index
    %c0_73 = arith.constant 0 : index
    %c0_74 = arith.constant 0 : index
    %249 = vector.load %arg12[%c0_72, %c0_73, %c0_74] : memref<2x1x32xf32, #tpu.memory_space<vmem>>, vector<1x1x32xf32>
    %250 = vector.shape_cast %249 : vector<1x1x32xf32> to vector<1x32xf32>
    %c0_75 = arith.constant 0 : index
    %c0_76 = arith.constant 0 : index
    %c0_77 = arith.constant 0 : index
    %251 = vector.load %arg13[%c0_75, %c0_76, %c0_77] : memref<2x1x32xf32, #tpu.memory_space<vmem>>, vector<1x1x32xf32>
    %252 = vector.shape_cast %251 : vector<1x1x32xf32> to vector<1x32xf32>
    %cst_78 = arith.constant dense<0.000000e+00> : vector<16xf32>
    %253 = vector.multi_reduction <add>, %248, %cst_78 [1] : vector<16x32xf32> to vector<16xf32>
    %254 = vector.shape_cast %253 : vector<16xf32> to vector<16x1xf32>
    %cst_79 = arith.constant 3.200000e+01 : f32
    %255 = vector.broadcast %cst_79 : f32 to vector<16x1xf32>
    %256 = arith.divf %254, %255 : vector<16x1xf32>
    %257 = vector.broadcast %256 : vector<16x1xf32> to vector<16x32xf32>
    %258 = arith.subf %248, %257 : vector<16x32xf32>
    %259 = arith.mulf %258, %258 : vector<16x32xf32>
    %cst_80 = arith.constant dense<0.000000e+00> : vector<16xf32>
    %260 = vector.multi_reduction <add>, %259, %cst_80 [1] : vector<16x32xf32> to vector<16xf32>
    %261 = vector.shape_cast %260 : vector<16xf32> to vector<16x1xf32>
    %cst_81 = arith.constant 3.200000e+01 : f32
    %262 = vector.broadcast %cst_81 : f32 to vector<16x1xf32>
    %263 = arith.divf %261, %262 : vector<16x1xf32>
    %cst_82 = arith.constant 9.99999996E-13 : f32
    %264 = vector.broadcast %cst_82 : f32 to vector<16x1xf32>
    %265 = arith.addf %263, %264 : vector<16x1xf32>
    %266 = math.rsqrt %265 : vector<16x1xf32>
    %267 = vector.broadcast %266 : vector<16x1xf32> to vector<16x32xf32>
    %268 = arith.mulf %258, %267 : vector<16x32xf32>
    %269 = vector.broadcast %250 : vector<1x32xf32> to vector<16x32xf32>
    %270 = arith.mulf %268, %269 : vector<16x32xf32>
    %271 = vector.broadcast %252 : vector<1x32xf32> to vector<16x32xf32>
    %272 = arith.addf %270, %271 : vector<16x32xf32>
    %c0_83 = arith.constant 0 : index
    %c0_84 = arith.constant 0 : index
    %c0_85 = arith.constant 0 : index
    %273 = vector.load %arg14[%c0_83, %c0_84, %c0_85] : memref<2x32x64xbf16, #tpu.memory_space<vmem>>, vector<1x32x64xbf16>
    %274 = vector.shape_cast %273 : vector<1x32x64xbf16> to vector<32x64xbf16>
    %275 = arith.truncf %272 : vector<16x32xf32> to vector<16x32xbf16>
    %cst_86 = arith.constant dense<0.000000e+00> : vector<16x64xf32>
    %276 = tpu.matmul %275, %274, %cst_86 {dimension_numbers = #tpu.dot_dimension_numbers<[1], [0], [0], [1], [0, 0, 1, 1], [], []>} : vector<16x32xbf16>, vector<32x64xbf16>, vector<16x64xf32> -> vector<16x64xf32>
    %c0_87 = arith.constant 0 : index
    %c0_88 = arith.constant 0 : index
    %c0_89 = arith.constant 0 : index
    %277 = vector.load %arg15[%c0_87, %c0_88, %c0_89] : memref<2x1x64xf32, #tpu.memory_space<vmem>>, vector<1x1x64xf32>
    %278 = vector.shape_cast %277 : vector<1x1x64xf32> to vector<1x64xf32>
    %279 = vector.broadcast %278 : vector<1x64xf32> to vector<16x64xf32>
    %280 = arith.addf %276, %279 : vector<16x64xf32>
    %cst_90 = arith.constant 5.000000e-01 : f32
    %281 = vector.broadcast %cst_90 : f32 to vector<16x64xf32>
    %282 = arith.mulf %281, %280 : vector<16x64xf32>
    %cst_91 = arith.constant 4.471500e-02 : f32
    %283 = vector.broadcast %cst_91 : f32 to vector<16x64xf32>
    %284 = arith.mulf %283, %280 : vector<16x64xf32>
    %285 = arith.mulf %284, %280 : vector<16x64xf32>
    %286 = arith.mulf %285, %280 : vector<16x64xf32>
    %287 = arith.addf %280, %286 : vector<16x64xf32>
    %cst_92 = arith.constant 0.797884583 : f32
    %288 = vector.broadcast %cst_92 : f32 to vector<16x64xf32>
    %289 = arith.mulf %288, %287 : vector<16x64xf32>
    %290 = math.tanh %289 : vector<16x64xf32>
    %cst_93 = arith.constant 1.000000e+00 : f32
    %291 = vector.broadcast %cst_93 : f32 to vector<16x64xf32>
    %292 = arith.addf %291, %290 : vector<16x64xf32>
    %293 = arith.mulf %282, %292 : vector<16x64xf32>
    %c0_94 = arith.constant 0 : index
    %c0_95 = arith.constant 0 : index
    %c0_96 = arith.constant 0 : index
    %294 = vector.load %arg16[%c0_94, %c0_95, %c0_96] : memref<2x64x32xbf16, #tpu.memory_space<vmem>>, vector<1x64x32xbf16>
    %295 = vector.shape_cast %294 : vector<1x64x32xbf16> to vector<64x32xbf16>
    %296 = arith.truncf %293 : vector<16x64xf32> to vector<16x64xbf16>
    %cst_97 = arith.constant dense<0.000000e+00> : vector<16x32xf32>
    %297 = tpu.matmul %296, %295, %cst_97 {dimension_numbers = #tpu.dot_dimension_numbers<[1], [0], [0], [1], [0, 0, 1, 1], [], []>} : vector<16x64xbf16>, vector<64x32xbf16>, vector<16x32xf32> -> vector<16x32xf32>
    %c0_98 = arith.constant 0 : index
    %c0_99 = arith.constant 0 : index
    %c0_100 = arith.constant 0 : index
    %298 = vector.load %arg17[%c0_98, %c0_99, %c0_100] : memref<2x1x32xf32, #tpu.memory_space<vmem>>, vector<1x1x32xf32>
    %299 = vector.shape_cast %298 : vector<1x1x32xf32> to vector<1x32xf32>
    %300 = vector.broadcast %299 : vector<1x32xf32> to vector<16x32xf32>
    %301 = arith.addf %297, %300 : vector<16x32xf32>
    %302 = arith.addf %272, %301 : vector<16x32xf32>
    %c0_101 = arith.constant 0 : index
    %c0_102 = arith.constant 0 : index
    %c0_103 = arith.constant 0 : index
    %303 = vector.load %arg18[%c0_101, %c0_102, %c0_103] : memref<2x1x32xf32, #tpu.memory_space<vmem>>, vector<1x1x32xf32>
    %304 = vector.shape_cast %303 : vector<1x1x32xf32> to vector<1x32xf32>
    %c0_104 = arith.constant 0 : index
    %c0_105 = arith.constant 0 : index
    %c0_106 = arith.constant 0 : index
    %305 = vector.load %arg19[%c0_104, %c0_105, %c0_106] : memref<2x1x32xf32, #tpu.memory_space<vmem>>, vector<1x1x32xf32>
    %306 = vector.shape_cast %305 : vector<1x1x32xf32> to vector<1x32xf32>
    %cst_107 = arith.constant dense<0.000000e+00> : vector<16xf32>
    %307 = vector.multi_reduction <add>, %302, %cst_107 [1] : vector<16x32xf32> to vector<16xf32>
    %308 = vector.shape_cast %307 : vector<16xf32> to vector<16x1xf32>
    %cst_108 = arith.constant 3.200000e+01 : f32
    %309 = vector.broadcast %cst_108 : f32 to vector<16x1xf32>
    %310 = arith.divf %308, %309 : vector<16x1xf32>
    %311 = vector.broadcast %310 : vector<16x1xf32> to vector<16x32xf32>
    %312 = arith.subf %302, %311 : vector<16x32xf32>
    %313 = arith.mulf %312, %312 : vector<16x32xf32>
    %cst_109 = arith.constant dense<0.000000e+00> : vector<16xf32>
    %314 = vector.multi_reduction <add>, %313, %cst_109 [1] : vector<16x32xf32> to vector<16xf32>
    %315 = vector.shape_cast %314 : vector<16xf32> to vector<16x1xf32>
    %cst_110 = arith.constant 3.200000e+01 : f32
    %316 = vector.broadcast %cst_110 : f32 to vector<16x1xf32>
    %317 = arith.divf %315, %316 : vector<16x1xf32>
    %cst_111 = arith.constant 9.99999996E-13 : f32
    %318 = vector.broadcast %cst_111 : f32 to vector<16x1xf32>
    %319 = arith.addf %317, %318 : vector<16x1xf32>
    %320 = math.rsqrt %319 : vector<16x1xf32>
    %321 = vector.broadcast %320 : vector<16x1xf32> to vector<16x32xf32>
    %322 = arith.mulf %312, %321 : vector<16x32xf32>
    %323 = vector.broadcast %304 : vector<1x32xf32> to vector<16x32xf32>
    %324 = arith.mulf %322, %323 : vector<16x32xf32>
    %325 = vector.broadcast %306 : vector<1x32xf32> to vector<16x32xf32>
    %326 = arith.addf %324, %325 : vector<16x32xf32>
    %c1 = arith.constant 1 : index
    %c0_112 = arith.constant 0 : index
    %c0_113 = arith.constant 0 : index
    %327 = vector.load %arg8[%c1, %c0_112, %c0_113] : memref<2x32x96xbf16, #tpu.memory_space<vmem>>, vector<1x32x96xbf16>
    %328 = vector.shape_cast %327 : vector<1x32x96xbf16> to vector<32x96xbf16>
    %329 = arith.truncf %326 : vector<16x32xf32> to vector<16x32xbf16>
    %cst_114 = arith.constant dense<0.000000e+00> : vector<16x96xf32>
    %330 = tpu.matmul %329, %328, %cst_114 {dimension_numbers = #tpu.dot_dimension_numbers<[1], [0], [0], [1], [0, 0, 1, 1], [], []>} : vector<16x32xbf16>, vector<32x96xbf16>, vector<16x96xf32> -> vector<16x96xf32>
    %c1_115 = arith.constant 1 : index
    %c0_116 = arith.constant 0 : index
    %c0_117 = arith.constant 0 : index
    %331 = vector.load %arg9[%c1_115, %c0_116, %c0_117] : memref<2x1x96xf32, #tpu.memory_space<vmem>>, vector<1x1x96xf32>
    %332 = vector.shape_cast %331 : vector<1x1x96xf32> to vector<1x96xf32>
    %333 = vector.broadcast %332 : vector<1x96xf32> to vector<16x96xf32>
    %334 = arith.addf %330, %333 : vector<16x96xf32>
    %335 = vector.extract_strided_slice %334 {offsets = [0, 0], sizes = [8, 8], strides = [1, 1]} : vector<16x96xf32> to vector<8x8xf32>
    %336 = vector.extract_strided_slice %334 {offsets = [0, 32], sizes = [8, 8], strides = [1, 1]} : vector<16x96xf32> to vector<8x8xf32>
    %337 = vector.extract_strided_slice %334 {offsets = [0, 64], sizes = [8, 8], strides = [1, 1]} : vector<16x96xf32> to vector<8x8xf32>
    %338 = arith.truncf %335 : vector<8x8xf32> to vector<8x8xbf16>
    %339 = arith.truncf %336 : vector<8x8xf32> to vector<8x8xbf16>
    "tpu.trace_start"() <{level = 10 : i32, message = "qd,kd->qk"}> : () -> ()
    %cst_118 = arith.constant dense<0.000000e+00> : vector<8x8xf32>
    %340 = tpu.matmul %338, %339, %cst_118 {dimension_numbers = #tpu.dot_dimension_numbers<[1], [1], [0], [0], [0, 0, 1, 0], [], []>} : vector<8x8xbf16>, vector<8x8xbf16>, vector<8x8xf32> -> vector<8x8xf32>
    "tpu.trace_stop"() : () -> ()
    %cst_119 = arith.constant 0.353553385 : f32
    %341 = vector.broadcast %cst_119 : f32 to vector<8x8xf32>
    %342 = arith.mulf %340, %341 : vector<8x8xf32>
    %343 = vector.extract_strided_slice %36 {offsets = [0, 0], sizes = [1, 8], strides = [1, 1]} : vector<2x8xf32> to vector<1x8xf32>
    %344 = vector.broadcast %343 : vector<1x8xf32> to vector<8x8xf32>
    %345 = arith.addf %342, %344 : vector<8x8xf32>
    %cst_120 = arith.constant dense<0xFF800000> : vector<8xf32>
    %346 = vector.multi_reduction <maximumf>, %345, %cst_120 [1] : vector<8x8xf32> to vector<8xf32>
    %347 = vector.shape_cast %346 : vector<8xf32> to vector<8x1xf32>
    %348 = vector.broadcast %347 : vector<8x1xf32> to vector<8x8xf32>
    %349 = arith.subf %345, %348 : vector<8x8xf32>
    %350 = math.exp %349 : vector<8x8xf32>
    %cst_121 = arith.constant dense<0.000000e+00> : vector<8xf32>
    %351 = vector.multi_reduction <add>, %350, %cst_121 [1] : vector<8x8xf32> to vector<8xf32>
    %352 = vector.shape_cast %351 : vector<8xf32> to vector<8x1xf32>
    %353 = tpu.reciprocal %352 {approx = true} : vector<8x1xf32> -> vector<8x1xf32>
    %354 = vector.broadcast %353 : vector<8x1xf32> to vector<8x8xf32>
    %355 = arith.mulf %350, %354 : vector<8x8xf32>
    %356 = arith.truncf %355 : vector<8x8xf32> to vector<8x8xbf16>
    %357 = arith.truncf %337 : vector<8x8xf32> to vector<8x8xbf16>
    %cst_122 = arith.constant dense<0.000000e+00> : vector<8x8xf32>
    %358 = tpu.matmul %356, %357, %cst_122 {dimension_numbers = #tpu.dot_dimension_numbers<[1], [0], [0], [1], [0, 0, 1, 1], [], []>} : vector<8x8xbf16>, vector<8x8xbf16>, vector<8x8xf32> -> vector<8x8xf32>
    %359 = vector.extract_strided_slice %334 {offsets = [0, 8], sizes = [8, 8], strides = [1, 1]} : vector<16x96xf32> to vector<8x8xf32>
    %360 = vector.extract_strided_slice %334 {offsets = [0, 40], sizes = [8, 8], strides = [1, 1]} : vector<16x96xf32> to vector<8x8xf32>
    %361 = vector.extract_strided_slice %334 {offsets = [0, 72], sizes = [8, 8], strides = [1, 1]} : vector<16x96xf32> to vector<8x8xf32>
    %362 = arith.truncf %359 : vector<8x8xf32> to vector<8x8xbf16>
    %363 = arith.truncf %360 : vector<8x8xf32> to vector<8x8xbf16>
    "tpu.trace_start"() <{level = 10 : i32, message = "qd,kd->qk"}> : () -> ()
    %cst_123 = arith.constant dense<0.000000e+00> : vector<8x8xf32>
    %364 = tpu.matmul %362, %363, %cst_123 {dimension_numbers = #tpu.dot_dimension_numbers<[1], [1], [0], [0], [0, 0, 1, 0], [], []>} : vector<8x8xbf16>, vector<8x8xbf16>, vector<8x8xf32> -> vector<8x8xf32>
    "tpu.trace_stop"() : () -> ()
    %cst_124 = arith.constant 0.353553385 : f32
    %365 = vector.broadcast %cst_124 : f32 to vector<8x8xf32>
    %366 = arith.mulf %364, %365 : vector<8x8xf32>
    %367 = vector.extract_strided_slice %36 {offsets = [0, 0], sizes = [1, 8], strides = [1, 1]} : vector<2x8xf32> to vector<1x8xf32>
    %368 = vector.broadcast %367 : vector<1x8xf32> to vector<8x8xf32>
    %369 = arith.addf %366, %368 : vector<8x8xf32>
    %cst_125 = arith.constant dense<0xFF800000> : vector<8xf32>
    %370 = vector.multi_reduction <maximumf>, %369, %cst_125 [1] : vector<8x8xf32> to vector<8xf32>
    %371 = vector.shape_cast %370 : vector<8xf32> to vector<8x1xf32>
    %372 = vector.broadcast %371 : vector<8x1xf32> to vector<8x8xf32>
    %373 = arith.subf %369, %372 : vector<8x8xf32>
    %374 = math.exp %373 : vector<8x8xf32>
    %cst_126 = arith.constant dense<0.000000e+00> : vector<8xf32>
    %375 = vector.multi_reduction <add>, %374, %cst_126 [1] : vector<8x8xf32> to vector<8xf32>
    %376 = vector.shape_cast %375 : vector<8xf32> to vector<8x1xf32>
    %377 = tpu.reciprocal %376 {approx = true} : vector<8x1xf32> -> vector<8x1xf32>
    %378 = vector.broadcast %377 : vector<8x1xf32> to vector<8x8xf32>
    %379 = arith.mulf %374, %378 : vector<8x8xf32>
    %380 = arith.truncf %379 : vector<8x8xf32> to vector<8x8xbf16>
    %381 = arith.truncf %361 : vector<8x8xf32> to vector<8x8xbf16>
    %cst_127 = arith.constant dense<0.000000e+00> : vector<8x8xf32>
    %382 = tpu.matmul %380, %381, %cst_127 {dimension_numbers = #tpu.dot_dimension_numbers<[1], [0], [0], [1], [0, 0, 1, 1], [], []>} : vector<8x8xbf16>, vector<8x8xbf16>, vector<8x8xf32> -> vector<8x8xf32>
    %383 = vector.extract_strided_slice %334 {offsets = [0, 16], sizes = [8, 8], strides = [1, 1]} : vector<16x96xf32> to vector<8x8xf32>
    %384 = vector.extract_strided_slice %334 {offsets = [0, 48], sizes = [8, 8], strides = [1, 1]} : vector<16x96xf32> to vector<8x8xf32>
    %385 = vector.extract_strided_slice %334 {offsets = [0, 80], sizes = [8, 8], strides = [1, 1]} : vector<16x96xf32> to vector<8x8xf32>
    %386 = arith.truncf %383 : vector<8x8xf32> to vector<8x8xbf16>
    %387 = arith.truncf %384 : vector<8x8xf32> to vector<8x8xbf16>
    "tpu.trace_start"() <{level = 10 : i32, message = "qd,kd->qk"}> : () -> ()
    %cst_128 = arith.constant dense<0.000000e+00> : vector<8x8xf32>
    %388 = tpu.matmul %386, %387, %cst_128 {dimension_numbers = #tpu.dot_dimension_numbers<[1], [1], [0], [0], [0, 0, 1, 0], [], []>} : vector<8x8xbf16>, vector<8x8xbf16>, vector<8x8xf32> -> vector<8x8xf32>
    "tpu.trace_stop"() : () -> ()
    %cst_129 = arith.constant 0.353553385 : f32
    %389 = vector.broadcast %cst_129 : f32 to vector<8x8xf32>
    %390 = arith.mulf %388, %389 : vector<8x8xf32>
    %391 = vector.extract_strided_slice %36 {offsets = [0, 0], sizes = [1, 8], strides = [1, 1]} : vector<2x8xf32> to vector<1x8xf32>
    %392 = vector.broadcast %391 : vector<1x8xf32> to vector<8x8xf32>
    %393 = arith.addf %390, %392 : vector<8x8xf32>
    %cst_130 = arith.constant dense<0xFF800000> : vector<8xf32>
    %394 = vector.multi_reduction <maximumf>, %393, %cst_130 [1] : vector<8x8xf32> to vector<8xf32>
    %395 = vector.shape_cast %394 : vector<8xf32> to vector<8x1xf32>
    %396 = vector.broadcast %395 : vector<8x1xf32> to vector<8x8xf32>
    %397 = arith.subf %393, %396 : vector<8x8xf32>
    %398 = math.exp %397 : vector<8x8xf32>
    %cst_131 = arith.constant dense<0.000000e+00> : vector<8xf32>
    %399 = vector.multi_reduction <add>, %398, %cst_131 [1] : vector<8x8xf32> to vector<8xf32>
    %400 = vector.shape_cast %399 : vector<8xf32> to vector<8x1xf32>
    %401 = tpu.reciprocal %400 {approx = true} : vector<8x1xf32> -> vector<8x1xf32>
    %402 = vector.broadcast %401 : vector<8x1xf32> to vector<8x8xf32>
    %403 = arith.mulf %398, %402 : vector<8x8xf32>
    %404 = arith.truncf %403 : vector<8x8xf32> to vector<8x8xbf16>
    %405 = arith.truncf %385 : vector<8x8xf32> to vector<8x8xbf16>
    %cst_132 = arith.constant dense<0.000000e+00> : vector<8x8xf32>
    %406 = tpu.matmul %404, %405, %cst_132 {dimension_numbers = #tpu.dot_dimension_numbers<[1], [0], [0], [1], [0, 0, 1, 1], [], []>} : vector<8x8xbf16>, vector<8x8xbf16>, vector<8x8xf32> -> vector<8x8xf32>
    %407 = vector.extract_strided_slice %334 {offsets = [0, 24], sizes = [8, 8], strides = [1, 1]} : vector<16x96xf32> to vector<8x8xf32>
    %408 = vector.extract_strided_slice %334 {offsets = [0, 56], sizes = [8, 8], strides = [1, 1]} : vector<16x96xf32> to vector<8x8xf32>
    %409 = vector.extract_strided_slice %334 {offsets = [0, 88], sizes = [8, 8], strides = [1, 1]} : vector<16x96xf32> to vector<8x8xf32>
    %410 = arith.truncf %407 : vector<8x8xf32> to vector<8x8xbf16>
    %411 = arith.truncf %408 : vector<8x8xf32> to vector<8x8xbf16>
    "tpu.trace_start"() <{level = 10 : i32, message = "qd,kd->qk"}> : () -> ()
    %cst_133 = arith.constant dense<0.000000e+00> : vector<8x8xf32>
    %412 = tpu.matmul %410, %411, %cst_133 {dimension_numbers = #tpu.dot_dimension_numbers<[1], [1], [0], [0], [0, 0, 1, 0], [], []>} : vector<8x8xbf16>, vector<8x8xbf16>, vector<8x8xf32> -> vector<8x8xf32>
    "tpu.trace_stop"() : () -> ()
    %cst_134 = arith.constant 0.353553385 : f32
    %413 = vector.broadcast %cst_134 : f32 to vector<8x8xf32>
    %414 = arith.mulf %412, %413 : vector<8x8xf32>
    %415 = vector.extract_strided_slice %36 {offsets = [0, 0], sizes = [1, 8], strides = [1, 1]} : vector<2x8xf32> to vector<1x8xf32>
    %416 = vector.broadcast %415 : vector<1x8xf32> to vector<8x8xf32>
    %417 = arith.addf %414, %416 : vector<8x8xf32>
    %cst_135 = arith.constant dense<0xFF800000> : vector<8xf32>
    %418 = vector.multi_reduction <maximumf>, %417, %cst_135 [1] : vector<8x8xf32> to vector<8xf32>
    %419 = vector.shape_cast %418 : vector<8xf32> to vector<8x1xf32>
    %420 = vector.broadcast %419 : vector<8x1xf32> to vector<8x8xf32>
    %421 = arith.subf %417, %420 : vector<8x8xf32>
    %422 = math.exp %421 : vector<8x8xf32>
    %cst_136 = arith.constant dense<0.000000e+00> : vector<8xf32>
    %423 = vector.multi_reduction <add>, %422, %cst_136 [1] : vector<8x8xf32> to vector<8xf32>
    %424 = vector.shape_cast %423 : vector<8xf32> to vector<8x1xf32>
    %425 = tpu.reciprocal %424 {approx = true} : vector<8x1xf32> -> vector<8x1xf32>
    %426 = vector.broadcast %425 : vector<8x1xf32> to vector<8x8xf32>
    %427 = arith.mulf %422, %426 : vector<8x8xf32>
    %428 = arith.truncf %427 : vector<8x8xf32> to vector<8x8xbf16>
    %429 = arith.truncf %409 : vector<8x8xf32> to vector<8x8xbf16>
    %cst_137 = arith.constant dense<0.000000e+00> : vector<8x8xf32>
    %430 = tpu.matmul %428, %429, %cst_137 {dimension_numbers = #tpu.dot_dimension_numbers<[1], [0], [0], [1], [0, 0, 1, 1], [], []>} : vector<8x8xbf16>, vector<8x8xbf16>, vector<8x8xf32> -> vector<8x8xf32>
    %431 = tpu.concatenate %358, %382, %406, %430 in 1 : vector<8x8xf32>, vector<8x8xf32>, vector<8x8xf32>, vector<8x8xf32> -> vector<8x32xf32>
    %432 = vector.extract_strided_slice %334 {offsets = [8, 0], sizes = [8, 8], strides = [1, 1]} : vector<16x96xf32> to vector<8x8xf32>
    %433 = vector.extract_strided_slice %334 {offsets = [8, 32], sizes = [8, 8], strides = [1, 1]} : vector<16x96xf32> to vector<8x8xf32>
    %434 = vector.extract_strided_slice %334 {offsets = [8, 64], sizes = [8, 8], strides = [1, 1]} : vector<16x96xf32> to vector<8x8xf32>
    %435 = arith.truncf %432 : vector<8x8xf32> to vector<8x8xbf16>
    %436 = arith.truncf %433 : vector<8x8xf32> to vector<8x8xbf16>
    "tpu.trace_start"() <{level = 10 : i32, message = "qd,kd->qk"}> : () -> ()
    %cst_138 = arith.constant dense<0.000000e+00> : vector<8x8xf32>
    %437 = tpu.matmul %435, %436, %cst_138 {dimension_numbers = #tpu.dot_dimension_numbers<[1], [1], [0], [0], [0, 0, 1, 0], [], []>} : vector<8x8xbf16>, vector<8x8xbf16>, vector<8x8xf32> -> vector<8x8xf32>
    "tpu.trace_stop"() : () -> ()
    %cst_139 = arith.constant 0.353553385 : f32
    %438 = vector.broadcast %cst_139 : f32 to vector<8x8xf32>
    %439 = arith.mulf %437, %438 : vector<8x8xf32>
    %440 = vector.extract_strided_slice %36 {offsets = [1, 0], sizes = [1, 8], strides = [1, 1]} : vector<2x8xf32> to vector<1x8xf32>
    %441 = vector.broadcast %440 : vector<1x8xf32> to vector<8x8xf32>
    %442 = arith.addf %439, %441 : vector<8x8xf32>
    %cst_140 = arith.constant dense<0xFF800000> : vector<8xf32>
    %443 = vector.multi_reduction <maximumf>, %442, %cst_140 [1] : vector<8x8xf32> to vector<8xf32>
    %444 = vector.shape_cast %443 : vector<8xf32> to vector<8x1xf32>
    %445 = vector.broadcast %444 : vector<8x1xf32> to vector<8x8xf32>
    %446 = arith.subf %442, %445 : vector<8x8xf32>
    %447 = math.exp %446 : vector<8x8xf32>
    %cst_141 = arith.constant dense<0.000000e+00> : vector<8xf32>
    %448 = vector.multi_reduction <add>, %447, %cst_141 [1] : vector<8x8xf32> to vector<8xf32>
    %449 = vector.shape_cast %448 : vector<8xf32> to vector<8x1xf32>
    %450 = tpu.reciprocal %449 {approx = true} : vector<8x1xf32> -> vector<8x1xf32>
    %451 = vector.broadcast %450 : vector<8x1xf32> to vector<8x8xf32>
    %452 = arith.mulf %447, %451 : vector<8x8xf32>
    %453 = arith.truncf %452 : vector<8x8xf32> to vector<8x8xbf16>
    %454 = arith.truncf %434 : vector<8x8xf32> to vector<8x8xbf16>
    %cst_142 = arith.constant dense<0.000000e+00> : vector<8x8xf32>
    %455 = tpu.matmul %453, %454, %cst_142 {dimension_numbers = #tpu.dot_dimension_numbers<[1], [0], [0], [1], [0, 0, 1, 1], [], []>} : vector<8x8xbf16>, vector<8x8xbf16>, vector<8x8xf32> -> vector<8x8xf32>
    %456 = vector.extract_strided_slice %334 {offsets = [8, 8], sizes = [8, 8], strides = [1, 1]} : vector<16x96xf32> to vector<8x8xf32>
    %457 = vector.extract_strided_slice %334 {offsets = [8, 40], sizes = [8, 8], strides = [1, 1]} : vector<16x96xf32> to vector<8x8xf32>
    %458 = vector.extract_strided_slice %334 {offsets = [8, 72], sizes = [8, 8], strides = [1, 1]} : vector<16x96xf32> to vector<8x8xf32>
    %459 = arith.truncf %456 : vector<8x8xf32> to vector<8x8xbf16>
    %460 = arith.truncf %457 : vector<8x8xf32> to vector<8x8xbf16>
    "tpu.trace_start"() <{level = 10 : i32, message = "qd,kd->qk"}> : () -> ()
    %cst_143 = arith.constant dense<0.000000e+00> : vector<8x8xf32>
    %461 = tpu.matmul %459, %460, %cst_143 {dimension_numbers = #tpu.dot_dimension_numbers<[1], [1], [0], [0], [0, 0, 1, 0], [], []>} : vector<8x8xbf16>, vector<8x8xbf16>, vector<8x8xf32> -> vector<8x8xf32>
    "tpu.trace_stop"() : () -> ()
    %cst_144 = arith.constant 0.353553385 : f32
    %462 = vector.broadcast %cst_144 : f32 to vector<8x8xf32>
    %463 = arith.mulf %461, %462 : vector<8x8xf32>
    %464 = vector.extract_strided_slice %36 {offsets = [1, 0], sizes = [1, 8], strides = [1, 1]} : vector<2x8xf32> to vector<1x8xf32>
    %465 = vector.broadcast %464 : vector<1x8xf32> to vector<8x8xf32>
    %466 = arith.addf %463, %465 : vector<8x8xf32>
    %cst_145 = arith.constant dense<0xFF800000> : vector<8xf32>
    %467 = vector.multi_reduction <maximumf>, %466, %cst_145 [1] : vector<8x8xf32> to vector<8xf32>
    %468 = vector.shape_cast %467 : vector<8xf32> to vector<8x1xf32>
    %469 = vector.broadcast %468 : vector<8x1xf32> to vector<8x8xf32>
    %470 = arith.subf %466, %469 : vector<8x8xf32>
    %471 = math.exp %470 : vector<8x8xf32>
    %cst_146 = arith.constant dense<0.000000e+00> : vector<8xf32>
    %472 = vector.multi_reduction <add>, %471, %cst_146 [1] : vector<8x8xf32> to vector<8xf32>
    %473 = vector.shape_cast %472 : vector<8xf32> to vector<8x1xf32>
    %474 = tpu.reciprocal %473 {approx = true} : vector<8x1xf32> -> vector<8x1xf32>
    %475 = vector.broadcast %474 : vector<8x1xf32> to vector<8x8xf32>
    %476 = arith.mulf %471, %475 : vector<8x8xf32>
    %477 = arith.truncf %476 : vector<8x8xf32> to vector<8x8xbf16>
    %478 = arith.truncf %458 : vector<8x8xf32> to vector<8x8xbf16>
    %cst_147 = arith.constant dense<0.000000e+00> : vector<8x8xf32>
    %479 = tpu.matmul %477, %478, %cst_147 {dimension_numbers = #tpu.dot_dimension_numbers<[1], [0], [0], [1], [0, 0, 1, 1], [], []>} : vector<8x8xbf16>, vector<8x8xbf16>, vector<8x8xf32> -> vector<8x8xf32>
    %480 = vector.extract_strided_slice %334 {offsets = [8, 16], sizes = [8, 8], strides = [1, 1]} : vector<16x96xf32> to vector<8x8xf32>
    %481 = vector.extract_strided_slice %334 {offsets = [8, 48], sizes = [8, 8], strides = [1, 1]} : vector<16x96xf32> to vector<8x8xf32>
    %482 = vector.extract_strided_slice %334 {offsets = [8, 80], sizes = [8, 8], strides = [1, 1]} : vector<16x96xf32> to vector<8x8xf32>
    %483 = arith.truncf %480 : vector<8x8xf32> to vector<8x8xbf16>
    %484 = arith.truncf %481 : vector<8x8xf32> to vector<8x8xbf16>
    "tpu.trace_start"() <{level = 10 : i32, message = "qd,kd->qk"}> : () -> ()
    %cst_148 = arith.constant dense<0.000000e+00> : vector<8x8xf32>
    %485 = tpu.matmul %483, %484, %cst_148 {dimension_numbers = #tpu.dot_dimension_numbers<[1], [1], [0], [0], [0, 0, 1, 0], [], []>} : vector<8x8xbf16>, vector<8x8xbf16>, vector<8x8xf32> -> vector<8x8xf32>
    "tpu.trace_stop"() : () -> ()
    %cst_149 = arith.constant 0.353553385 : f32
    %486 = vector.broadcast %cst_149 : f32 to vector<8x8xf32>
    %487 = arith.mulf %485, %486 : vector<8x8xf32>
    %488 = vector.extract_strided_slice %36 {offsets = [1, 0], sizes = [1, 8], strides = [1, 1]} : vector<2x8xf32> to vector<1x8xf32>
    %489 = vector.broadcast %488 : vector<1x8xf32> to vector<8x8xf32>
    %490 = arith.addf %487, %489 : vector<8x8xf32>
    %cst_150 = arith.constant dense<0xFF800000> : vector<8xf32>
    %491 = vector.multi_reduction <maximumf>, %490, %cst_150 [1] : vector<8x8xf32> to vector<8xf32>
    %492 = vector.shape_cast %491 : vector<8xf32> to vector<8x1xf32>
    %493 = vector.broadcast %492 : vector<8x1xf32> to vector<8x8xf32>
    %494 = arith.subf %490, %493 : vector<8x8xf32>
    %495 = math.exp %494 : vector<8x8xf32>
    %cst_151 = arith.constant dense<0.000000e+00> : vector<8xf32>
    %496 = vector.multi_reduction <add>, %495, %cst_151 [1] : vector<8x8xf32> to vector<8xf32>
    %497 = vector.shape_cast %496 : vector<8xf32> to vector<8x1xf32>
    %498 = tpu.reciprocal %497 {approx = true} : vector<8x1xf32> -> vector<8x1xf32>
    %499 = vector.broadcast %498 : vector<8x1xf32> to vector<8x8xf32>
    %500 = arith.mulf %495, %499 : vector<8x8xf32>
    %501 = arith.truncf %500 : vector<8x8xf32> to vector<8x8xbf16>
    %502 = arith.truncf %482 : vector<8x8xf32> to vector<8x8xbf16>
    %cst_152 = arith.constant dense<0.000000e+00> : vector<8x8xf32>
    %503 = tpu.matmul %501, %502, %cst_152 {dimension_numbers = #tpu.dot_dimension_numbers<[1], [0], [0], [1], [0, 0, 1, 1], [], []>} : vector<8x8xbf16>, vector<8x8xbf16>, vector<8x8xf32> -> vector<8x8xf32>
    %504 = vector.extract_strided_slice %334 {offsets = [8, 24], sizes = [8, 8], strides = [1, 1]} : vector<16x96xf32> to vector<8x8xf32>
    %505 = vector.extract_strided_slice %334 {offsets = [8, 56], sizes = [8, 8], strides = [1, 1]} : vector<16x96xf32> to vector<8x8xf32>
    %506 = vector.extract_strided_slice %334 {offsets = [8, 88], sizes = [8, 8], strides = [1, 1]} : vector<16x96xf32> to vector<8x8xf32>
    %507 = arith.truncf %504 : vector<8x8xf32> to vector<8x8xbf16>
    %508 = arith.truncf %505 : vector<8x8xf32> to vector<8x8xbf16>
    "tpu.trace_start"() <{level = 10 : i32, message = "qd,kd->qk"}> : () -> ()
    %cst_153 = arith.constant dense<0.000000e+00> : vector<8x8xf32>
    %509 = tpu.matmul %507, %508, %cst_153 {dimension_numbers = #tpu.dot_dimension_numbers<[1], [1], [0], [0], [0, 0, 1, 0], [], []>} : vector<8x8xbf16>, vector<8x8xbf16>, vector<8x8xf32> -> vector<8x8xf32>
    "tpu.trace_stop"() : () -> ()
    %cst_154 = arith.constant 0.353553385 : f32
    %510 = vector.broadcast %cst_154 : f32 to vector<8x8xf32>
    %511 = arith.mulf %509, %510 : vector<8x8xf32>
    %512 = vector.extract_strided_slice %36 {offsets = [1, 0], sizes = [1, 8], strides = [1, 1]} : vector<2x8xf32> to vector<1x8xf32>
    %513 = vector.broadcast %512 : vector<1x8xf32> to vector<8x8xf32>
    %514 = arith.addf %511, %513 : vector<8x8xf32>
    %cst_155 = arith.constant dense<0xFF800000> : vector<8xf32>
    %515 = vector.multi_reduction <maximumf>, %514, %cst_155 [1] : vector<8x8xf32> to vector<8xf32>
    %516 = vector.shape_cast %515 : vector<8xf32> to vector<8x1xf32>
    %517 = vector.broadcast %516 : vector<8x1xf32> to vector<8x8xf32>
    %518 = arith.subf %514, %517 : vector<8x8xf32>
    %519 = math.exp %518 : vector<8x8xf32>
    %cst_156 = arith.constant dense<0.000000e+00> : vector<8xf32>
    %520 = vector.multi_reduction <add>, %519, %cst_156 [1] : vector<8x8xf32> to vector<8xf32>
    %521 = vector.shape_cast %520 : vector<8xf32> to vector<8x1xf32>
    %522 = tpu.reciprocal %521 {approx = true} : vector<8x1xf32> -> vector<8x1xf32>
    %523 = vector.broadcast %522 : vector<8x1xf32> to vector<8x8xf32>
    %524 = arith.mulf %519, %523 : vector<8x8xf32>
    %525 = arith.truncf %524 : vector<8x8xf32> to vector<8x8xbf16>
    %526 = arith.truncf %506 : vector<8x8xf32> to vector<8x8xbf16>
    %cst_157 = arith.constant dense<0.000000e+00> : vector<8x8xf32>
    %527 = tpu.matmul %525, %526, %cst_157 {dimension_numbers = #tpu.dot_dimension_numbers<[1], [0], [0], [1], [0, 0, 1, 1], [], []>} : vector<8x8xbf16>, vector<8x8xbf16>, vector<8x8xf32> -> vector<8x8xf32>
    %528 = tpu.concatenate %455, %479, %503, %527 in 1 : vector<8x8xf32>, vector<8x8xf32>, vector<8x8xf32>, vector<8x8xf32> -> vector<8x32xf32>
    %529 = tpu.concatenate %431, %528 in 0 : vector<8x32xf32>, vector<8x32xf32> -> vector<16x32xf32>
    %c1_158 = arith.constant 1 : index
    %c0_159 = arith.constant 0 : index
    %c0_160 = arith.constant 0 : index
    %530 = vector.load %arg10[%c1_158, %c0_159, %c0_160] : memref<2x32x32xbf16, #tpu.memory_space<vmem>>, vector<1x32x32xbf16>
    %531 = vector.shape_cast %530 : vector<1x32x32xbf16> to vector<32x32xbf16>
    %532 = arith.truncf %529 : vector<16x32xf32> to vector<16x32xbf16>
    %cst_161 = arith.constant dense<0.000000e+00> : vector<16x32xf32>
    %533 = tpu.matmul %532, %531, %cst_161 {dimension_numbers = #tpu.dot_dimension_numbers<[1], [0], [0], [1], [0, 0, 1, 1], [], []>} : vector<16x32xbf16>, vector<32x32xbf16>, vector<16x32xf32> -> vector<16x32xf32>
    %c1_162 = arith.constant 1 : index
    %c0_163 = arith.constant 0 : index
    %c0_164 = arith.constant 0 : index
    %534 = vector.load %arg11[%c1_162, %c0_163, %c0_164] : memref<2x1x32xf32, #tpu.memory_space<vmem>>, vector<1x1x32xf32>
    %535 = vector.shape_cast %534 : vector<1x1x32xf32> to vector<1x32xf32>
    %536 = vector.broadcast %535 : vector<1x32xf32> to vector<16x32xf32>
    %537 = arith.addf %533, %536 : vector<16x32xf32>
    %538 = arith.addf %326, %537 : vector<16x32xf32>
    %c1_165 = arith.constant 1 : index
    %c0_166 = arith.constant 0 : index
    %c0_167 = arith.constant 0 : index
    %539 = vector.load %arg12[%c1_165, %c0_166, %c0_167] : memref<2x1x32xf32, #tpu.memory_space<vmem>>, vector<1x1x32xf32>
    %540 = vector.shape_cast %539 : vector<1x1x32xf32> to vector<1x32xf32>
    %c1_168 = arith.constant 1 : index
    %c0_169 = arith.constant 0 : index
    %c0_170 = arith.constant 0 : index
    %541 = vector.load %arg13[%c1_168, %c0_169, %c0_170] : memref<2x1x32xf32, #tpu.memory_space<vmem>>, vector<1x1x32xf32>
    %542 = vector.shape_cast %541 : vector<1x1x32xf32> to vector<1x32xf32>
    %cst_171 = arith.constant dense<0.000000e+00> : vector<16xf32>
    %543 = vector.multi_reduction <add>, %538, %cst_171 [1] : vector<16x32xf32> to vector<16xf32>
    %544 = vector.shape_cast %543 : vector<16xf32> to vector<16x1xf32>
    %cst_172 = arith.constant 3.200000e+01 : f32
    %545 = vector.broadcast %cst_172 : f32 to vector<16x1xf32>
    %546 = arith.divf %544, %545 : vector<16x1xf32>
    %547 = vector.broadcast %546 : vector<16x1xf32> to vector<16x32xf32>
    %548 = arith.subf %538, %547 : vector<16x32xf32>
    %549 = arith.mulf %548, %548 : vector<16x32xf32>
    %cst_173 = arith.constant dense<0.000000e+00> : vector<16xf32>
    %550 = vector.multi_reduction <add>, %549, %cst_173 [1] : vector<16x32xf32> to vector<16xf32>
    %551 = vector.shape_cast %550 : vector<16xf32> to vector<16x1xf32>
    %cst_174 = arith.constant 3.200000e+01 : f32
    %552 = vector.broadcast %cst_174 : f32 to vector<16x1xf32>
    %553 = arith.divf %551, %552 : vector<16x1xf32>
    %cst_175 = arith.constant 9.99999996E-13 : f32
    %554 = vector.broadcast %cst_175 : f32 to vector<16x1xf32>
    %555 = arith.addf %553, %554 : vector<16x1xf32>
    %556 = math.rsqrt %555 : vector<16x1xf32>
    %557 = vector.broadcast %556 : vector<16x1xf32> to vector<16x32xf32>
    %558 = arith.mulf %548, %557 : vector<16x32xf32>
    %559 = vector.broadcast %540 : vector<1x32xf32> to vector<16x32xf32>
    %560 = arith.mulf %558, %559 : vector<16x32xf32>
    %561 = vector.broadcast %542 : vector<1x32xf32> to vector<16x32xf32>
    %562 = arith.addf %560, %561 : vector<16x32xf32>
    %c1_176 = arith.constant 1 : index
    %c0_177 = arith.constant 0 : index
    %c0_178 = arith.constant 0 : index
    %563 = vector.load %arg14[%c1_176, %c0_177, %c0_178] : memref<2x32x64xbf16, #tpu.memory_space<vmem>>, vector<1x32x64xbf16>
    %564 = vector.shape_cast %563 : vector<1x32x64xbf16> to vector<32x64xbf16>
    %565 = arith.truncf %562 : vector<16x32xf32> to vector<16x32xbf16>
    %cst_179 = arith.constant dense<0.000000e+00> : vector<16x64xf32>
    %566 = tpu.matmul %565, %564, %cst_179 {dimension_numbers = #tpu.dot_dimension_numbers<[1], [0], [0], [1], [0, 0, 1, 1], [], []>} : vector<16x32xbf16>, vector<32x64xbf16>, vector<16x64xf32> -> vector<16x64xf32>
    %c1_180 = arith.constant 1 : index
    %c0_181 = arith.constant 0 : index
    %c0_182 = arith.constant 0 : index
    %567 = vector.load %arg15[%c1_180, %c0_181, %c0_182] : memref<2x1x64xf32, #tpu.memory_space<vmem>>, vector<1x1x64xf32>
    %568 = vector.shape_cast %567 : vector<1x1x64xf32> to vector<1x64xf32>
    %569 = vector.broadcast %568 : vector<1x64xf32> to vector<16x64xf32>
    %570 = arith.addf %566, %569 : vector<16x64xf32>
    %cst_183 = arith.constant 5.000000e-01 : f32
    %571 = vector.broadcast %cst_183 : f32 to vector<16x64xf32>
    %572 = arith.mulf %571, %570 : vector<16x64xf32>
    %cst_184 = arith.constant 4.471500e-02 : f32
    %573 = vector.broadcast %cst_184 : f32 to vector<16x64xf32>
    %574 = arith.mulf %573, %570 : vector<16x64xf32>
    %575 = arith.mulf %574, %570 : vector<16x64xf32>
    %576 = arith.mulf %575, %570 : vector<16x64xf32>
    %577 = arith.addf %570, %576 : vector<16x64xf32>
    %cst_185 = arith.constant 0.797884583 : f32
    %578 = vector.broadcast %cst_185 : f32 to vector<16x64xf32>
    %579 = arith.mulf %578, %577 : vector<16x64xf32>
    %580 = math.tanh %579 : vector<16x64xf32>
    %cst_186 = arith.constant 1.000000e+00 : f32
    %581 = vector.broadcast %cst_186 : f32 to vector<16x64xf32>
    %582 = arith.addf %581, %580 : vector<16x64xf32>
    %583 = arith.mulf %572, %582 : vector<16x64xf32>
    %c1_187 = arith.constant 1 : index
    %c0_188 = arith.constant 0 : index
    %c0_189 = arith.constant 0 : index
    %584 = vector.load %arg16[%c1_187, %c0_188, %c0_189] : memref<2x64x32xbf16, #tpu.memory_space<vmem>>, vector<1x64x32xbf16>
    %585 = vector.shape_cast %584 : vector<1x64x32xbf16> to vector<64x32xbf16>
    %586 = arith.truncf %583 : vector<16x64xf32> to vector<16x64xbf16>
    %cst_190 = arith.constant dense<0.000000e+00> : vector<16x32xf32>
    %587 = tpu.matmul %586, %585, %cst_190 {dimension_numbers = #tpu.dot_dimension_numbers<[1], [0], [0], [1], [0, 0, 1, 1], [], []>} : vector<16x64xbf16>, vector<64x32xbf16>, vector<16x32xf32> -> vector<16x32xf32>
    %c1_191 = arith.constant 1 : index
    %c0_192 = arith.constant 0 : index
    %c0_193 = arith.constant 0 : index
    %588 = vector.load %arg17[%c1_191, %c0_192, %c0_193] : memref<2x1x32xf32, #tpu.memory_space<vmem>>, vector<1x1x32xf32>
    %589 = vector.shape_cast %588 : vector<1x1x32xf32> to vector<1x32xf32>
    %590 = vector.broadcast %589 : vector<1x32xf32> to vector<16x32xf32>
    %591 = arith.addf %587, %590 : vector<16x32xf32>
    %592 = arith.addf %562, %591 : vector<16x32xf32>
    %c1_194 = arith.constant 1 : index
    %c0_195 = arith.constant 0 : index
    %c0_196 = arith.constant 0 : index
    %593 = vector.load %arg18[%c1_194, %c0_195, %c0_196] : memref<2x1x32xf32, #tpu.memory_space<vmem>>, vector<1x1x32xf32>
    %594 = vector.shape_cast %593 : vector<1x1x32xf32> to vector<1x32xf32>
    %c1_197 = arith.constant 1 : index
    %c0_198 = arith.constant 0 : index
    %c0_199 = arith.constant 0 : index
    %595 = vector.load %arg19[%c1_197, %c0_198, %c0_199] : memref<2x1x32xf32, #tpu.memory_space<vmem>>, vector<1x1x32xf32>
    %596 = vector.shape_cast %595 : vector<1x1x32xf32> to vector<1x32xf32>
    %cst_200 = arith.constant dense<0.000000e+00> : vector<16xf32>
    %597 = vector.multi_reduction <add>, %592, %cst_200 [1] : vector<16x32xf32> to vector<16xf32>
    %598 = vector.shape_cast %597 : vector<16xf32> to vector<16x1xf32>
    %cst_201 = arith.constant 3.200000e+01 : f32
    %599 = vector.broadcast %cst_201 : f32 to vector<16x1xf32>
    %600 = arith.divf %598, %599 : vector<16x1xf32>
    %601 = vector.broadcast %600 : vector<16x1xf32> to vector<16x32xf32>
    %602 = arith.subf %592, %601 : vector<16x32xf32>
    %603 = arith.mulf %602, %602 : vector<16x32xf32>
    %cst_202 = arith.constant dense<0.000000e+00> : vector<16xf32>
    %604 = vector.multi_reduction <add>, %603, %cst_202 [1] : vector<16x32xf32> to vector<16xf32>
    %605 = vector.shape_cast %604 : vector<16xf32> to vector<16x1xf32>
    %cst_203 = arith.constant 3.200000e+01 : f32
    %606 = vector.broadcast %cst_203 : f32 to vector<16x1xf32>
    %607 = arith.divf %605, %606 : vector<16x1xf32>
    %cst_204 = arith.constant 9.99999996E-13 : f32
    %608 = vector.broadcast %cst_204 : f32 to vector<16x1xf32>
    %609 = arith.addf %607, %608 : vector<16x1xf32>
    %610 = math.rsqrt %609 : vector<16x1xf32>
    %611 = vector.broadcast %610 : vector<16x1xf32> to vector<16x32xf32>
    %612 = arith.mulf %602, %611 : vector<16x32xf32>
    %613 = vector.broadcast %594 : vector<1x32xf32> to vector<16x32xf32>
    %614 = arith.mulf %612, %613 : vector<16x32xf32>
    %615 = vector.broadcast %596 : vector<1x32xf32> to vector<16x32xf32>
    %616 = arith.addf %614, %615 : vector<16x32xf32>
    %c0_205 = arith.constant 0 : index
    %c0_206 = arith.constant 0 : index
    %617 = vector.load %arg3[%c0_205, %c0_206] : memref<2x16xf32, #tpu.memory_space<vmem>>, vector<2x16xf32>
    %cst_207 = arith.constant dense<0.000000e+00> : vector<2x32xf32>
    %618 = tpu.matmul %617, %616, %cst_207 {dimension_numbers = #tpu.dot_dimension_numbers<[1], [0], [0], [1], [0, 0, 1, 1], [], []>} : vector<2x16xf32>, vector<16x32xf32>, vector<2x32xf32> -> vector<2x32xf32>
    %cst_208 = arith.constant dense<0.000000e+00> : vector<2xf32>
    %619 = vector.multi_reduction <add>, %617, %cst_208 [1] : vector<2x16xf32> to vector<2xf32>
    %620 = vector.shape_cast %619 : vector<2xf32> to vector<2x1xf32>
    %cst_209 = arith.constant 1.000000e+00 : f32
    %621 = vector.broadcast %cst_209 : f32 to vector<2x1xf32>
    %622 = arith.maximumf %620, %621 : vector<2x1xf32>
    %623 = tpu.reciprocal %622 {approx = true} : vector<2x1xf32> -> vector<2x1xf32>
    %624 = vector.broadcast %623 : vector<2x1xf32> to vector<2x32xf32>
    %625 = arith.mulf %618, %624 : vector<2x32xf32>
    %c0_210 = arith.constant 0 : index
    %c0_211 = arith.constant 0 : index
    %626 = vector.load %arg20[%c0_210, %c0_211] : memref<32x32xbf16, #tpu.memory_space<vmem>>, vector<32x32xbf16>
    %627 = arith.truncf %625 : vector<2x32xf32> to vector<2x32xbf16>
    %cst_212 = arith.constant dense<0.000000e+00> : vector<2x32xf32>
    %628 = tpu.matmul %627, %626, %cst_212 {dimension_numbers = #tpu.dot_dimension_numbers<[1], [0], [0], [1], [0, 0, 1, 1], [], []>} : vector<2x32xbf16>, vector<32x32xbf16>, vector<2x32xf32> -> vector<2x32xf32>
    %c0_213 = arith.constant 0 : index
    %c0_214 = arith.constant 0 : index
    %629 = vector.load %arg21[%c0_213, %c0_214] : memref<1x32xf32, #tpu.memory_space<vmem>>, vector<1x32xf32>
    %630 = vector.broadcast %629 : vector<1x32xf32> to vector<2x32xf32>
    %631 = arith.addf %628, %630 : vector<2x32xf32>
    %cst_215 = arith.constant 0.000000e+00 : f32
    %632 = vector.broadcast %cst_215 : f32 to vector<2x32xf32>
    %633 = arith.maximumf %631, %632 : vector<2x32xf32>
    %c0_216 = arith.constant 0 : index
    %c0_217 = arith.constant 0 : index
    %634 = vector.load %arg22[%c0_216, %c0_217] : memref<32x32xbf16, #tpu.memory_space<vmem>>, vector<32x32xbf16>
    %635 = arith.truncf %633 : vector<2x32xf32> to vector<2x32xbf16>
    %cst_218 = arith.constant dense<0.000000e+00> : vector<2x32xf32>
    %636 = tpu.matmul %635, %634, %cst_218 {dimension_numbers = #tpu.dot_dimension_numbers<[1], [0], [0], [1], [0, 0, 1, 1], [], []>} : vector<2x32xbf16>, vector<32x32xbf16>, vector<2x32xf32> -> vector<2x32xf32>
    %c0_219 = arith.constant 0 : index
    %c0_220 = arith.constant 0 : index
    %637 = vector.load %arg23[%c0_219, %c0_220] : memref<1x32xf32, #tpu.memory_space<vmem>>, vector<1x32xf32>
    %638 = vector.broadcast %637 : vector<1x32xf32> to vector<2x32xf32>
    %639 = arith.addf %636, %638 : vector<2x32xf32>
    %cst_221 = arith.constant 0.000000e+00 : f32
    %640 = vector.broadcast %cst_221 : f32 to vector<2x32xf32>
    %641 = arith.maximumf %639, %640 : vector<2x32xf32>
    %c0_222 = arith.constant 0 : index
    %c0_223 = arith.constant 0 : index
    %642 = vector.load %arg24[%c0_222, %c0_223] : memref<32x4xbf16, #tpu.memory_space<vmem>>, vector<32x4xbf16>
    %643 = arith.truncf %641 : vector<2x32xf32> to vector<2x32xbf16>
    %cst_224 = arith.constant dense<0.000000e+00> : vector<2x4xf32>
    %644 = tpu.matmul %643, %642, %cst_224 {dimension_numbers = #tpu.dot_dimension_numbers<[1], [0], [0], [1], [0, 0, 1, 1], [], []>} : vector<2x32xbf16>, vector<32x4xbf16>, vector<2x4xf32> -> vector<2x4xf32>
    %c0_225 = arith.constant 0 : index
    %c0_226 = arith.constant 0 : index
    %645 = vector.load %arg25[%c0_225, %c0_226] : memref<1x4xf32, #tpu.memory_space<vmem>>, vector<1x4xf32>
    %646 = vector.broadcast %645 : vector<1x4xf32> to vector<2x4xf32>
    %647 = arith.addf %644, %646 : vector<2x4xf32>
    %c0_227 = arith.constant 0 : index
    %c0_228 = arith.constant 0 : index
    %648 = vector.load %arg26[%c0_227, %c0_228] : memref<2x4xf32, #tpu.memory_space<vmem>>, vector<2x4xf32>
    tpu.vector_store %arg26[%c0_227, %c0_228], %647 {strides = array<i32>} : memref<2x4xf32, #tpu.memory_space<vmem>>, vector<2x4xf32>,
    return
  }
  func.func @transform_0(%arg0: i32) -> (i32, i32) {
    %c0_i32 = arith.constant 0 : i32
    %c0_i32_0 = arith.constant 0 : i32
    %c0_i32_1 = arith.constant 0 : i32
    return %c0_i32, %c0_i32_0 : i32, i32
  }
  func.func @transform_1(%arg0: i32) -> (i32, i32) {
    %c0_i32 = arith.constant 0 : i32
    %c0_i32_0 = arith.constant 0 : i32
    %c0_i32_1 = arith.constant 0 : i32
    return %c0_i32, %c0_i32_0 : i32, i32
  }
  func.func @transform_2(%arg0: i32) -> (i32, i32) {
    %c0_i32 = arith.constant 0 : i32
    %c0_i32_0 = arith.constant 0 : i32
    %c0_i32_1 = arith.constant 0 : i32
    return %c0_i32, %c0_i32_0 : i32, i32
  }
  func.func @transform_3(%arg0: i32) -> (i32, i32) {
    %c0_i32 = arith.constant 0 : i32
    %c0_i32_0 = arith.constant 0 : i32
    %c0_i32_1 = arith.constant 0 : i32
    return %c0_i32, %c0_i32_0 : i32, i32
  }
  func.func @transform_4(%arg0: i32) -> (i32, i32) {
    %c0_i32 = arith.constant 0 : i32
    %c0_i32_0 = arith.constant 0 : i32
    %c0_i32_1 = arith.constant 0 : i32
    return %c0_i32, %c0_i32_0 : i32, i32
  }
  func.func @transform_5(%arg0: i32) -> (i32, i32) {
    %c0_i32 = arith.constant 0 : i32
    %c0_i32_0 = arith.constant 0 : i32
    %c0_i32_1 = arith.constant 0 : i32
    return %c0_i32, %c0_i32_0 : i32, i32
  }
  func.func @transform_6(%arg0: i32) -> (i32, i32) {
    %c0_i32 = arith.constant 0 : i32
    %c0_i32_0 = arith.constant 0 : i32
    %c0_i32_1 = arith.constant 0 : i32
    return %c0_i32, %c0_i32_0 : i32, i32
  }
  func.func @transform_7(%arg0: i32) -> (i32, i32, i32) {
    %c0_i32 = arith.constant 0 : i32
    %c0_i32_0 = arith.constant 0 : i32
    %c0_i32_1 = arith.constant 0 : i32
    %c0_i32_2 = arith.constant 0 : i32
    return %c0_i32, %c0_i32_0, %c0_i32_1 : i32, i32, i32
  }
  func.func @transform_8(%arg0: i32) -> (i32, i32, i32) {
    %c0_i32 = arith.constant 0 : i32
    %c0_i32_0 = arith.constant 0 : i32
    %c0_i32_1 = arith.constant 0 : i32
    %c0_i32_2 = arith.constant 0 : i32
    return %c0_i32, %c0_i32_0, %c0_i32_1 : i32, i32, i32
  }
  func.func @transform_9(%arg0: i32) -> (i32, i32, i32) {
    %c0_i32 = arith.constant 0 : i32
    %c0_i32_0 = arith.constant 0 : i32
    %c0_i32_1 = arith.constant 0 : i32
    %c0_i32_2 = arith.constant 0 : i32
    return %c0_i32, %c0_i32_0, %c0_i32_1 : i32, i32, i32
  }
  func.func @transform_10(%arg0: i32) -> (i32, i32, i32) {
    %c0_i32 = arith.constant 0 : i32
    %c0_i32_0 = arith.constant 0 : i32
    %c0_i32_1 = arith.constant 0 : i32
    %c0_i32_2 = arith.constant 0 : i32
    return %c0_i32, %c0_i32_0, %c0_i32_1 : i32, i32, i32
  }
  func.func @transform_11(%arg0: i32) -> (i32, i32, i32) {
    %c0_i32 = arith.constant 0 : i32
    %c0_i32_0 = arith.constant 0 : i32
    %c0_i32_1 = arith.constant 0 : i32
    %c0_i32_2 = arith.constant 0 : i32
    return %c0_i32, %c0_i32_0, %c0_i32_1 : i32, i32, i32
  }
  func.func @transform_12(%arg0: i32) -> (i32, i32, i32) {
    %c0_i32 = arith.constant 0 : i32
    %c0_i32_0 = arith.constant 0 : i32
    %c0_i32_1 = arith.constant 0 : i32
    %c0_i32_2 = arith.constant 0 : i32
    return %c0_i32, %c0_i32_0, %c0_i32_1 : i32, i32, i32
  }
  func.func @transform_13(%arg0: i32) -> (i32, i32, i32) {
    %c0_i32 = arith.constant 0 : i32
    %c0_i32_0 = arith.constant 0 : i32
    %c0_i32_1 = arith.constant 0 : i32
    %c0_i32_2 = arith.constant 0 : i32
    return %c0_i32, %c0_i32_0, %c0_i32_1 : i32, i32, i32
  }
  func.func @transform_14(%arg0: i32) -> (i32, i32, i32) {
    %c0_i32 = arith.constant 0 : i32
    %c0_i32_0 = arith.constant 0 : i32
    %c0_i32_1 = arith.constant 0 : i32
    %c0_i32_2 = arith.constant 0 : i32
    return %c0_i32, %c0_i32_0, %c0_i32_1 : i32, i32, i32
  }
  func.func @transform_15(%arg0: i32) -> (i32, i32, i32) {
    %c0_i32 = arith.constant 0 : i32
    %c0_i32_0 = arith.constant 0 : i32
    %c0_i32_1 = arith.constant 0 : i32
    %c0_i32_2 = arith.constant 0 : i32
    return %c0_i32, %c0_i32_0, %c0_i32_1 : i32, i32, i32
  }
  func.func @transform_16(%arg0: i32) -> (i32, i32, i32) {
    %c0_i32 = arith.constant 0 : i32
    %c0_i32_0 = arith.constant 0 : i32
    %c0_i32_1 = arith.constant 0 : i32
    %c0_i32_2 = arith.constant 0 : i32
    return %c0_i32, %c0_i32_0, %c0_i32_1 : i32, i32, i32
  }
  func.func @transform_17(%arg0: i32) -> (i32, i32, i32) {
    %c0_i32 = arith.constant 0 : i32
    %c0_i32_0 = arith.constant 0 : i32
    %c0_i32_1 = arith.constant 0 : i32
    %c0_i32_2 = arith.constant 0 : i32
    return %c0_i32, %c0_i32_0, %c0_i32_1 : i32, i32, i32
  }
  func.func @transform_18(%arg0: i32) -> (i32, i32, i32) {
    %c0_i32 = arith.constant 0 : i32
    %c0_i32_0 = arith.constant 0 : i32
    %c0_i32_1 = arith.constant 0 : i32
    %c0_i32_2 = arith.constant 0 : i32
    return %c0_i32, %c0_i32_0, %c0_i32_1 : i32, i32, i32
  }
  func.func @transform_19(%arg0: i32) -> (i32, i32) {
    %c0_i32 = arith.constant 0 : i32
    %c0_i32_0 = arith.constant 0 : i32
    %c0_i32_1 = arith.constant 0 : i32
    return %c0_i32, %c0_i32_0 : i32, i32
  }
  func.func @transform_20(%arg0: i32) -> (i32, i32) {
    %c0_i32 = arith.constant 0 : i32
    %c0_i32_0 = arith.constant 0 : i32
    %c0_i32_1 = arith.constant 0 : i32
    return %c0_i32, %c0_i32_0 : i32, i32
  }
  func.func @transform_21(%arg0: i32) -> (i32, i32) {
    %c0_i32 = arith.constant 0 : i32
    %c0_i32_0 = arith.constant 0 : i32
    %c0_i32_1 = arith.constant 0 : i32
    return %c0_i32, %c0_i32_0 : i32, i32
  }
  func.func @transform_22(%arg0: i32) -> (i32, i32) {
    %c0_i32 = arith.constant 0 : i32
    %c0_i32_0 = arith.constant 0 : i32
    %c0_i32_1 = arith.constant 0 : i32
    return %c0_i32, %c0_i32_0 : i32, i32
  }
  func.func @transform_23(%arg0: i32) -> (i32, i32) {
    %c0_i32 = arith.constant 0 : i32
    %c0_i32_0 = arith.constant 0 : i32
    %c0_i32_1 = arith.constant 0 : i32
    return %c0_i32, %c0_i32_0 : i32, i32
  }
  func.func @transform_24(%arg0: i32) -> (i32, i32) {
    %c0_i32 = arith.constant 0 : i32
    %c0_i32_0 = arith.constant 0 : i32
    %c0_i32_1 = arith.constant 0 : i32
    return %c0_i32, %c0_i32_0 : i32, i32
  }
  func.func @transform_25(%arg0: i32) -> (i32, i32) {
    %c0_i32 = arith.constant 0 : i32
    %c0_i32_0 = arith.constant 0 : i32
    %c0_i32_1 = arith.constant 0 : i32
    return %c0_i32, %c0_i32_0 : i32, i32
  }
}

</mosaic_0001>

<llo_original>
// kernel: bert_classifier_forward.1
$region0: #{bert_classifier_forward.1}
  #allocation0 [shape = 'u32[]', space=smem, size = 0x4, offset = 0x4, fixed_abs, tag = 'smem constant byte address 0x4 - core index']
  #allocation1 [shape = 'u32[144,128]{1,0:T(1,128)}', space=vmem, size = 0x12000, scoped, tag = 'internal scratch']
  %s0 = inlined_call_operand.vmem [shape: s32[16,1], index: 0, kind: input, shape index: {}]
  %s1 = inlined_call_operand.vmem [shape: f32[2,8], index: 1, kind: input, shape index: {}]
  %s2 = inlined_call_operand.vmem [shape: f32[2,16], index: 2, kind: input, shape index: {}]
  %s3 = inlined_call_operand.vmem [shape: f32[16,32], index: 3, kind: input, shape index: {}]
  %s4 = inlined_call_operand.vmem [shape: f32[128,32], index: 4, kind: input, shape index: {}]
  %s5 = inlined_call_operand.vmem [shape: f32[1,32], index: 5, kind: input, shape index: {}]
  %s6 = inlined_call_operand.vmem [shape: f32[1,32], index: 6, kind: input, shape index: {}]
  %s7 = inlined_call_operand.vmem [shape: bf16[2,32,96], index: 7, kind: input, shape index: {}]
  %s8 = inlined_call_operand.vmem [shape: f32[2,1,96], index: 8, kind: input, shape index: {}]
  %s9 = inlined_call_operand.vmem [shape: bf16[2,32,32], index: 9, kind: input, shape index: {}]
  %s10 = inlined_call_operand.vmem [shape: f32[2,1,32], index: 10, kind: input, shape index: {}]
  %s11 = inlined_call_operand.vmem [shape: f32[2,1,32], index: 11, kind: input, shape index: {}]
  %s12 = inlined_call_operand.vmem [shape: f32[2,1,32], index: 12, kind: input, shape index: {}]
  %s13 = inlined_call_operand.vmem [shape: bf16[2,32,64], index: 13, kind: input, shape index: {}]
  %s14 = inlined_call_operand.vmem [shape: f32[2,1,64], index: 14, kind: input, shape index: {}]
  %s15 = inlined_call_operand.vmem [shape: bf16[2,64,32], index: 15, kind: input, shape index: {}]
  %s16 = inlined_call_operand.vmem [shape: f32[2,1,32], index: 16, kind: input, shape index: {}]
  %s17 = inlined_call_operand.vmem [shape: f32[2,1,32], index: 17, kind: input, shape index: {}]
  %s18 = inlined_call_operand.vmem [shape: f32[2,1,32], index: 18, kind: input, shape index: {}]
  %s19 = inlined_call_operand.vmem [shape: bf16[32,32], index: 19, kind: input, shape index: {}]
  %s20 = inlined_call_operand.vmem [shape: f32[1,32], index: 20, kind: input, shape index: {}]
  %s21 = inlined_call_operand.vmem [shape: bf16[32,32], index: 21, kind: input, shape index: {}]
  %s22 = inlined_call_operand.vmem [shape: f32[1,32], index: 22, kind: input, shape index: {}]
  %s23 = inlined_call_operand.vmem [shape: bf16[32,4], index: 23, kind: input, shape index: {}]
  %s24 = inlined_call_operand.vmem [shape: f32[1,4], index: 24, kind: input, shape index: {}]
  %s25 = inlined_call_operand.hbm [shape: f32[2,4], index: 25, kind: output, shape index: {}]
  %s26 = sld [smem:[#allocation0]]
  $region110: #{bert_classifier_forward.1} parent=0
    _
  %s28 = ssub.s32 1, %s26
  %s29 = scalar_select 0, %s28, %s26
  $region1: #{bert_classifier_forward.1} parent=0
    #allocation2 [shape = 'u8[1024]{0}', space=vmem, size = 0x400, scoped, tag = 'output window, operand 0, single buffered']
    #allocation3 [shape = 's32[1]{0}', space=sflag, size = 0x4, scoped, tag = 'scoped memory for bert_classifier_forward.1']
    %30 = vsyncpa [#allocation3], 0
    // Predicated region
    $region2: #{bert_classifier_forward.1} parent=1 // pred_check
      _
    $region3: #{bert_classifier_forward.1} parent=1 // pred_check_branch
      %32 = sbr.rel (0) target = $region5
    $region4: #{bert_classifier_forward.1} parent=1 // pred_region
      _
    $region5: #{bert_classifier_forward.1} parent=1 // pred_fallthru
      _
    // Predicated region
    $region6: #{bert_classifier_forward.1} parent=1 // pred_check
      _
    $region7: #{bert_classifier_forward.1} parent=1 // pred_check_branch
      %34 = sbr.rel (0) target = $region9
    $region8: #{bert_classifier_forward.1} parent=1 // pred_region
      _
    $region9: #{bert_classifier_forward.1} parent=1 // pred_fallthru
      _
    // Predicated region
    $region10: #{bert_classifier_forward.1} parent=1 // pred_check
      _
    $region11: #{bert_classifier_forward.1} parent=1 // pred_check_branch
      %36 = sbr.rel (0) target = $region13
    $region12: #{bert_classifier_forward.1} parent=1 // pred_region
      _
    $region13: #{bert_classifier_forward.1} parent=1 // pred_fallthru
      _
    // Predicated region
    $region14: #{bert_classifier_forward.1} parent=1 // pred_check
      _
    $region15: #{bert_classifier_forward.1} parent=1 // pred_check_branch
      %38 = sbr.rel (0) target = $region17
    $region16: #{bert_classifier_forward.1} parent=1 // pred_region
      _
    $region17: #{bert_classifier_forward.1} parent=1 // pred_fallthru
      _
    // Predicated region
    $region18: #{bert_classifier_forward.1} parent=1 // pred_check
      _
    $region19: #{bert_classifier_forward.1} parent=1 // pred_check_branch
      %40 = sbr.rel (0) target = $region21
    $region20: #{bert_classifier_forward.1} parent=1 // pred_region
      _
    $region21: #{bert_classifier_forward.1} parent=1 // pred_fallthru
      _
    // Predicated region
    $region22: #{bert_classifier_forward.1} parent=1 // pred_check
      _
    $region23: #{bert_classifier_forward.1} parent=1 // pred_check_branch
      %42 = sbr.rel (0) target = $region25
    $region24: #{bert_classifier_forward.1} parent=1 // pred_region
      _
    $region25: #{bert_classifier_forward.1} parent=1 // pred_fallthru
      _
    // Predicated region
    $region26: #{bert_classifier_forward.1} parent=1 // pred_check
      _
    $region27: #{bert_classifier_forward.1} parent=1 // pred_check_branch
      %44 = sbr.rel (0) target = $region29
    $region28: #{bert_classifier_forward.1} parent=1 // pred_region
      _
    $region29: #{bert_classifier_forward.1} parent=1 // pred_fallthru
      _
    // Predicated region
    $region30: #{bert_classifier_forward.1} parent=1 // pred_check
      _
    $region31: #{bert_classifier_forward.1} parent=1 // pred_check_branch
      %46 = sbr.rel (0) target = $region33
    $region32: #{bert_classifier_forward.1} parent=1 // pred_region
      _
    $region33: #{bert_classifier_forward.1} parent=1 // pred_fallthru
      _
    // Predicated region
    $region34: #{bert_classifier_forward.1} parent=1 // pred_check
      _
    $region35: #{bert_classifier_forward.1} parent=1 // pred_check_branch
      %48 = sbr.rel (0) target = $region37
    $region36: #{bert_classifier_forward.1} parent=1 // pred_region
      _
    $region37: #{bert_classifier_forward.1} parent=1 // pred_fallthru
      _
    // Predicated region
    $region38: #{bert_classifier_forward.1} parent=1 // pred_check
      _
    $region39: #{bert_classifier_forward.1} parent=1 // pred_check_branch
      %50 = sbr.rel (0) target = $region41
    $region40: #{bert_classifier_forward.1} parent=1 // pred_region
      _
    $region41: #{bert_classifier_forward.1} parent=1 // pred_fallthru
      _
    // Predicated region
    $region42: #{bert_classifier_forward.1} parent=1 // pred_check
      _
    $region43: #{bert_classifier_forward.1} parent=1 // pred_check_branch
      %52 = sbr.rel (0) target = $region45
    $region44: #{bert_classifier_forward.1} parent=1 // pred_region
      _
    $region45: #{bert_classifier_forward.1} parent=1 // pred_fallthru
      _
    // Predicated region
    $region46: #{bert_classifier_forward.1} parent=1 // pred_check
      _
    $region47: #{bert_classifier_forward.1} parent=1 // pred_check_branch
      %54 = sbr.rel (0) target = $region49
    $region48: #{bert_classifier_forward.1} parent=1 // pred_region
      _
    $region49: #{bert_classifier_forward.1} parent=1 // pred_fallthru
      _
    // Predicated region
    $region50: #{bert_classifier_forward.1} parent=1 // pred_check
      _
    $region51: #{bert_classifier_forward.1} parent=1 // pred_check_branch
      %56 = sbr.rel (0) target = $region53
    $region52: #{bert_classifier_forward.1} parent=1 // pred_region
      _
    $region53: #{bert_classifier_forward.1} parent=1 // pred_fallthru
      _
    // Predicated region
    $region54: #{bert_classifier_forward.1} parent=1 // pred_check
      _
    $region55: #{bert_classifier_forward.1} parent=1 // pred_check_branch
      %58 = sbr.rel (0) target = $region57
    $region56: #{bert_classifier_forward.1} parent=1 // pred_region
      _
    $region57: #{bert_classifier_forward.1} parent=1 // pred_fallthru
      _
    // Predicated region
    $region58: #{bert_classifier_forward.1} parent=1 // pred_check
      _
    $region59: #{bert_classifier_forward.1} parent=1 // pred_check_branch
      %60 = sbr.rel (0) target = $region61
    $region60: #{bert_classifier_forward.1} parent=1 // pred_region
      _
    $region61: #{bert_classifier_forward.1} parent=1 // pred_fallthru
      _
    // Predicated region
    $region62: #{bert_classifier_forward.1} parent=1 // pred_check
      _
    $region63: #{bert_classifier_forward.1} parent=1 // pred_check_branch
      %62 = sbr.rel (0) target = $region65
    $region64: #{bert_classifier_forward.1} parent=1 // pred_region
      _
    $region65: #{bert_classifier_forward.1} parent=1 // pred_fallthru
      _
    // Predicated region
    $region66: #{bert_classifier_forward.1} parent=1 // pred_check
      _
    $region67: #{bert_classifier_forward.1} parent=1 // pred_check_branch
      %64 = sbr.rel (0) target = $region69
    $region68: #{bert_classifier_forward.1} parent=1 // pred_region
      _
    $region69: #{bert_classifier_forward.1} parent=1 // pred_fallthru
      _
    // Predicated region
    $region70: #{bert_classifier_forward.1} parent=1 // pred_check
      _
    $region71: #{bert_classifier_forward.1} parent=1 // pred_check_branch
      %66 = sbr.rel (0) target = $region73
    $region72: #{bert_classifier_forward.1} parent=1 // pred_region
      _
    $region73: #{bert_classifier_forward.1} parent=1 // pred_fallthru
      _
    // Predicated region
    $region74: #{bert_classifier_forward.1} parent=1 // pred_check
      _
    $region75: #{bert_classifier_forward.1} parent=1 // pred_check_branch
      %68 = sbr.rel (0) target = $region77
    $region76: #{bert_classifier_forward.1} parent=1 // pred_region
      _
    $region77: #{bert_classifier_forward.1} parent=1 // pred_fallthru
      _
    // Predicated region
    $region78: #{bert_classifier_forward.1} parent=1 // pred_check
      _
    $region79: #{bert_classifier_forward.1} parent=1 // pred_check_branch
      %70 = sbr.rel (0) target = $region81
    $region80: #{bert_classifier_forward.1} parent=1 // pred_region
      _
    $region81: #{bert_classifier_forward.1} parent=1 // pred_fallthru
      _
    // Predicated region
    $region82: #{bert_classifier_forward.1} parent=1 // pred_check
      _
    $region83: #{bert_classifier_forward.1} parent=1 // pred_check_branch
      %72 = sbr.rel (0) target = $region85
    $region84: #{bert_classifier_forward.1} parent=1 // pred_region
      _
    $region85: #{bert_classifier_forward.1} parent=1 // pred_fallthru
      _
    // Predicated region
    $region86: #{bert_classifier_forward.1} parent=1 // pred_check
      _
    $region87: #{bert_classifier_forward.1} parent=1 // pred_check_branch
      %74 = sbr.rel (0) target = $region89
    $region88: #{bert_classifier_forward.1} parent=1 // pred_region
      _
    $region89: #{bert_classifier_forward.1} parent=1 // pred_fallthru
      _
    // Predicated region
    $region90: #{bert_classifier_forward.1} parent=1 // pred_check
      _
    $region91: #{bert_classifier_forward.1} parent=1 // pred_check_branch
      %76 = sbr.rel (0) target = $region93
    $region92: #{bert_classifier_forward.1} parent=1 // pred_region
      _
    $region93: #{bert_classifier_forward.1} parent=1 // pred_fallthru
      _
    // Predicated region
    $region94: #{bert_classifier_forward.1} parent=1 // pred_check
      _
    $region95: #{bert_classifier_forward.1} parent=1 // pred_check_branch
      %78 = sbr.rel (0) target = $region97
    $region96: #{bert_classifier_forward.1} parent=1 // pred_region
      _
    $region97: #{bert_classifier_forward.1} parent=1 // pred_fallthru
      _
    // Predicated region
    $region98: #{bert_classifier_forward.1} parent=1 // pred_check
      _
    $region99: #{bert_classifier_forward.1} parent=1 // pred_check_branch
      %80 = sbr.rel (0) target = $region101
    $region100: #{bert_classifier_forward.1} parent=1 // pred_region
      _
    $region101: #{bert_classifier_forward.1} parent=1 // pred_fallthru
      _
    %v82 = vld [vmem:[%s0] sm:$0xff]
    %v83 = vld [vmem:[%s0 + $0x8] sm:$0xff]
    %v84 = vlaneseq
    %v85 = vand.u32 %v84, 127
    %86 = vset.pattern.permute.xlu0 0
    %87 = vperm.xlu0 %86, %v82
    %v88 = vpop.permute.xlu0 %87
    %89 = vset.pattern.permute.xlu0 0
    %90 = vperm.xlu0 %89, %v83
    %v91 = vpop.permute.xlu0 %90
    %vm92 = vcmp.eq.s32.totalorder %v85, %v88
    %vm93 = vcmp.eq.s32.totalorder %v85, %v91
    %v94 = vsel %vm92, 1, 0
    %v95 = vsel %vm93, 1, 0
    %v96 = vcvt.s32.f32 %v94
    %v97 = vcvt.s32.f32 %v95
    %v98 = vld [vmem:[%s4] sm:$0xff]
    %v99 = vld [vmem:[%s4 + $0x8] sm:$0xff]
    %v100 = vld [vmem:[%s4 + $0x10] sm:$0xff]
    %v101 = vld [vmem:[%s4 + $0x18] sm:$0xff]
    %v102 = vld [vmem:[%s4 + $0x20] sm:$0xff]
    %v103 = vld [vmem:[%s4 + $0x28] sm:$0xff]
    %v104 = vld [vmem:[%s4 + $0x30] sm:$0xff]
    %v105 = vld [vmem:[%s4 + $0x38] sm:$0xff]
    %v106 = vld [vmem:[%s4 + $0x40] sm:$0xff]
    %v107 = vld [vmem:[%s4 + $0x48] sm:$0xff]
    %v108 = vld [vmem:[%s4 + $0x50] sm:$0xff]
    %v109 = vld [vmem:[%s4 + $0x58] sm:$0xff]
    %v110 = vld [vmem:[%s4 + $0x60] sm:$0xff]
    %v111 = vld [vmem:[%s4 + $0x68] sm:$0xff]
    %v112 = vld [vmem:[%s4 + $0x70] sm:$0xff]
    %v113 = vld [vmem:[%s4 + $0x78] sm:$0xff]
    %v114 = vld [vmem:[%s3] sm:$0xff]
    %v115 = vld [vmem:[%s3 + $0x8] sm:$0xff]
    %116 = vmatprep.subr.mxu0 0.0
    %117 = vmatpush1.msra.mxu0 %v113
    %118 = vmatprep.subr.mxu0 0.0
    %119 = vmatpush1.msra.mxu0 %v112
    %120 = vmatprep.subr.mxu0 0.0
    %121 = vmatpush1.msra.mxu0 %v111
    %122 = vmatprep.subr.mxu0 0.0
    %123 = vmatpush1.msra.mxu0 %v110
    %124 = vmatprep.subr.mxu0 0.0
    %125 = vmatpush1.msra.mxu0 %v109
    %126 = vmatprep.subr.mxu0 0.0
    %127 = vmatpush1.msra.mxu0 %v108
    %128 = vmatprep.subr.mxu0 0.0
    %129 = vmatpush1.msra.mxu0 %v107
    %130 = vmatprep.subr.mxu0 0.0
    %131 = vmatpush1.msra.mxu0 %v106
    %132 = vmatprep.subr.mxu0 0.0
    %133 = vmatpush1.msra.mxu0 %v105
    %134 = vmatprep.subr.mxu0 0.0
    %135 = vmatpush1.msra.mxu0 %v104
    %136 = vmatprep.subr.mxu0 0.0
    %137 = vmatpush1.msra.mxu0 %v103
    %138 = vmatprep.subr.mxu0 0.0
    %139 = vmatpush1.msra.mxu0 %v102
    %140 = vmatprep.subr.mxu0 0.0
    %141 = vmatpush1.msra.mxu0 %v101
    %142 = vmatprep.subr.mxu0 0.0
    %143 = vmatpush1.msra.mxu0 %v100
    %144 = vmatprep.subr.mxu0 0.0
    %145 = vmatpush1.msra.mxu0 %v99
    %146 = vmatprep.subr.mxu0 0.0
    %147 = vmatpush1.msra.mxu0 %v98
    %148 = vmatprep.subr.mxu0 0.0
    %149 = vmatpush2.msra.mxu0 0.0
    %150 = vmatprep.subr.mxu0 0.0
    %151 = vmatpush2.msra.mxu0 0.0
    %152 = vmatprep.subr.mxu0 0.0
    %153 = vmatpush2.msra.mxu0 0.0
    %154 = vmatprep.subr.mxu0 0.0
    %155 = vmatpush2.msra.mxu0 0.0
    %156 = vmatprep.subr.mxu0 0.0
    %157 = vmatpush2.msra.mxu0 0.0
    %158 = vmatprep.subr.mxu0 0.0
    %159 = vmatpush2.msra.mxu0 0.0
    %160 = vmatprep.subr.mxu0 0.0
    %161 = vmatpush2.msra.mxu0 0.0
    %162 = vmatprep.subr.mxu0 0.0
    %163 = vmatpush2.msra.mxu0 0.0
    %164 = vmatprep.subr.mxu0 0.0
    %165 = vmatpush2.msra.mxu0 0.0
    %166 = vmatprep.subr.mxu0 0.0
    %167 = vmatpush2.msra.mxu0 0.0
    %168 = vmatprep.subr.mxu0 0.0
    %169 = vmatpush2.msra.mxu0 0.0
    %170 = vmatprep.subr.mxu0 0.0
    %171 = vmatpush2.msra.mxu0 0.0
    %172 = vmatprep.subr.mxu0 0.0
    %173 = vmatpush2.msra.mxu0 0.0
    %174 = vmatprep.subr.mxu0 0.0
    %175 = vmatpush2.msra.mxu0 0.0
    %176 = vmatprep.subr.mxu0 0.0
    %177 = vmatpush2.msra.mxu0 0.0
    %178 = vmatprep.subr.mxu0 0.0
    %179 = vmatpush2.msra.mxu0 0.0
    %180 = vmatprep.mubr.f32.mxu0 0.0
    %181 = vmatmul.mubr.f32.gmra.mxu0 %v96
    %v182 = vpop.f32.mrf.mxu0
    %v183 = vadd.f32 %v114, %v182
    %v184 = vpop.f32.mrf.mxu0
    %185 = vmatprep.mubr.f32.mxu0 0.0
    %186 = vmatmul.mubr.f32.gmra.mxu0 %v97
    %v187 = vpop.f32.mrf.mxu0
    %v188 = vadd.f32 %v115, %v187
    %v189 = vpop.f32.mrf.mxu0
    %190 = vdwg.mxu0
    %v191 = vld [vmem:[%s5] sm:$0x1]
    %v192 = vld [vmem:[%s6] sm:$0x1]
    %vm193 = vcmask 261120
    %v194 = vsel %vm193, %v183, 0.0
    %195 = vadd.xlane.f32.xlu0 %v194
    %v196 = vpop.xlane.xlu0 %195
    %v197 = vsel %vm193, %v188, 0.0
    %198 = vadd.xlane.f32.xlu0 %v197
    %v199 = vpop.xlane.xlu0 %198
    %v200 = vrcp.pop 32.0
    %v201 = vmul.f32 %v196, %v200
    %v202 = vmul.f32 %v199, %v200
    %v203 = vsub.f32 %v183, %v201
    %v204 = vsub.f32 %v188, %v202
    %v205 = vmul.f32 %v203, %v203
    %v206 = vmul.f32 %v204, %v204
    %v207 = vsel %vm193, %v205, 0.0
    %208 = vadd.xlane.f32.xlu0 %v207
    %v209 = vpop.xlane.xlu0 %208
    %v210 = vsel %vm193, %v206, 0.0
    %211 = vadd.xlane.f32.xlu0 %v210
    %v212 = vpop.xlane.xlu0 %211
    %v213 = vmul.f32 %v209, %v200
    %v214 = vmul.f32 %v212, %v200
    %v215 = vadd.f32 %v213, 1e-12
    %v216 = vadd.f32 %v214, 1e-12
    %v217 = vrsqrt.pop %v215
    %v218 = vrsqrt.pop %v216
    %v219 = vmul.f32 %v203, %v217
    %v220 = vmul.f32 %v204, %v218
    %v222 = vlaneseq
    %v223 = vshrl.u32 %v222, 7
    %v224 = vsub.s32 0, %v223
    %v225 = vrot.slane %v191, %v224
    %v227 = vmul.f32 %v219, %v225
    %v228 = vmul.f32 %v220, %v225
    %v230 = vlaneseq
    %v231 = vshrl.u32 %v230, 7
    %v232 = vsub.s32 0, %v231
    %v233 = vrot.slane %v192, %v232
    %v235 = vadd.f32 %v227, %v233
    %v236 = vadd.f32 %v228, %v233
    %v237 = vld [vmem:[%s1] sm:$0x3]
    %v238 = vsub.f32 1.0, %v237
    %v239 = vmul.f32 %v238, -1e+09
    %v240 = vld [vmem:[%s7] sm:$0xf]
    %v241 = vld [vmem:[%s7 + $0x4] sm:$0xf]
    %v242 = vld [vmem:[%s7 + $0x8] sm:$0xf]
    %v243 = vld [vmem:[%s7 + $0xc] sm:$0xf]
    %v244 = vpack.c.bf16 %v236, %v235
    %v245 = vld [vmem:[%s8] sm:$0x1]
    %v247 = vlaneseq
    %v248 = vshrl.u32 %v247, 7
    %v249 = vsub.s32 0, %v248
    %v250 = vrot.slane %v245, %v249
    %v256 = vunpack.c.l.b16 %v240
    %v257 = vunpack.c.l.b16 %v241
    %v258 = vunpack.c.l.b16 %v242
    %v259 = vunpack.c.l.b16 %v243
    %v260 = vpack.c.b16 %v257, %v256
    %v261 = vpack.c.b16 %v259, %v258
    %v265 = vsel %vm193, %v244, 0
    %267 = vmatprep.subr.bf16.mxu0 0
    %268 = vmatpush1.bf16.msra.mxu0 0
    %269 = vmatprep.subr.bf16.mxu0 0
    %270 = vmatpush1.bf16.msra.mxu0 0
    %271 = vmatprep.subr.bf16.mxu0 0
    %272 = vmatpush1.bf16.msra.mxu0 0
    %273 = vmatprep.subr.bf16.mxu0 0
    %274 = vmatpush1.bf16.msra.mxu0 0
    %275 = vmatprep.subr.bf16.mxu0 0
    %276 = vmatpush1.bf16.msra.mxu0 0
    %277 = vmatprep.subr.bf16.mxu0 0
    %278 = vmatpush1.bf16.msra.mxu0 0
    %279 = vmatprep.subr.bf16.mxu0 0
    %280 = vmatpush1.bf16.msra.mxu0 %v261
    %281 = vmatprep.subr.bf16.mxu0 0
    %282 = vmatpush1.bf16.msra.mxu0 %v260
    %283 = vmatprep.subr.bf16.mxu0 0
    %284 = vmatpush2.bf16.msra.mxu0 0
    %285 = vmatprep.subr.bf16.mxu0 0
    %286 = vmatpush2.bf16.msra.mxu0 0
    %287 = vmatprep.subr.bf16.mxu0 0
    %288 = vmatpush2.bf16.msra.mxu0 0
    %289 = vmatprep.subr.bf16.mxu0 0
    %290 = vmatpush2.bf16.msra.mxu0 0
    %291 = vmatprep.subr.bf16.mxu0 0
    %292 = vmatpush2.bf16.msra.mxu0 0
    %293 = vmatprep.subr.bf16.mxu0 0
    %294 = vmatpush2.bf16.msra.mxu0 0
    %295 = vmatprep.subr.bf16.mxu0 0
    %296 = vmatpush2.bf16.msra.mxu0 0
    %297 = vmatprep.subr.bf16.mxu0 0
    %298 = vmatpush2.bf16.msra.mxu0 0
    %299 = vmatprep.mubr.bf16.mxu0 0
    %300 = vmatmul.mubr.bf16.gmra.mxu0 %v265
    %v301 = vpop.f32.mrf.mxu0
    %v302 = vadd.f32 %v250, %v301
    %v303 = vpop.f32.mrf.mxu0
    %v304 = vpop.f32.mrf.mxu0
    %v305 = vadd.f32 %v250, %v304
    %v306 = vpop.f32.mrf.mxu0
    %307 = vdwg.mxu0
    %v308 = vpack.c.bf16 %v302, %v302
    %310 = vrot.lane.b32.xlu0 %v308, 96
    %v311 = vpop.permute.xlu0 %310
    %vm312 = vcmask 64512
    %v314 = vsel %vm312, %v308, 0
    %v317 = vsel %vm312, %v311, 0
    %319 = vmatprep.subr.bf16.mxu0 0
    %320 = vmatpush1.bf16.xpose.msra.mxu0 0
    %321 = vmatprep.subr.bf16.mxu0 0
    %322 = vmatpush1.bf16.xpose.msra.mxu0 0
    %323 = vmatprep.subr.bf16.mxu0 0
    %324 = vmatpush1.bf16.xpose.msra.mxu0 0
    %325 = vmatprep.subr.bf16.mxu0 0
    %326 = vmatpush1.bf16.xpose.msra.mxu0 0
    %327 = vmatprep.subr.bf16.mxu0 0
    %328 = vmatpush1.bf16.xpose.msra.mxu0 0
    %329 = vmatprep.subr.bf16.mxu0 0
    %330 = vmatpush1.bf16.xpose.msra.mxu0 0
    %331 = vmatprep.subr.bf16.mxu0 0
    %332 = vmatpush1.bf16.xpose.msra.mxu0 0
    %333 = vmatprep.subr.bf16.mxu0 0
    %334 = vmatpush1.bf16.xpose.msra.mxu0 %v317
    %335 = vmatprep.subr.bf16.mxu0 0
    %336 = vmatpush2.bf16.xpose.msra.mxu0 0
    %337 = vmatprep.subr.bf16.mxu0 0
    %338 = vmatpush2.bf16.xpose.msra.mxu0 0
    %339 = vmatprep.subr.bf16.mxu0 0
    %340 = vmatpush2.bf16.xpose.msra.mxu0 0
    %341 = vmatprep.subr.bf16.mxu0 0
    %342 = vmatpush2.bf16.xpose.msra.mxu0 0
    %343 = vmatprep.subr.bf16.mxu0 0
    %344 = vmatpush2.bf16.xpose.msra.mxu0 0
    %345 = vmatprep.subr.bf16.mxu0 0
    %346 = vmatpush2.bf16.xpose.msra.mxu0 0
    %347 = vmatprep.subr.bf16.mxu0 0
    %348 = vmatpush2.bf16.xpose.msra.mxu0 0
    %349 = vmatprep.subr.bf16.mxu0 0
    %350 = vmatpush2.bf16.xpose.msra.mxu0 0
    %351 = vmatprep.mubr.bf16.mxu0 0
    %352 = vmatmul.mubr.bf16.gmra.mxu0 %v314
    %v353 = vpop.f32.mrf.mxu0
    %v354 = vadd.f32 0.0, %v353
    %v355 = vpop.f32.mrf.mxu0
    %v356 = vpop.f32.mrf.mxu0
    %v357 = vpop.f32.mrf.mxu0
    %358 = vdwg.mxu0
    %v359 = vmul.f32 %v354, 0.35355338
    %v360 = vlaneseq
    %v361 = vshrl.u32 %v360, 7
    %v362 = vsub.s32 0, %v361
    %v363 = vrot.slane %v239, %v362
    %v364 = vadd.f32 %v359, %v363
    %v365 = vsel %vm312, %v364, -inf
    %366 = vmax.xlane.f32.xlu0 %v365
    %v367 = vpop.xlane.xlu0 %366
    %v368 = vsub.f32 %v364, %v367
    %v369 = vmul.f32 %v368, 1.442695
    %v370 = vpow.pop %v369
    %v371 = vsel %vm312, %v370, 0.0
    %372 = vadd.xlane.f32.xlu0 %v371
    %v373 = vpop.xlane.xlu0 %372
    %v374 = vrcp.pop %v373
    %v375 = vmul.f32 %v370, %v374
    %v376 = vpack.c.bf16 %v375, %v375
    %377 = vrot.lane.b32.xlu0 %v308, 64
    %v378 = vpop.permute.xlu0 %377
    %v380 = vsel %vm312, %v376, 0
    %vm382 = vcmask 1043456
    %v384 = vsel %vm382, %v378, 0
    %386 = vmatprep.subr.bf16.mxu0 0
    %387 = vmatpush1.bf16.msra.mxu0 0
    %388 = vmatprep.subr.bf16.mxu0 0
    %389 = vmatpush1.bf16.msra.mxu0 0
    %390 = vmatprep.subr.bf16.mxu0 0
    %391 = vmatpush1.bf16.msra.mxu0 0
    %392 = vmatprep.subr.bf16.mxu0 0
    %393 = vmatpush1.bf16.msra.mxu0 0
    %394 = vmatprep.subr.bf16.mxu0 0
    %395 = vmatpush1.bf16.msra.mxu0 0
    %396 = vmatprep.subr.bf16.mxu0 0
    %397 = vmatpush1.bf16.msra.mxu0 0
    %398 = vmatprep.subr.bf16.mxu0 0
    %399 = vmatpush1.bf16.msra.mxu0 0
    %400 = vmatprep.subr.bf16.mxu0 0
    %401 = vmatpush1.bf16.msra.mxu0 %v384
    %402 = vmatprep.subr.bf16.mxu0 0
    %403 = vmatpush2.bf16.msra.mxu0 0
    %404 = vmatprep.subr.bf16.mxu0 0
    %405 = vmatpush2.bf16.msra.mxu0 0
    %406 = vmatprep.subr.bf16.mxu0 0
    %407 = vmatpush2.bf16.msra.mxu0 0
    %408 = vmatprep.subr.bf16.mxu0 0
    %409 = vmatpush2.bf16.msra.mxu0 0
    %410 = vmatprep.subr.bf16.mxu0 0
    %411 = vmatpush2.bf16.msra.mxu0 0
    %412 = vmatprep.subr.bf16.mxu0 0
    %413 = vmatpush2.bf16.msra.mxu0 0
    %414 = vmatprep.subr.bf16.mxu0 0
    %415 = vmatpush2.bf16.msra.mxu0 0
    %416 = vmatprep.subr.bf16.mxu0 0
    %417 = vmatpush2.bf16.msra.mxu0 0
    %418 = vmatprep.mubr.bf16.mxu0 0
    %419 = vmatmul.mubr.bf16.gmra.mxu0 %v380
    %v420 = vpop.f32.mrf.mxu0
    %v421 = vadd.f32 0.0, %v420
    %v422 = vpop.f32.mrf.mxu0
    %v423 = vpop.f32.mrf.mxu0
    %v424 = vpop.f32.mrf.mxu0
    %425 = vdwg.mxu0
    %426 = vrot.lane.b32.xlu0 %v308, 120
    %v427 = vpop.permute.xlu0 %426
    %428 = vrot.lane.b32.xlu0 %v308, 88
    %v429 = vpop.permute.xlu0 %428
    %v431 = vsel %vm312, %v427, 0
    %v434 = vsel %vm312, %v429, 0
    %436 = vmatprep.subr.bf16.mxu0 0
    %437 = vmatpush1.bf16.xpose.msra.mxu0 0
    %438 = vmatprep.subr.bf16.mxu0 0
    %439 = vmatpush1.bf16.xpose.msra.mxu0 0
    %440 = vmatprep.subr.bf16.mxu0 0
    %441 = vmatpush1.bf16.xpose.msra.mxu0 0
    %442 = vmatprep.subr.bf16.mxu0 0
    %443 = vmatpush1.bf16.xpose.msra.mxu0 0
    %444 = vmatprep.subr.bf16.mxu0 0
    %445 = vmatpush1.bf16.xpose.msra.mxu0 0
    %446 = vmatprep.subr.bf16.mxu0 0
    %447 = vmatpush1.bf16.xpose.msra.mxu0 0
    %448 = vmatprep.subr.bf16.mxu0 0
    %449 = vmatpush1.bf16.xpose.msra.mxu0 0
    %450 = vmatprep.subr.bf16.mxu0 0
    %451 = vmatpush1.bf16.xpose.msra.mxu0 %v434
    %452 = vmatprep.subr.bf16.mxu0 0
    %453 = vmatpush2.bf16.xpose.msra.mxu0 0
    %454 = vmatprep.subr.bf16.mxu0 0
    %455 = vmatpush2.bf16.xpose.msra.mxu0 0
    %456 = vmatprep.subr.bf16.mxu0 0
    %457 = vmatpush2.bf16.xpose.msra.mxu0 0
    %458 = vmatprep.subr.bf16.mxu0 0
    %459 = vmatpush2.bf16.xpose.msra.mxu0 0
    %460 = vmatprep.subr.bf16.mxu0 0
    %461 = vmatpush2.bf16.xpose.msra.mxu0 0
    %462 = vmatprep.subr.bf16.mxu0 0
    %463 = vmatpush2.bf16.xpose.msra.mxu0 0
    %464 = vmatprep.subr.bf16.mxu0 0
    %465 = vmatpush2.bf16.xpose.msra.mxu0 0
    %466 = vmatprep.subr.bf16.mxu0 0
    %467 = vmatpush2.bf16.xpose.msra.mxu0 0
    %468 = vmatprep.mubr.bf16.mxu0 0
    %469 = vmatmul.mubr.bf16.gmra.mxu0 %v431
    %v470 = vpop.f32.mrf.mxu0
    %v471 = vadd.f32 0.0, %v470
    %v472 = vpop.f32.mrf.mxu0
    %v473 = vpop.f32.mrf.mxu0
    %v474 = vpop.f32.mrf.mxu0
    %475 = vdwg.mxu0
    %v476 = vmul.f32 %v471, 0.35355338
    %v477 = vadd.f32 %v476, %v363
    %v478 = vsel %vm312, %v477, -inf
    %479 = vmax.xlane.f32.xlu0 %v478
    %v480 = vpop.xlane.xlu0 %479
    %v481 = vsub.f32 %v477, %v480
    %v482 = vmul.f32 %v481, 1.442695
    %v483 = vpow.pop %v482
    %v484 = vsel %vm312, %v483, 0.0
    %485 = vadd.xlane.f32.xlu0 %v484
    %v486 = vpop.xlane.xlu0 %485
    %v487 = vrcp.pop %v486
    %v488 = vmul.f32 %v483, %v487
    %v489 = vpack.c.bf16 %v488, %v488
    %490 = vrot.lane.b32.xlu0 %v308, 56
    %v491 = vpop.permute.xlu0 %490
    %v493 = vsel %vm312, %v489, 0
    %v496 = vsel %vm382, %v491, 0
    %498 = vmatprep.subr.bf16.mxu0 0
    %499 = vmatpush1.bf16.msra.mxu0 0
    %500 = vmatprep.subr.bf16.mxu0 0
    %501 = vmatpush1.bf16.msra.mxu0 0
    %502 = vmatprep.subr.bf16.mxu0 0
    %503 = vmatpush1.bf16.msra.mxu0 0
    %504 = vmatprep.subr.bf16.mxu0 0
    %505 = vmatpush1.bf16.msra.mxu0 0
    %506 = vmatprep.subr.bf16.mxu0 0
    %507 = vmatpush1.bf16.msra.mxu0 0
    %508 = vmatprep.subr.bf16.mxu0 0
    %509 = vmatpush1.bf16.msra.mxu0 0
    %510 = vmatprep.subr.bf16.mxu0 0
    %511 = vmatpush1.bf16.msra.mxu0 0
    %512 = vmatprep.subr.bf16.mxu0 0
    %513 = vmatpush1.bf16.msra.mxu0 %v496
    %514 = vmatprep.subr.bf16.mxu0 0
    %515 = vmatpush2.bf16.msra.mxu0 0
    %516 = vmatprep.subr.bf16.mxu0 0
    %517 = vmatpush2.bf16.msra.mxu0 0
    %518 = vmatprep.subr.bf16.mxu0 0
    %519 = vmatpush2.bf16.msra.mxu0 0
    %520 = vmatprep.subr.bf16.mxu0 0
    %521 = vmatpush2.bf16.msra.mxu0 0
    %522 = vmatprep.subr.bf16.mxu0 0
    %523 = vmatpush2.bf16.msra.mxu0 0
    %524 = vmatprep.subr.bf16.mxu0 0
    %525 = vmatpush2.bf16.msra.mxu0 0
    %526 = vmatprep.subr.bf16.mxu0 0
    %527 = vmatpush2.bf16.msra.mxu0 0
    %528 = vmatprep.subr.bf16.mxu0 0
    %529 = vmatpush2.bf16.msra.mxu0 0
    %530 = vmatprep.mubr.bf16.mxu0 0
    %531 = vmatmul.mubr.bf16.gmra.mxu0 %v493
    %v532 = vpop.f32.mrf.mxu0
    %v533 = vadd.f32 0.0, %v532
    %v534 = vpop.f32.mrf.mxu0
    %v535 = vpop.f32.mrf.mxu0
    %v536 = vpop.f32.mrf.mxu0
    %537 = vdwg.mxu0
    %538 = vrot.lane.b32.xlu0 %v308, 112
    %v539 = vpop.permute.xlu0 %538
    %540 = vrot.lane.b32.xlu0 %v308, 80
    %v541 = vpop.permute.xlu0 %540
    %v543 = vsel %vm312, %v539, 0
    %v546 = vsel %vm312, %v541, 0
    %548 = vmatprep.subr.bf16.mxu0 0
    %549 = vmatpush1.bf16.xpose.msra.mxu0 0
    %550 = vmatprep.subr.bf16.mxu0 0
    %551 = vmatpush1.bf16.xpose.msra.mxu0 0
    %552 = vmatprep.subr.bf16.mxu0 0
    %553 = vmatpush1.bf16.xpose.msra.mxu0 0
    %554 = vmatprep.subr.bf16.mxu0 0
    %555 = vmatpush1.bf16.xpose.msra.mxu0 0
    %556 = vmatprep.subr.bf16.mxu0 0
    %557 = vmatpush1.bf16.xpose.msra.mxu0 0
    %558 = vmatprep.subr.bf16.mxu0 0
    %559 = vmatpush1.bf16.xpose.msra.mxu0 0
    %560 = vmatprep.subr.bf16.mxu0 0
    %561 = vmatpush1.bf16.xpose.msra.mxu0 0
    %562 = vmatprep.subr.bf16.mxu0 0
    %563 = vmatpush1.bf16.xpose.msra.mxu0 %v546
    %564 = vmatprep.subr.bf16.mxu0 0
    %565 = vmatpush2.bf16.xpose.msra.mxu0 0
    %566 = vmatprep.subr.bf16.mxu0 0
    %567 = vmatpush2.bf16.xpose.msra.mxu0 0
    %568 = vmatprep.subr.bf16.mxu0 0
    %569 = vmatpush2.bf16.xpose.msra.mxu0 0
    %570 = vmatprep.subr.bf16.mxu0 0
    %571 = vmatpush2.bf16.xpose.msra.mxu0 0
    %572 = vmatprep.subr.bf16.mxu0 0
    %573 = vmatpush2.bf16.xpose.msra.mxu0 0
    %574 = vmatprep.subr.bf16.mxu0 0
    %575 = vmatpush2.bf16.xpose.msra.mxu0 0
    %576 = vmatprep.subr.bf16.mxu0 0
    %577 = vmatpush2.bf16.xpose.msra.mxu0 0
    %578 = vmatprep.subr.bf16.mxu0 0
    %579 = vmatpush2.bf16.xpose.msra.mxu0 0
    %580 = vmatprep.mubr.bf16.mxu0 0
    %581 = vmatmul.mubr.bf16.gmra.mxu0 %v543
    %v582 = vpop.f32.mrf.mxu0
    %v583 = vadd.f32 0.0, %v582
    %v584 = vpop.f32.mrf.mxu0
    %v585 = vpop.f32.mrf.mxu0
    %v586 = vpop.f32.mrf.mxu0
    %587 = vdwg.mxu0
    %v588 = vmul.f32 %v583, 0.35355338
    %v589 = vadd.f32 %v588, %v363
    %v590 = vsel %vm312, %v589, -inf
    %591 = vmax.xlane.f32.xlu0 %v590
    %v592 = vpop.xlane.xlu0 %591
    %v593 = vsub.f32 %v589, %v592
    %v594 = vmul.f32 %v593, 1.442695
    %v595 = vpow.pop %v594
    %v596 = vsel %vm312, %v595, 0.0
    %597 = vadd.xlane.f32.xlu0 %v596
    %v598 = vpop.xlane.xlu0 %597
    %v599 = vrcp.pop %v598
    %v600 = vmul.f32 %v595, %v599
    %v601 = vpack.c.bf16 %v600, %v600
    %602 = vrot.lane.b32.xlu0 %v308, 48
    %v603 = vpop.permute.xlu0 %602
    %v605 = vsel %vm312, %v601, 0
    %v608 = vsel %vm382, %v603, 0
    %610 = vmatprep.subr.bf16.mxu0 0
    %611 = vmatpush1.bf16.msra.mxu0 0
    %612 = vmatprep.subr.bf16.mxu0 0
    %613 = vmatpush1.bf16.msra.mxu0 0
    %614 = vmatprep.subr.bf16.mxu0 0
    %615 = vmatpush1.bf16.msra.mxu0 0
    %616 = vmatprep.subr.bf16.mxu0 0
    %617 = vmatpush1.bf16.msra.mxu0 0
    %618 = vmatprep.subr.bf16.mxu0 0
    %619 = vmatpush1.bf16.msra.mxu0 0
    %620 = vmatprep.subr.bf16.mxu0 0
    %621 = vmatpush1.bf16.msra.mxu0 0
    %622 = vmatprep.subr.bf16.mxu0 0
    %623 = vmatpush1.bf16.msra.mxu0 0
    %624 = vmatprep.subr.bf16.mxu0 0
    %625 = vmatpush1.bf16.msra.mxu0 %v608
    %626 = vmatprep.subr.bf16.mxu0 0
    %627 = vmatpush2.bf16.msra.mxu0 0
    %628 = vmatprep.subr.bf16.mxu0 0
    %629 = vmatpush2.bf16.msra.mxu0 0
    %630 = vmatprep.subr.bf16.mxu0 0
    %631 = vmatpush2.bf16.msra.mxu0 0
    %632 = vmatprep.subr.bf16.mxu0 0
    %633 = vmatpush2.bf16.msra.mxu0 0
    %634 = vmatprep.subr.bf16.mxu0 0
    %635 = vmatpush2.bf16.msra.mxu0 0
    %636 = vmatprep.subr.bf16.mxu0 0
    %637 = vmatpush2.bf16.msra.mxu0 0
    %638 = vmatprep.subr.bf16.mxu0 0
    %639 = vmatpush2.bf16.msra.mxu0 0
    %640 = vmatprep.subr.bf16.mxu0 0
    %641 = vmatpush2.bf16.msra.mxu0 0
    %642 = vmatprep.mubr.bf16.mxu0 0
    %643 = vmatmul.mubr.bf16.gmra.mxu0 %v605
    %v644 = vpop.f32.mrf.mxu0
    %v645 = vadd.f32 0.0, %v644
    %v646 = vpop.f32.mrf.mxu0
    %v647 = vpop.f32.mrf.mxu0
    %v648 = vpop.f32.mrf.mxu0
    %649 = vdwg.mxu0
    %650 = vrot.lane.b32.xlu0 %v308, 104
    %v651 = vpop.permute.xlu0 %650
    %652 = vrot.lane.b32.xlu0 %v308, 72
    %v653 = vpop.permute.xlu0 %652
    %v655 = vsel %vm312, %v651, 0
    %v658 = vsel %vm312, %v653, 0
    %660 = vmatprep.subr.bf16.mxu0 0
    %661 = vmatpush1.bf16.xpose.msra.mxu0 0
    %662 = vmatprep.subr.bf16.mxu0 0
    %663 = vmatpush1.bf16.xpose.msra.mxu0 0
    %664 = vmatprep.subr.bf16.mxu0 0
    %665 = vmatpush1.bf16.xpose.msra.mxu0 0
    %666 = vmatprep.subr.bf16.mxu0 0
    %667 = vmatpush1.bf16.xpose.msra.mxu0 0
    %668 = vmatprep.subr.bf16.mxu0 0
    %669 = vmatpush1.bf16.xpose.msra.mxu0 0
    %670 = vmatprep.subr.bf16.mxu0 0
    %671 = vmatpush1.bf16.xpose.msra.mxu0 0
    %672 = vmatprep.subr.bf16.mxu0 0
    %673 = vmatpush1.bf16.xpose.msra.mxu0 0
    %674 = vmatprep.subr.bf16.mxu0 0
    %675 = vmatpush1.bf16.xpose.msra.mxu0 %v658
    %676 = vmatprep.subr.bf16.mxu0 0
    %677 = vmatpush2.bf16.xpose.msra.mxu0 0
    %678 = vmatprep.subr.bf16.mxu0 0
    %679 = vmatpush2.bf16.xpose.msra.mxu0 0
    %680 = vmatprep.subr.bf16.mxu0 0
    %681 = vmatpush2.bf16.xpose.msra.mxu0 0
    %682 = vmatprep.subr.bf16.mxu0 0
    %683 = vmatpush2.bf16.xpose.msra.mxu0 0
    %684 = vmatprep.subr.bf16.mxu0 0
    %685 = vmatpush2.bf16.xpose.msra.mxu0 0
    %686 = vmatprep.subr.bf16.mxu0 0
    %687 = vmatpush2.bf16.xpose.msra.mxu0 0
    %688 = vmatprep.subr.bf16.mxu0 0
    %689 = vmatpush2.bf16.xpose.msra.mxu0 0
    %690 = vmatprep.subr.bf16.mxu0 0
    %691 = vmatpush2.bf16.xpose.msra.mxu0 0
    %692 = vmatprep.mubr.bf16.mxu0 0
    %693 = vmatmul.mubr.bf16.gmra.mxu0 %v655
    %v694 = vpop.f32.mrf.mxu0
    %v695 = vadd.f32 0.0, %v694
    %v696 = vpop.f32.mrf.mxu0
    %v697 = vpop.f32.mrf.mxu0
    %v698 = vpop.f32.mrf.mxu0
    %699 = vdwg.mxu0
    %v700 = vmul.f32 %v695, 0.35355338
    %v701 = vadd.f32 %v700, %v363
    %v702 = vsel %vm312, %v701, -inf
    %703 = vmax.xlane.f32.xlu0 %v702
    %v704 = vpop.xlane.xlu0 %703
    %v705 = vsub.f32 %v701, %v704
    %v706 = vmul.f32 %v705, 1.442695
    %v707 = vpow.pop %v706
    %v708 = vsel %vm312, %v707, 0.0
    %709 = vadd.xlane.f32.xlu0 %v708
    %v710 = vpop.xlane.xlu0 %709
    %v711 = vrcp.pop %v710
    %v712 = vmul.f32 %v707, %v711
    %v713 = vpack.c.bf16 %v712, %v712
    %714 = vrot.lane.b32.xlu0 %v308, 40
    %v715 = vpop.permute.xlu0 %714
    %v717 = vsel %vm312, %v713, 0
    %v720 = vsel %vm382, %v715, 0
    %722 = vmatprep.subr.bf16.mxu0 0
    %723 = vmatpush1.bf16.msra.mxu0 0
    %724 = vmatprep.subr.bf16.mxu0 0
    %725 = vmatpush1.bf16.msra.mxu0 0
    %726 = vmatprep.subr.bf16.mxu0 0
    %727 = vmatpush1.bf16.msra.mxu0 0
    %728 = vmatprep.subr.bf16.mxu0 0
    %729 = vmatpush1.bf16.msra.mxu0 0
    %730 = vmatprep.subr.bf16.mxu0 0
    %731 = vmatpush1.bf16.msra.mxu0 0
    %732 = vmatprep.subr.bf16.mxu0 0
    %733 = vmatpush1.bf16.msra.mxu0 0
    %734 = vmatprep.subr.bf16.mxu0 0
    %735 = vmatpush1.bf16.msra.mxu0 0
    %736 = vmatprep.subr.bf16.mxu0 0
    %737 = vmatpush1.bf16.msra.mxu0 %v720
    %738 = vmatprep.subr.bf16.mxu0 0
    %739 = vmatpush2.bf16.msra.mxu0 0
    %740 = vmatprep.subr.bf16.mxu0 0
    %741 = vmatpush2.bf16.msra.mxu0 0
    %742 = vmatprep.subr.bf16.mxu0 0
    %743 = vmatpush2.bf16.msra.mxu0 0
    %744 = vmatprep.subr.bf16.mxu0 0
    %745 = vmatpush2.bf16.msra.mxu0 0
    %746 = vmatprep.subr.bf16.mxu0 0
    %747 = vmatpush2.bf16.msra.mxu0 0
    %748 = vmatprep.subr.bf16.mxu0 0
    %749 = vmatpush2.bf16.msra.mxu0 0
    %750 = vmatprep.subr.bf16.mxu0 0
    %751 = vmatpush2.bf16.msra.mxu0 0
    %752 = vmatprep.subr.bf16.mxu0 0
    %753 = vmatpush2.bf16.msra.mxu0 0
    %754 = vmatprep.mubr.bf16.mxu0 0
    %755 = vmatmul.mubr.bf16.gmra.mxu0 %v717
    %v756 = vpop.f32.mrf.mxu0
    %v757 = vadd.f32 0.0, %v756
    %v758 = vpop.f32.mrf.mxu0
    %v759 = vpop.f32.mrf.mxu0
    %v760 = vpop.f32.mrf.mxu0
    %761 = vdwg.mxu0
    %763 = vrot.lane.b32.xlu0 %v533, 8
    %v764 = vpop.permute.xlu0 %763
    %767 = vrot.lane.b32.xlu0 %v645, 16
    %v768 = vpop.permute.xlu0 %767
    %771 = vrot.lane.b32.xlu0 %v757, 24
    %v772 = vpop.permute.xlu0 %771
    %v774 = vsel %vm312, %v421, %v764
    %vm775 = vcmask 130048
    %v776 = vsel %vm775, %v774, %v768
    %vm777 = vcmask 195584
    %v778 = vsel %vm777, %v776, %v772
    %v779 = vpack.c.bf16 %v305, %v305
    %781 = vrot.lane.b32.xlu0 %v779, 96
    %v782 = vpop.permute.xlu0 %781
    %v784 = vsel %vm312, %v779, 0
    %v787 = vsel %vm312, %v782, 0
    %789 = vmatprep.subr.bf16.mxu0 0
    %790 = vmatpush1.bf16.xpose.msra.mxu0 0
    %791 = vmatprep.subr.bf16.mxu0 0
    %792 = vmatpush1.bf16.xpose.msra.mxu0 0
    %793 = vmatprep.subr.bf16.mxu0 0
    %794 = vmatpush1.bf16.xpose.msra.mxu0 0
    %795 = vmatprep.subr.bf16.mxu0 0
    %796 = vmatpush1.bf16.xpose.msra.mxu0 0
    %797 = vmatprep.subr.bf16.mxu0 0
    %798 = vmatpush1.bf16.xpose.msra.mxu0 0
    %799 = vmatprep.subr.bf16.mxu0 0
    %800 = vmatpush1.bf16.xpose.msra.mxu0 0
    %801 = vmatprep.subr.bf16.mxu0 0
    %802 = vmatpush1.bf16.xpose.msra.mxu0 0
    %803 = vmatprep.subr.bf16.mxu0 0
    %804 = vmatpush1.bf16.xpose.msra.mxu0 %v787
    %805 = vmatprep.subr.bf16.mxu0 0
    %806 = vmatpush2.bf16.xpose.msra.mxu0 0
    %807 = vmatprep.subr.bf16.mxu0 0
    %808 = vmatpush2.bf16.xpose.msra.mxu0 0
    %809 = vmatprep.subr.bf16.mxu0 0
    %810 = vmatpush2.bf16.xpose.msra.mxu0 0
    %811 = vmatprep.subr.bf16.mxu0 0
    %812 = vmatpush2.bf16.xpose.msra.mxu0 0
    %813 = vmatprep.subr.bf16.mxu0 0
    %814 = vmatpush2.bf16.xpose.msra.mxu0 0
    %815 = vmatprep.subr.bf16.mxu0 0
    %816 = vmatpush2.bf16.xpose.msra.mxu0 0
    %817 = vmatprep.subr.bf16.mxu0 0
    %818 = vmatpush2.bf16.xpose.msra.mxu0 0
    %819 = vmatprep.subr.bf16.mxu0 0
    %820 = vmatpush2.bf16.xpose.msra.mxu0 0
    %821 = vmatprep.mubr.bf16.mxu0 0
    %822 = vmatmul.mubr.bf16.gmra.mxu0 %v784
    %v823 = vpop.f32.mrf.mxu0
    %v824 = vadd.f32 0.0, %v823
    %v825 = vpop.f32.mrf.mxu0
    %v826 = vpop.f32.mrf.mxu0
    %v827 = vpop.f32.mrf.mxu0
    %828 = vdwg.mxu0
    %v829 = vmul.f32 %v824, 0.35355338
    %v830 = vlaneseq
    %v831 = vshrl.u32 %v830, 7
    %v832 = vsub.s32 1, %v831
    %v833 = vrot.slane %v239, %v832
    %v834 = vadd.f32 %v829, %v833
    %v835 = vsel %vm312, %v834, -inf
    %836 = vmax.xlane.f32.xlu0 %v835
    %v837 = vpop.xlane.xlu0 %836
    %v838 = vsub.f32 %v834, %v837
    %v839 = vmul.f32 %v838, 1.442695
    %v840 = vpow.pop %v839
    %v841 = vsel %vm312, %v840, 0.0
    %842 = vadd.xlane.f32.xlu0 %v841
    %v843 = vpop.xlane.xlu0 %842
    %v844 = vrcp.pop %v843
    %v845 = vmul.f32 %v840, %v844
    %v846 = vpack.c.bf16 %v845, %v845
    %847 = vrot.lane.b32.xlu0 %v779, 64
    %v848 = vpop.permute.xlu0 %847
    %v850 = vsel %vm312, %v846, 0
    %v853 = vsel %vm382, %v848, 0
    %855 = vmatprep.subr.bf16.mxu0 0
    %856 = vmatpush1.bf16.msra.mxu0 0
    %857 = vmatprep.subr.bf16.mxu0 0
    %858 = vmatpush1.bf16.msra.mxu0 0
    %859 = vmatprep.subr.bf16.mxu0 0
    %860 = vmatpush1.bf16.msra.mxu0 0
    %861 = vmatprep.subr.bf16.mxu0 0
    %862 = vmatpush1.bf16.msra.mxu0 0
    %863 = vmatprep.subr.bf16.mxu0 0
    %864 = vmatpush1.bf16.msra.mxu0 0
    %865 = vmatprep.subr.bf16.mxu0 0
    %866 = vmatpush1.bf16.msra.mxu0 0
    %867 = vmatprep.subr.bf16.mxu0 0
    %868 = vmatpush1.bf16.msra.mxu0 0
    %869 = vmatprep.subr.bf16.mxu0 0
    %870 = vmatpush1.bf16.msra.mxu0 %v853
    %871 = vmatprep.subr.bf16.mxu0 0
    %872 = vmatpush2.bf16.msra.mxu0 0
    %873 = vmatprep.subr.bf16.mxu0 0
    %874 = vmatpush2.bf16.msra.mxu0 0
    %875 = vmatprep.subr.bf16.mxu0 0
    %876 = vmatpush2.bf16.msra.mxu0 0
    %877 = vmatprep.subr.bf16.mxu0 0
    %878 = vmatpush2.bf16.msra.mxu0 0
    %879 = vmatprep.subr.bf16.mxu0 0
    %880 = vmatpush2.bf16.msra.mxu0 0
    %881 = vmatprep.subr.bf16.mxu0 0
    %882 = vmatpush2.bf16.msra.mxu0 0
    %883 = vmatprep.subr.bf16.mxu0 0
    %884 = vmatpush2.bf16.msra.mxu0 0
    %885 = vmatprep.subr.bf16.mxu0 0
    %886 = vmatpush2.bf16.msra.mxu0 0
    %887 = vmatprep.mubr.bf16.mxu0 0
    %888 = vmatmul.mubr.bf16.gmra.mxu0 %v850
    %v889 = vpop.f32.mrf.mxu0
    %v890 = vadd.f32 0.0, %v889
    %v891 = vpop.f32.mrf.mxu0
    %v892 = vpop.f32.mrf.mxu0
    %v893 = vpop.f32.mrf.mxu0
    %894 = vdwg.mxu0
    %895 = vrot.lane.b32.xlu0 %v779, 120
    %v896 = vpop.permute.xlu0 %895
    %897 = vrot.lane.b32.xlu0 %v779, 88
    %v898 = vpop.permute.xlu0 %897
    %v900 = vsel %vm312, %v896, 0
    %v903 = vsel %vm312, %v898, 0
    %905 = vmatprep.subr.bf16.mxu0 0
    %906 = vmatpush1.bf16.xpose.msra.mxu0 0
    %907 = vmatprep.subr.bf16.mxu0 0
    %908 = vmatpush1.bf16.xpose.msra.mxu0 0
    %909 = vmatprep.subr.bf16.mxu0 0
    %910 = vmatpush1.bf16.xpose.msra.mxu0 0
    %911 = vmatprep.subr.bf16.mxu0 0
    %912 = vmatpush1.bf16.xpose.msra.mxu0 0
    %913 = vmatprep.subr.bf16.mxu0 0
    %914 = vmatpush1.bf16.xpose.msra.mxu0 0
    %915 = vmatprep.subr.bf16.mxu0 0
    %916 = vmatpush1.bf16.xpose.msra.mxu0 0
    %917 = vmatprep.subr.bf16.mxu0 0
    %918 = vmatpush1.bf16.xpose.msra.mxu0 0
    %919 = vmatprep.subr.bf16.mxu0 0
    %920 = vmatpush1.bf16.xpose.msra.mxu0 %v903
    %921 = vmatprep.subr.bf16.mxu0 0
    %922 = vmatpush2.bf16.xpose.msra.mxu0 0
    %923 = vmatprep.subr.bf16.mxu0 0
    %924 = vmatpush2.bf16.xpose.msra.mxu0 0
    %925 = vmatprep.subr.bf16.mxu0 0
    %926 = vmatpush2.bf16.xpose.msra.mxu0 0
    %927 = vmatprep.subr.bf16.mxu0 0
    %928 = vmatpush2.bf16.xpose.msra.mxu0 0
    %929 = vmatprep.subr.bf16.mxu0 0
    %930 = vmatpush2.bf16.xpose.msra.mxu0 0
    %931 = vmatprep.subr.bf16.mxu0 0
    %932 = vmatpush2.bf16.xpose.msra.mxu0 0
    %933 = vmatprep.subr.bf16.mxu0 0
    %934 = vmatpush2.bf16.xpose.msra.mxu0 0
    %935 = vmatprep.subr.bf16.mxu0 0
    %936 = vmatpush2.bf16.xpose.msra.mxu0 0
    %937 = vmatprep.mubr.bf16.mxu0 0
    %938 = vmatmul.mubr.bf16.gmra.mxu0 %v900
    %v939 = vpop.f32.mrf.mxu0
    %v940 = vadd.f32 0.0, %v939
    %v941 = vpop.f32.mrf.mxu0
    %v942 = vpop.f32.mrf.mxu0
    %v943 = vpop.f32.mrf.mxu0
    %944 = vdwg.mxu0
    %v945 = vmul.f32 %v940, 0.35355338
    %v946 = vadd.f32 %v945, %v833
    %v947 = vsel %vm312, %v946, -inf
    %948 = vmax.xlane.f32.xlu0 %v947
    %v949 = vpop.xlane.xlu0 %948
    %v950 = vsub.f32 %v946, %v949
    %v951 = vmul.f32 %v950, 1.442695
    %v952 = vpow.pop %v951
    %v953 = vsel %vm312, %v952, 0.0
    %954 = vadd.xlane.f32.xlu0 %v953
    %v955 = vpop.xlane.xlu0 %954
    %v956 = vrcp.pop %v955
    %v957 = vmul.f32 %v952, %v956
    %v958 = vpack.c.bf16 %v957, %v957
    %959 = vrot.lane.b32.xlu0 %v779, 56
    %v960 = vpop.permute.xlu0 %959
    %v962 = vsel %vm312, %v958, 0
    %v965 = vsel %vm382, %v960, 0
    %967 = vmatprep.subr.bf16.mxu0 0
    %968 = vmatpush1.bf16.msra.mxu0 0
    %969 = vmatprep.subr.bf16.mxu0 0
    %970 = vmatpush1.bf16.msra.mxu0 0
    %971 = vmatprep.subr.bf16.mxu0 0
    %972 = vmatpush1.bf16.msra.mxu0 0
    %973 = vmatprep.subr.bf16.mxu0 0
    %974 = vmatpush1.bf16.msra.mxu0 0
    %975 = vmatprep.subr.bf16.mxu0 0
    %976 = vmatpush1.bf16.msra.mxu0 0
    %977 = vmatprep.subr.bf16.mxu0 0
    %978 = vmatpush1.bf16.msra.mxu0 0
    %979 = vmatprep.subr.bf16.mxu0 0
    %980 = vmatpush1.bf16.msra.mxu0 0
    %981 = vmatprep.subr.bf16.mxu0 0
    %982 = vmatpush1.bf16.msra.mxu0 %v965
    %983 = vmatprep.subr.bf16.mxu0 0
    %984 = vmatpush2.bf16.msra.mxu0 0
    %985 = vmatprep.subr.bf16.mxu0 0
    %986 = vmatpush2.bf16.msra.mxu0 0
    %987 = vmatprep.subr.bf16.mxu0 0
    %988 = vmatpush2.bf16.msra.mxu0 0
    %989 = vmatprep.subr.bf16.mxu0 0
    %990 = vmatpush2.bf16.msra.mxu0 0
    %991 = vmatprep.subr.bf16.mxu0 0
    %992 = vmatpush2.bf16.msra.mxu0 0
    %993 = vmatprep.subr.bf16.mxu0 0
    %994 = vmatpush2.bf16.msra.mxu0 0
    %995 = vmatprep.subr.bf16.mxu0 0
    %996 = vmatpush2.bf16.msra.mxu0 0
    %997 = vmatprep.subr.bf16.mxu0 0
    %998 = vmatpush2.bf16.msra.mxu0 0
    %999 = vmatprep.mubr.bf16.mxu0 0
    %1000 = vmatmul.mubr.bf16.gmra.mxu0 %v962
    %v1001 = vpop.f32.mrf.mxu0
    %v1002 = vadd.f32 0.0, %v1001
    %v1003 = vpop.f32.mrf.mxu0
    %v1004 = vpop.f32.mrf.mxu0
    %v1005 = vpop.f32.mrf.mxu0
    %1006 = vdwg.mxu0
    %1007 = vrot.lane.b32.xlu0 %v779, 112
    %v1008 = vpop.permute.xlu0 %1007
    %1009 = vrot.lane.b32.xlu0 %v779, 80
    %v1010 = vpop.permute.xlu0 %1009
    %v1012 = vsel %vm312, %v1008, 0
    %v1015 = vsel %vm312, %v1010, 0
    %1017 = vmatprep.subr.bf16.mxu0 0
    %1018 = vmatpush1.bf16.xpose.msra.mxu0 0
    %1019 = vmatprep.subr.bf16.mxu0 0
    %1020 = vmatpush1.bf16.xpose.msra.mxu0 0
    %1021 = vmatprep.subr.bf16.mxu0 0
    %1022 = vmatpush1.bf16.xpose.msra.mxu0 0
    %1023 = vmatprep.subr.bf16.mxu0 0
    %1024 = vmatpush1.bf16.xpose.msra.mxu0 0
    %1025 = vmatprep.subr.bf16.mxu0 0
    %1026 = vmatpush1.bf16.xpose.msra.mxu0 0
    %1027 = vmatprep.subr.bf16.mxu0 0
    %1028 = vmatpush1.bf16.xpose.msra.mxu0 0
    %1029 = vmatprep.subr.bf16.mxu0 0
    %1030 = vmatpush1.bf16.xpose.msra.mxu0 0
    %1031 = vmatprep.subr.bf16.mxu0 0
    %1032 = vmatpush1.bf16.xpose.msra.mxu0 %v1015
    %1033 = vmatprep.subr.bf16.mxu0 0
    %1034 = vmatpush2.bf16.xpose.msra.mxu0 0
    %1035 = vmatprep.subr.bf16.mxu0 0
    %1036 = vmatpush2.bf16.xpose.msra.mxu0 0
    %1037 = vmatprep.subr.bf16.mxu0 0
    %1038 = vmatpush2.bf16.xpose.msra.mxu0 0
    %1039 = vmatprep.subr.bf16.mxu0 0
    %1040 = vmatpush2.bf16.xpose.msra.mxu0 0
    %1041 = vmatprep.subr.bf16.mxu0 0
    %1042 = vmatpush2.bf16.xpose.msra.mxu0 0
    %1043 = vmatprep.subr.bf16.mxu0 0
    %1044 = vmatpush2.bf16.xpose.msra.mxu0 0
    %1045 = vmatprep.subr.bf16.mxu0 0
    %1046 = vmatpush2.bf16.xpose.msra.mxu0 0
    %1047 = vmatprep.subr.bf16.mxu0 0
    %1048 = vmatpush2.bf16.xpose.msra.mxu0 0
    %1049 = vmatprep.mubr.bf16.mxu0 0
    %1050 = vmatmul.mubr.bf16.gmra.mxu0 %v1012
    %v1051 = vpop.f32.mrf.mxu0
    %v1052 = vadd.f32 0.0, %v1051
    %v1053 = vpop.f32.mrf.mxu0
    %v1054 = vpop.f32.mrf.mxu0
    %v1055 = vpop.f32.mrf.mxu0
    %1056 = vdwg.mxu0
    %v1057 = vmul.f32 %v1052, 0.35355338
    %v1058 = vadd.f32 %v1057, %v833
    %v1059 = vsel %vm312, %v1058, -inf
    %1060 = vmax.xlane.f32.xlu0 %v1059
    %v1061 = vpop.xlane.xlu0 %1060
    %v1062 = vsub.f32 %v1058, %v1061
    %v1063 = vmul.f32 %v1062, 1.442695
    %v1064 = vpow.pop %v1063
    %v1065 = vsel %vm312, %v1064, 0.0
    %1066 = vadd.xlane.f32.xlu0 %v1065
    %v1067 = vpop.xlane.xlu0 %1066
    %v1068 = vrcp.pop %v1067
    %v1069 = vmul.f32 %v1064, %v1068
    %v1070 = vpack.c.bf16 %v1069, %v1069
    %1071 = vrot.lane.b32.xlu0 %v779, 48
    %v1072 = vpop.permute.xlu0 %1071
    %v1074 = vsel %vm312, %v1070, 0
    %v1077 = vsel %vm382, %v1072, 0
    %1079 = vmatprep.subr.bf16.mxu0 0
    %1080 = vmatpush1.bf16.msra.mxu0 0
    %1081 = vmatprep.subr.bf16.mxu0 0
    %1082 = vmatpush1.bf16.msra.mxu0 0
    %1083 = vmatprep.subr.bf16.mxu0 0
    %1084 = vmatpush1.bf16.msra.mxu0 0
    %1085 = vmatprep.subr.bf16.mxu0 0
    %1086 = vmatpush1.bf16.msra.mxu0 0
    %1087 = vmatprep.subr.bf16.mxu0 0
    %1088 = vmatpush1.bf16.msra.mxu0 0
    %1089 = vmatprep.subr.bf16.mxu0 0
    %1090 = vmatpush1.bf16.msra.mxu0 0
    %1091 = vmatprep.subr.bf16.mxu0 0
    %1092 = vmatpush1.bf16.msra.mxu0 0
    %1093 = vmatprep.subr.bf16.mxu0 0
    %1094 = vmatpush1.bf16.msra.mxu0 %v1077
    %1095 = vmatprep.subr.bf16.mxu0 0
    %1096 = vmatpush2.bf16.msra.mxu0 0
    %1097 = vmatprep.subr.bf16.mxu0 0
    %1098 = vmatpush2.bf16.msra.mxu0 0
    %1099 = vmatprep.subr.bf16.mxu0 0
    %1100 = vmatpush2.bf16.msra.mxu0 0
    %1101 = vmatprep.subr.bf16.mxu0 0
    %1102 = vmatpush2.bf16.msra.mxu0 0
    %1103 = vmatprep.subr.bf16.mxu0 0
    %1104 = vmatpush2.bf16.msra.mxu0 0
    %1105 = vmatprep.subr.bf16.mxu0 0
    %1106 = vmatpush2.bf16.msra.mxu0 0
    %1107 = vmatprep.subr.bf16.mxu0 0
    %1108 = vmatpush2.bf16.msra.mxu0 0
    %1109 = vmatprep.subr.bf16.mxu0 0
    %1110 = vmatpush2.bf16.msra.mxu0 0
    %1111 = vmatprep.mubr.bf16.mxu0 0
    %1112 = vmatmul.mubr.bf16.gmra.mxu0 %v1074
    %v1113 = vpop.f32.mrf.mxu0
    %v1114 = vadd.f32 0.0, %v1113
    %v1115 = vpop.f32.mrf.mxu0
    %v1116 = vpop.f32.mrf.mxu0
    %v1117 = vpop.f32.mrf.mxu0
    %1118 = vdwg.mxu0
    %1119 = vrot.lane.b32.xlu0 %v779, 104
    %v1120 = vpop.permute.xlu0 %1119
    %1121 = vrot.lane.b32.xlu0 %v779, 72
    %v1122 = vpop.permute.xlu0 %1121
    %v1124 = vsel %vm312, %v1120, 0
    %v1127 = vsel %vm312, %v1122, 0
    %1129 = vmatprep.subr.bf16.mxu0 0
    %1130 = vmatpush1.bf16.xpose.msra.mxu0 0
    %1131 = vmatprep.subr.bf16.mxu0 0
    %1132 = vmatpush1.bf16.xpose.msra.mxu0 0
    %1133 = vmatprep.subr.bf16.mxu0 0
    %1134 = vmatpush1.bf16.xpose.msra.mxu0 0
    %1135 = vmatprep.subr.bf16.mxu0 0
    %1136 = vmatpush1.bf16.xpose.msra.mxu0 0
    %1137 = vmatprep.subr.bf16.mxu0 0
    %1138 = vmatpush1.bf16.xpose.msra.mxu0 0
    %1139 = vmatprep.subr.bf16.mxu0 0
    %1140 = vmatpush1.bf16.xpose.msra.mxu0 0
    %1141 = vmatprep.subr.bf16.mxu0 0
    %1142 = vmatpush1.bf16.xpose.msra.mxu0 0
    %1143 = vmatprep.subr.bf16.mxu0 0
    %1144 = vmatpush1.bf16.xpose.msra.mxu0 %v1127
    %1145 = vmatprep.subr.bf16.mxu0 0
    %1146 = vmatpush2.bf16.xpose.msra.mxu0 0
    %1147 = vmatprep.subr.bf16.mxu0 0
    %1148 = vmatpush2.bf16.xpose.msra.mxu0 0
    %1149 = vmatprep.subr.bf16.mxu0 0
    %1150 = vmatpush2.bf16.xpose.msra.mxu0 0
    %1151 = vmatprep.subr.bf16.mxu0 0
    %1152 = vmatpush2.bf16.xpose.msra.mxu0 0
    %1153 = vmatprep.subr.bf16.mxu0 0
    %1154 = vmatpush2.bf16.xpose.msra.mxu0 0
    %1155 = vmatprep.subr.bf16.mxu0 0
    %1156 = vmatpush2.bf16.xpose.msra.mxu0 0
    %1157 = vmatprep.subr.bf16.mxu0 0
    %1158 = vmatpush2.bf16.xpose.msra.mxu0 0
    %1159 = vmatprep.subr.bf16.mxu0 0
    %1160 = vmatpush2.bf16.xpose.msra.mxu0 0
    %1161 = vmatprep.mubr.bf16.mxu0 0
    %1162 = vmatmul.mubr.bf16.gmra.mxu0 %v1124
    %v1163 = vpop.f32.mrf.mxu0
    %v1164 = vadd.f32 0.0, %v1163
    %v1165 = vpop.f32.mrf.mxu0
    %v1166 = vpop.f32.mrf.mxu0
    %v1167 = vpop.f32.mrf.mxu0
    %1168 = vdwg.mxu0
    %v1169 = vmul.f32 %v1164, 0.35355338
    %v1170 = vadd.f32 %v1169, %v833
    %v1171 = vsel %vm312, %v1170, -inf
    %1172 = vmax.xlane.f32.xlu0 %v1171
    %v1173 = vpop.xlane.xlu0 %1172
    %v1174 = vsub.f32 %v1170, %v1173
    %v1175 = vmul.f32 %v1174, 1.442695
    %v1176 = vpow.pop %v1175
    %v1177 = vsel %vm312, %v1176, 0.0
    %1178 = vadd.xlane.f32.xlu0 %v1177
    %v1179 = vpop.xlane.xlu0 %1178
    %v1180 = vrcp.pop %v1179
    %v1181 = vmul.f32 %v1176, %v1180
    %v1182 = vpack.c.bf16 %v1181, %v1181
    %1183 = vrot.lane.b32.xlu0 %v779, 40
    %v1184 = vpop.permute.xlu0 %1183
    %v1186 = vsel %vm312, %v1182, 0
    %v1189 = vsel %vm382, %v1184, 0
    %1191 = vmatprep.subr.bf16.mxu0 0
    %1192 = vmatpush1.bf16.msra.mxu0 0
    %1193 = vmatprep.subr.bf16.mxu0 0
    %1194 = vmatpush1.bf16.msra.mxu0 0
    %1195 = vmatprep.subr.bf16.mxu0 0
    %1196 = vmatpush1.bf16.msra.mxu0 0
    %1197 = vmatprep.subr.bf16.mxu0 0
    %1198 = vmatpush1.bf16.msra.mxu0 0
    %1199 = vmatprep.subr.bf16.mxu0 0
    %1200 = vmatpush1.bf16.msra.mxu0 0
    %1201 = vmatprep.subr.bf16.mxu0 0
    %1202 = vmatpush1.bf16.msra.mxu0 0
    %1203 = vmatprep.subr.bf16.mxu0 0
    %1204 = vmatpush1.bf16.msra.mxu0 0
    %1205 = vmatprep.subr.bf16.mxu0 0
    %1206 = vmatpush1.bf16.msra.mxu0 %v1189
    %1207 = vmatprep.subr.bf16.mxu0 0
    %1208 = vmatpush2.bf16.msra.mxu0 0
    %1209 = vmatprep.subr.bf16.mxu0 0
    %1210 = vmatpush2.bf16.msra.mxu0 0
    %1211 = vmatprep.subr.bf16.mxu0 0
    %1212 = vmatpush2.bf16.msra.mxu0 0
    %1213 = vmatprep.subr.bf16.mxu0 0
    %1214 = vmatpush2.bf16.msra.mxu0 0
    %1215 = vmatprep.subr.bf16.mxu0 0
    %1216 = vmatpush2.bf16.msra.mxu0 0
    %1217 = vmatprep.subr.bf16.mxu0 0
    %1218 = vmatpush2.bf16.msra.mxu0 0
    %1219 = vmatprep.subr.bf16.mxu0 0
    %1220 = vmatpush2.bf16.msra.mxu0 0
    %1221 = vmatprep.subr.bf16.mxu0 0
    %1222 = vmatpush2.bf16.msra.mxu0 0
    %1223 = vmatprep.mubr.bf16.mxu0 0
    %1224 = vmatmul.mubr.bf16.gmra.mxu0 %v1186
    %v1225 = vpop.f32.mrf.mxu0
    %v1226 = vadd.f32 0.0, %v1225
    %v1227 = vpop.f32.mrf.mxu0
    %v1228 = vpop.f32.mrf.mxu0
    %v1229 = vpop.f32.mrf.mxu0
    %1230 = vdwg.mxu0
    %1232 = vrot.lane.b32.xlu0 %v1002, 8
    %v1233 = vpop.permute.xlu0 %1232
    %1236 = vrot.lane.b32.xlu0 %v1114, 16
    %v1237 = vpop.permute.xlu0 %1236
    %1240 = vrot.lane.b32.xlu0 %v1226, 24
    %v1241 = vpop.permute.xlu0 %1240
    %v1243 = vsel %vm312, %v890, %v1233
    %v1244 = vsel %vm775, %v1243, %v1237
    %v1245 = vsel %vm777, %v1244, %v1241
    %v1246 = vld [vmem:[%s9] sm:$0xf]
    %v1247 = vld [vmem:[%s9 + $0x4] sm:$0xf]
    %v1248 = vld [vmem:[%s9 + $0x8] sm:$0xf]
    %v1249 = vld [vmem:[%s9 + $0xc] sm:$0xf]
    %v1250 = vpack.c.bf16 %v1245, %v778
    %v1251 = vld [vmem:[%s10] sm:$0x1]
    %v1253 = vlaneseq
    %v1254 = vshrl.u32 %v1253, 7
    %v1255 = vsub.s32 0, %v1254
    %v1256 = vrot.slane %v1251, %v1255
    %v1262 = vunpack.c.l.b16 %v1246
    %v1263 = vunpack.c.l.b16 %v1247
    %v1264 = vunpack.c.l.b16 %v1248
    %v1265 = vunpack.c.l.b16 %v1249
    %v1266 = vpack.c.b16 %v1263, %v1262
    %v1267 = vpack.c.b16 %v1265, %v1264
    %v1271 = vsel %vm193, %v1250, 0
    %1273 = vmatprep.subr.bf16.mxu0 0
    %1274 = vmatpush1.bf16.msra.mxu0 0
    %1275 = vmatprep.subr.bf16.mxu0 0
    %1276 = vmatpush1.bf16.msra.mxu0 0
    %1277 = vmatprep.subr.bf16.mxu0 0
    %1278 = vmatpush1.bf16.msra.mxu0 0
    %1279 = vmatprep.subr.bf16.mxu0 0
    %1280 = vmatpush1.bf16.msra.mxu0 0
    %1281 = vmatprep.subr.bf16.mxu0 0
    %1282 = vmatpush1.bf16.msra.mxu0 0
    %1283 = vmatprep.subr.bf16.mxu0 0
    %1284 = vmatpush1.bf16.msra.mxu0 0
    %1285 = vmatprep.subr.bf16.mxu0 0
    %1286 = vmatpush1.bf16.msra.mxu0 %v1267
    %1287 = vmatprep.subr.bf16.mxu0 0
    %1288 = vmatpush1.bf16.msra.mxu0 %v1266
    %1289 = vmatprep.subr.bf16.mxu0 0
    %1290 = vmatpush2.bf16.msra.mxu0 0
    %1291 = vmatprep.subr.bf16.mxu0 0
    %1292 = vmatpush2.bf16.msra.mxu0 0
    %1293 = vmatprep.subr.bf16.mxu0 0
    %1294 = vmatpush2.bf16.msra.mxu0 0
    %1295 = vmatprep.subr.bf16.mxu0 0
    %1296 = vmatpush2.bf16.msra.mxu0 0
    %1297 = vmatprep.subr.bf16.mxu0 0
    %1298 = vmatpush2.bf16.msra.mxu0 0
    %1299 = vmatprep.subr.bf16.mxu0 0
    %1300 = vmatpush2.bf16.msra.mxu0 0
    %1301 = vmatprep.subr.bf16.mxu0 0
    %1302 = vmatpush2.bf16.msra.mxu0 0
    %1303 = vmatprep.subr.bf16.mxu0 0
    %1304 = vmatpush2.bf16.msra.mxu0 0
    %1305 = vmatprep.mubr.bf16.mxu0 0
    %1306 = vmatmul.mubr.bf16.gmra.mxu0 %v1271
    %v1307 = vpop.f32.mrf.mxu0
    %v1308 = vadd.f32 %v1256, %v1307
    %v1309 = vpop.f32.mrf.mxu0
    %v1310 = vpop.f32.mrf.mxu0
    %v1311 = vadd.f32 %v1256, %v1310
    %v1312 = vpop.f32.mrf.mxu0
    %1313 = vdwg.mxu0
    %v1314 = vadd.f32 %v235, %v1308
    %v1315 = vadd.f32 %v236, %v1311
    %v1316 = vld [vmem:[%s11] sm:$0x1]
    %v1317 = vld [vmem:[%s12] sm:$0x1]
    %v1318 = vsel %vm193, %v1314, 0.0
    %1319 = vadd.xlane.f32.xlu0 %v1318
    %v1320 = vpop.xlane.xlu0 %1319
    %v1321 = vsel %vm193, %v1315, 0.0
    %1322 = vadd.xlane.f32.xlu0 %v1321
    %v1323 = vpop.xlane.xlu0 %1322
    %v1324 = vmul.f32 %v1320, %v200
    %v1325 = vmul.f32 %v1323, %v200
    %v1326 = vsub.f32 %v1314, %v1324
    %v1327 = vsub.f32 %v1315, %v1325
    %v1328 = vmul.f32 %v1326, %v1326
    %v1329 = vmul.f32 %v1327, %v1327
    %v1330 = vsel %vm193, %v1328, 0.0
    %1331 = vadd.xlane.f32.xlu0 %v1330
    %v1332 = vpop.xlane.xlu0 %1331
    %v1333 = vsel %vm193, %v1329, 0.0
    %1334 = vadd.xlane.f32.xlu0 %v1333
    %v1335 = vpop.xlane.xlu0 %1334
    %v1336 = vmul.f32 %v1332, %v200
    %v1337 = vmul.f32 %v1335, %v200
    %v1338 = vadd.f32 %v1336, 1e-12
    %v1339 = vadd.f32 %v1337, 1e-12
    %v1340 = vrsqrt.pop %v1338
    %v1341 = vrsqrt.pop %v1339
    %v1342 = vmul.f32 %v1326, %v1340
    %v1343 = vmul.f32 %v1327, %v1341
    %v1345 = vlaneseq
    %v1346 = vshrl.u32 %v1345, 7
    %v1347 = vsub.s32 0, %v1346
    %v1348 = vrot.slane %v1316, %v1347
    %v1350 = vmul.f32 %v1342, %v1348
    %v1351 = vmul.f32 %v1343, %v1348
    %v1353 = vlaneseq
    %v1354 = vshrl.u32 %v1353, 7
    %v1355 = vsub.s32 0, %v1354
    %v1356 = vrot.slane %v1317, %v1355
    %v1358 = vadd.f32 %v1350, %v1356
    %v1359 = vadd.f32 %v1351, %v1356
    %v1360 = vld [vmem:[%s13] sm:$0xf]
    %v1361 = vld [vmem:[%s13 + $0x4] sm:$0xf]
    %v1362 = vld [vmem:[%s13 + $0x8] sm:$0xf]
    %v1363 = vld [vmem:[%s13 + $0xc] sm:$0xf]
    %v1364 = vpack.c.bf16 %v1359, %v1358
    %v1365 = vld [vmem:[%s14] sm:$0x1]
    %v1367 = vlaneseq
    %v1368 = vshrl.u32 %v1367, 7
    %v1369 = vsub.s32 0, %v1368
    %v1370 = vrot.slane %v1365, %v1369
    %v1376 = vunpack.c.l.b16 %v1360
    %v1377 = vunpack.c.l.b16 %v1361
    %v1378 = vunpack.c.l.b16 %v1362
    %v1379 = vunpack.c.l.b16 %v1363
    %v1380 = vpack.c.b16 %v1377, %v1376
    %v1381 = vpack.c.b16 %v1379, %v1378
    %v1385 = vsel %vm193, %v1364, 0
    %1387 = vmatprep.subr.bf16.mxu0 0
    %1388 = vmatpush1.bf16.msra.mxu0 0
    %1389 = vmatprep.subr.bf16.mxu0 0
    %1390 = vmatpush1.bf16.msra.mxu0 0
    %1391 = vmatprep.subr.bf16.mxu0 0
    %1392 = vmatpush1.bf16.msra.mxu0 0
    %1393 = vmatprep.subr.bf16.mxu0 0
    %1394 = vmatpush1.bf16.msra.mxu0 0
    %1395 = vmatprep.subr.bf16.mxu0 0
    %1396 = vmatpush1.bf16.msra.mxu0 0
    %1397 = vmatprep.subr.bf16.mxu0 0
    %1398 = vmatpush1.bf16.msra.mxu0 0
    %1399 = vmatprep.subr.bf16.mxu0 0
    %1400 = vmatpush1.bf16.msra.mxu0 %v1381
    %1401 = vmatprep.subr.bf16.mxu0 0
    %1402 = vmatpush1.bf16.msra.mxu0 %v1380
    %1403 = vmatprep.subr.bf16.mxu0 0
    %1404 = vmatpush2.bf16.msra.mxu0 0
    %1405 = vmatprep.subr.bf16.mxu0 0
    %1406 = vmatpush2.bf16.msra.mxu0 0
    %1407 = vmatprep.subr.bf16.mxu0 0
    %1408 = vmatpush2.bf16.msra.mxu0 0
    %1409 = vmatprep.subr.bf16.mxu0 0
    %1410 = vmatpush2.bf16.msra.mxu0 0
    %1411 = vmatprep.subr.bf16.mxu0 0
    %1412 = vmatpush2.bf16.msra.mxu0 0
    %1413 = vmatprep.subr.bf16.mxu0 0
    %1414 = vmatpush2.bf16.msra.mxu0 0
    %1415 = vmatprep.subr.bf16.mxu0 0
    %1416 = vmatpush2.bf16.msra.mxu0 0
    %1417 = vmatprep.subr.bf16.mxu0 0
    %1418 = vmatpush2.bf16.msra.mxu0 0
    %1419 = vmatprep.mubr.bf16.mxu0 0
    %1420 = vmatmul.mubr.bf16.gmra.mxu0 %v1385
    %v1421 = vpop.f32.mrf.mxu0
    %v1422 = vadd.f32 %v1370, %v1421
    %v1423 = vpop.f32.mrf.mxu0
    %v1424 = vpop.f32.mrf.mxu0
    %v1425 = vadd.f32 %v1370, %v1424
    %v1426 = vpop.f32.mrf.mxu0
    %1427 = vdwg.mxu0
    %v1428 = vmul.f32 %v1422, 0.5
    %v1429 = vmul.f32 %v1425, 0.5
    %v1430 = vmul.f32 %v1422, 0.044715
    %v1431 = vmul.f32 %v1425, 0.044715
    %v1432 = vmul.f32 %v1430, %v1422
    %v1433 = vmul.f32 %v1431, %v1425
    %v1434 = vmul.f32 %v1432, %v1422
    %v1435 = vmul.f32 %v1433, %v1425
    %v1436 = vadd.f32 %v1422, %v1434
    %v1437 = vadd.f32 %v1425, %v1435
    %v1438 = vmul.f32 %v1436, 0.7978846
    %v1439 = vmul.f32 %v1437, 0.7978846
    %v1440 = vtanh.pop %v1438
    %v1441 = vtanh.pop %v1439
    %v1442 = vadd.f32 %v1440, 1.0
    %v1443 = vadd.f32 %v1441, 1.0
    %v1444 = vmul.f32 %v1428, %v1442
    %v1445 = vmul.f32 %v1429, %v1443
    %v1446 = vld [vmem:[%s15] sm:$0xf]
    %v1447 = vld [vmem:[%s15 + $0x4] sm:$0xf]
    %v1448 = vld [vmem:[%s15 + $0x8] sm:$0xf]
    %v1449 = vld [vmem:[%s15 + $0xc] sm:$0xf]
    %v1450 = vld [vmem:[%s15 + $0x10] sm:$0xf]
    %v1451 = vld [vmem:[%s15 + $0x14] sm:$0xf]
    %v1452 = vld [vmem:[%s15 + $0x18] sm:$0xf]
    %v1453 = vld [vmem:[%s15 + $0x1c] sm:$0xf]
    %v1454 = vpack.c.bf16 %v1445, %v1444
    %v1455 = vld [vmem:[%s16] sm:$0x1]
    %v1457 = vlaneseq
    %v1458 = vshrl.u32 %v1457, 7
    %v1459 = vsub.s32 0, %v1458
    %v1460 = vrot.slane %v1455, %v1459
    %v1470 = vunpack.c.l.b16 %v1446
    %v1471 = vunpack.c.l.b16 %v1447
    %v1472 = vunpack.c.l.b16 %v1448
    %v1473 = vunpack.c.l.b16 %v1449
    %v1474 = vunpack.c.l.b16 %v1450
    %v1475 = vunpack.c.l.b16 %v1451
    %v1476 = vunpack.c.l.b16 %v1452
    %v1477 = vunpack.c.l.b16 %v1453
    %v1478 = vpack.c.b16 %v1471, %v1470
    %v1479 = vpack.c.b16 %v1473, %v1472
    %v1480 = vpack.c.b16 %v1475, %v1474
    %v1481 = vpack.c.b16 %v1477, %v1476
    %vm1486 = vcmask 523264
    %v1488 = vsel %vm1486, %v1454, 0
    %1490 = vmatprep.subr.bf16.mxu0 0
    %1491 = vmatpush1.bf16.msra.mxu0 0
    %1492 = vmatprep.subr.bf16.mxu0 0
    %1493 = vmatpush1.bf16.msra.mxu0 0
    %1494 = vmatprep.subr.bf16.mxu0 0
    %1495 = vmatpush1.bf16.msra.mxu0 0
    %1496 = vmatprep.subr.bf16.mxu0 0
    %1497 = vmatpush1.bf16.msra.mxu0 0
    %1498 = vmatprep.subr.bf16.mxu0 0
    %1499 = vmatpush1.bf16.msra.mxu0 %v1481
    %1500 = vmatprep.subr.bf16.mxu0 0
    %1501 = vmatpush1.bf16.msra.mxu0 %v1480
    %1502 = vmatprep.subr.bf16.mxu0 0
    %1503 = vmatpush1.bf16.msra.mxu0 %v1479
    %1504 = vmatprep.subr.bf16.mxu0 0
    %1505 = vmatpush1.bf16.msra.mxu0 %v1478
    %1506 = vmatprep.subr.bf16.mxu0 0
    %1507 = vmatpush2.bf16.msra.mxu0 0
    %1508 = vmatprep.subr.bf16.mxu0 0
    %1509 = vmatpush2.bf16.msra.mxu0 0
    %1510 = vmatprep.subr.bf16.mxu0 0
    %1511 = vmatpush2.bf16.msra.mxu0 0
    %1512 = vmatprep.subr.bf16.mxu0 0
    %1513 = vmatpush2.bf16.msra.mxu0 0
    %1514 = vmatprep.subr.bf16.mxu0 0
    %1515 = vmatpush2.bf16.msra.mxu0 0
    %1516 = vmatprep.subr.bf16.mxu0 0
    %1517 = vmatpush2.bf16.msra.mxu0 0
    %1518 = vmatprep.subr.bf16.mxu0 0
    %1519 = vmatpush2.bf16.msra.mxu0 0
    %1520 = vmatprep.subr.bf16.mxu0 0
    %1521 = vmatpush2.bf16.msra.mxu0 0
    %1522 = vmatprep.mubr.bf16.mxu0 0
    %1523 = vmatmul.mubr.bf16.gmra.mxu0 %v1488
    %v1524 = vpop.f32.mrf.mxu0
    %v1525 = vadd.f32 %v1460, %v1524
    %v1526 = vpop.f32.mrf.mxu0
    %v1527 = vpop.f32.mrf.mxu0
    %v1528 = vadd.f32 %v1460, %v1527
    %v1529 = vpop.f32.mrf.mxu0
    %1530 = vdwg.mxu0
    %v1531 = vadd.f32 %v1358, %v1525
    %v1532 = vadd.f32 %v1359, %v1528
    %v1533 = vld [vmem:[%s17] sm:$0x1]
    %v1534 = vld [vmem:[%s18] sm:$0x1]
    %v1535 = vsel %vm193, %v1531, 0.0
    %1536 = vadd.xlane.f32.xlu0 %v1535
    %v1537 = vpop.xlane.xlu0 %1536
    %v1538 = vsel %vm193, %v1532, 0.0
    %1539 = vadd.xlane.f32.xlu0 %v1538
    %v1540 = vpop.xlane.xlu0 %1539
    %v1541 = vmul.f32 %v1537, %v200
    %v1542 = vmul.f32 %v1540, %v200
    %v1543 = vsub.f32 %v1531, %v1541
    %v1544 = vsub.f32 %v1532, %v1542
    %v1545 = vmul.f32 %v1543, %v1543
    %v1546 = vmul.f32 %v1544, %v1544
    %v1547 = vsel %vm193, %v1545, 0.0
    %1548 = vadd.xlane.f32.xlu0 %v1547
    %v1549 = vpop.xlane.xlu0 %1548
    %v1550 = vsel %vm193, %v1546, 0.0
    %1551 = vadd.xlane.f32.xlu0 %v1550
    %v1552 = vpop.xlane.xlu0 %1551
    %v1553 = vmul.f32 %v1549, %v200
    %v1554 = vmul.f32 %v1552, %v200
    %v1555 = vadd.f32 %v1553, 1e-12
    %v1556 = vadd.f32 %v1554, 1e-12
    %v1557 = vrsqrt.pop %v1555
    %v1558 = vrsqrt.pop %v1556
    %v1559 = vmul.f32 %v1543, %v1557
    %v1560 = vmul.f32 %v1544, %v1558
    %v1562 = vlaneseq
    %v1563 = vshrl.u32 %v1562, 7
    %v1564 = vsub.s32 0, %v1563
    %v1565 = vrot.slane %v1533, %v1564
    %v1567 = vmul.f32 %v1559, %v1565
    %v1568 = vmul.f32 %v1560, %v1565
    %v1570 = vlaneseq
    %v1571 = vshrl.u32 %v1570, 7
    %v1572 = vsub.s32 0, %v1571
    %v1573 = vrot.slane %v1534, %v1572
    %v1575 = vadd.f32 %v1567, %v1573
    %v1576 = vadd.f32 %v1568, %v1573
    %s1577 = scalar_lea.vmem %s7, 16
    %v1578 = vld [vmem:[%s1577] sm:$0xf]
    %v1579 = vld [vmem:[%s1577 + $0x4] sm:$0xf]
    %v1580 = vld [vmem:[%s1577 + $0x8] sm:$0xf]
    %v1581 = vld [vmem:[%s1577 + $0xc] sm:$0xf]
    %v1582 = vpack.c.bf16 %v1576, %v1575
    %s1583 = scalar_lea.vmem %s8, 1
    %v1584 = vld [vmem:[%s1583] sm:$0x1]
    %v1586 = vlaneseq
    %v1587 = vshrl.u32 %v1586, 7
    %v1588 = vsub.s32 0, %v1587
    %v1589 = vrot.slane %v1584, %v1588
    %v1595 = vunpack.c.l.b16 %v1578
    %v1596 = vunpack.c.l.b16 %v1579
    %v1597 = vunpack.c.l.b16 %v1580
    %v1598 = vunpack.c.l.b16 %v1581
    %v1599 = vpack.c.b16 %v1596, %v1595
    %v1600 = vpack.c.b16 %v1598, %v1597
    %v1604 = vsel %vm193, %v1582, 0
    %1606 = vmatprep.subr.bf16.mxu0 0
    %1607 = vmatpush1.bf16.msra.mxu0 0
    %1608 = vmatprep.subr.bf16.mxu0 0
    %1609 = vmatpush1.bf16.msra.mxu0 0
    %1610 = vmatprep.subr.bf16.mxu0 0
    %1611 = vmatpush1.bf16.msra.mxu0 0
    %1612 = vmatprep.subr.bf16.mxu0 0
    %1613 = vmatpush1.bf16.msra.mxu0 0
    %1614 = vmatprep.subr.bf16.mxu0 0
    %1615 = vmatpush1.bf16.msra.mxu0 0
    %1616 = vmatprep.subr.bf16.mxu0 0
    %1617 = vmatpush1.bf16.msra.mxu0 0
    %1618 = vmatprep.subr.bf16.mxu0 0
    %1619 = vmatpush1.bf16.msra.mxu0 %v1600
    %1620 = vmatprep.subr.bf16.mxu0 0
    %1621 = vmatpush1.bf16.msra.mxu0 %v1599
    %1622 = vmatprep.subr.bf16.mxu0 0
    %1623 = vmatpush2.bf16.msra.mxu0 0
    %1624 = vmatprep.subr.bf16.mxu0 0
    %1625 = vmatpush2.bf16.msra.mxu0 0
    %1626 = vmatprep.subr.bf16.mxu0 0
    %1627 = vmatpush2.bf16.msra.mxu0 0
    %1628 = vmatprep.subr.bf16.mxu0 0
    %1629 = vmatpush2.bf16.msra.mxu0 0
    %1630 = vmatprep.subr.bf16.mxu0 0
    %1631 = vmatpush2.bf16.msra.mxu0 0
    %1632 = vmatprep.subr.bf16.mxu0 0
    %1633 = vmatpush2.bf16.msra.mxu0 0
    %1634 = vmatprep.subr.bf16.mxu0 0
    %1635 = vmatpush2.bf16.msra.mxu0 0
    %1636 = vmatprep.subr.bf16.mxu0 0
    %1637 = vmatpush2.bf16.msra.mxu0 0
    %1638 = vmatprep.mubr.bf16.mxu0 0
    %1639 = vmatmul.mubr.bf16.gmra.mxu0 %v1604
    %v1640 = vpop.f32.mrf.mxu0
    %v1641 = vadd.f32 %v1589, %v1640
    %v1642 = vpop.f32.mrf.mxu0
    %v1643 = vpop.f32.mrf.mxu0
    %v1644 = vadd.f32 %v1589, %v1643
    %v1645 = vpop.f32.mrf.mxu0
    %1646 = vdwg.mxu0
    %v1647 = vpack.c.bf16 %v1641, %v1641
    %1649 = vrot.lane.b32.xlu0 %v1647, 96
    %v1650 = vpop.permute.xlu0 %1649
    %v1652 = vsel %vm312, %v1647, 0
    %v1655 = vsel %vm312, %v1650, 0
    %1657 = vmatprep.subr.bf16.mxu0 0
    %1658 = vmatpush1.bf16.xpose.msra.mxu0 0
    %1659 = vmatprep.subr.bf16.mxu0 0
    %1660 = vmatpush1.bf16.xpose.msra.mxu0 0
    %1661 = vmatprep.subr.bf16.mxu0 0
    %1662 = vmatpush1.bf16.xpose.msra.mxu0 0
    %1663 = vmatprep.subr.bf16.mxu0 0
    %1664 = vmatpush1.bf16.xpose.msra.mxu0 0
    %1665 = vmatprep.subr.bf16.mxu0 0
    %1666 = vmatpush1.bf16.xpose.msra.mxu0 0
    %1667 = vmatprep.subr.bf16.mxu0 0
    %1668 = vmatpush1.bf16.xpose.msra.mxu0 0
    %1669 = vmatprep.subr.bf16.mxu0 0
    %1670 = vmatpush1.bf16.xpose.msra.mxu0 0
    %1671 = vmatprep.subr.bf16.mxu0 0
    %1672 = vmatpush1.bf16.xpose.msra.mxu0 %v1655
    %1673 = vmatprep.subr.bf16.mxu0 0
    %1674 = vmatpush2.bf16.xpose.msra.mxu0 0
    %1675 = vmatprep.subr.bf16.mxu0 0
    %1676 = vmatpush2.bf16.xpose.msra.mxu0 0
    %1677 = vmatprep.subr.bf16.mxu0 0
    %1678 = vmatpush2.bf16.xpose.msra.mxu0 0
    %1679 = vmatprep.subr.bf16.mxu0 0
    %1680 = vmatpush2.bf16.xpose.msra.mxu0 0
    %1681 = vmatprep.subr.bf16.mxu0 0
    %1682 = vmatpush2.bf16.xpose.msra.mxu0 0
    %1683 = vmatprep.subr.bf16.mxu0 0
    %1684 = vmatpush2.bf16.xpose.msra.mxu0 0
    %1685 = vmatprep.subr.bf16.mxu0 0
    %1686 = vmatpush2.bf16.xpose.msra.mxu0 0
    %1687 = vmatprep.subr.bf16.mxu0 0
    %1688 = vmatpush2.bf16.xpose.msra.mxu0 0
    %1689 = vmatprep.mubr.bf16.mxu0 0
    %1690 = vmatmul.mubr.bf16.gmra.mxu0 %v1652
    %v1691 = vpop.f32.mrf.mxu0
    %v1692 = vadd.f32 0.0, %v1691
    %v1693 = vpop.f32.mrf.mxu0
    %v1694 = vpop.f32.mrf.mxu0
    %v1695 = vpop.f32.mrf.mxu0
    %1696 = vdwg.mxu0
    %v1697 = vmul.f32 %v1692, 0.35355338
    %v1698 = vadd.f32 %v1697, %v363
    %v1699 = vsel %vm312, %v1698, -inf
    %1700 = vmax.xlane.f32.xlu0 %v1699
    %v1701 = vpop.xlane.xlu0 %1700
    %v1702 = vsub.f32 %v1698, %v1701
    %v1703 = vmul.f32 %v1702, 1.442695
    %v1704 = vpow.pop %v1703
    %v1705 = vsel %vm312, %v1704, 0.0
    %1706 = vadd.xlane.f32.xlu0 %v1705
    %v1707 = vpop.xlane.xlu0 %1706
    %v1708 = vrcp.pop %v1707
    %v1709 = vmul.f32 %v1704, %v1708
    %v1710 = vpack.c.bf16 %v1709, %v1709
    %1711 = vrot.lane.b32.xlu0 %v1647, 64
    %v1712 = vpop.permute.xlu0 %1711
    %v1714 = vsel %vm312, %v1710, 0
    %v1717 = vsel %vm382, %v1712, 0
    %1719 = vmatprep.subr.bf16.mxu0 0
    %1720 = vmatpush1.bf16.msra.mxu0 0
    %1721 = vmatprep.subr.bf16.mxu0 0
    %1722 = vmatpush1.bf16.msra.mxu0 0
    %1723 = vmatprep.subr.bf16.mxu0 0
    %1724 = vmatpush1.bf16.msra.mxu0 0
    %1725 = vmatprep.subr.bf16.mxu0 0
    %1726 = vmatpush1.bf16.msra.mxu0 0
    %1727 = vmatprep.subr.bf16.mxu0 0
    %1728 = vmatpush1.bf16.msra.mxu0 0
    %1729 = vmatprep.subr.bf16.mxu0 0
    %1730 = vmatpush1.bf16.msra.mxu0 0
    %1731 = vmatprep.subr.bf16.mxu0 0
    %1732 = vmatpush1.bf16.msra.mxu0 0
    %1733 = vmatprep.subr.bf16.mxu0 0
    %1734 = vmatpush1.bf16.msra.mxu0 %v1717
    %1735 = vmatprep.subr.bf16.mxu0 0
    %1736 = vmatpush2.bf16.msra.mxu0 0
    %1737 = vmatprep.subr.bf16.mxu0 0
    %1738 = vmatpush2.bf16.msra.mxu0 0
    %1739 = vmatprep.subr.bf16.mxu0 0
    %1740 = vmatpush2.bf16.msra.mxu0 0
    %1741 = vmatprep.subr.bf16.mxu0 0
    %1742 = vmatpush2.bf16.msra.mxu0 0
    %1743 = vmatprep.subr.bf16.mxu0 0
    %1744 = vmatpush2.bf16.msra.mxu0 0
    %1745 = vmatprep.subr.bf16.mxu0 0
    %1746 = vmatpush2.bf16.msra.mxu0 0
    %1747 = vmatprep.subr.bf16.mxu0 0
    %1748 = vmatpush2.bf16.msra.mxu0 0
    %1749 = vmatprep.subr.bf16.mxu0 0
    %1750 = vmatpush2.bf16.msra.mxu0 0
    %1751 = vmatprep.mubr.bf16.mxu0 0
    %1752 = vmatmul.mubr.bf16.gmra.mxu0 %v1714
    %v1753 = vpop.f32.mrf.mxu0
    %v1754 = vadd.f32 0.0, %v1753
    %v1755 = vpop.f32.mrf.mxu0
    %v1756 = vpop.f32.mrf.mxu0
    %v1757 = vpop.f32.mrf.mxu0
    %1758 = vdwg.mxu0
    %1759 = vrot.lane.b32.xlu0 %v1647, 120
    %v1760 = vpop.permute.xlu0 %1759
    %1761 = vrot.lane.b32.xlu0 %v1647, 88
    %v1762 = vpop.permute.xlu0 %1761
    %v1764 = vsel %vm312, %v1760, 0
    %v1767 = vsel %vm312, %v1762, 0
    %1769 = vmatprep.subr.bf16.mxu0 0
    %1770 = vmatpush1.bf16.xpose.msra.mxu0 0
    %1771 = vmatprep.subr.bf16.mxu0 0
    %1772 = vmatpush1.bf16.xpose.msra.mxu0 0
    %1773 = vmatprep.subr.bf16.mxu0 0
    %1774 = vmatpush1.bf16.xpose.msra.mxu0 0
    %1775 = vmatprep.subr.bf16.mxu0 0
    %1776 = vmatpush1.bf16.xpose.msra.mxu0 0
    %1777 = vmatprep.subr.bf16.mxu0 0
    %1778 = vmatpush1.bf16.xpose.msra.mxu0 0
    %1779 = vmatprep.subr.bf16.mxu0 0
    %1780 = vmatpush1.bf16.xpose.msra.mxu0 0
    %1781 = vmatprep.subr.bf16.mxu0 0
    %1782 = vmatpush1.bf16.xpose.msra.mxu0 0
    %1783 = vmatprep.subr.bf16.mxu0 0
    %1784 = vmatpush1.bf16.xpose.msra.mxu0 %v1767
    %1785 = vmatprep.subr.bf16.mxu0 0
    %1786 = vmatpush2.bf16.xpose.msra.mxu0 0
    %1787 = vmatprep.subr.bf16.mxu0 0
    %1788 = vmatpush2.bf16.xpose.msra.mxu0 0
    %1789 = vmatprep.subr.bf16.mxu0 0
    %1790 = vmatpush2.bf16.xpose.msra.mxu0 0
    %1791 = vmatprep.subr.bf16.mxu0 0
    %1792 = vmatpush2.bf16.xpose.msra.mxu0 0
    %1793 = vmatprep.subr.bf16.mxu0 0
    %1794 = vmatpush2.bf16.xpose.msra.mxu0 0
    %1795 = vmatprep.subr.bf16.mxu0 0
    %1796 = vmatpush2.bf16.xpose.msra.mxu0 0
    %1797 = vmatprep.subr.bf16.mxu0 0
    %1798 = vmatpush2.bf16.xpose.msra.mxu0 0
    %1799 = vmatprep.subr.bf16.mxu0 0
    %1800 = vmatpush2.bf16.xpose.msra.mxu0 0
    %1801 = vmatprep.mubr.bf16.mxu0 0
    %1802 = vmatmul.mubr.bf16.gmra.mxu0 %v1764
    %v1803 = vpop.f32.mrf.mxu0
    %v1804 = vadd.f32 0.0, %v1803
    %v1805 = vpop.f32.mrf.mxu0
    %v1806 = vpop.f32.mrf.mxu0
    %v1807 = vpop.f32.mrf.mxu0
    %1808 = vdwg.mxu0
    %v1809 = vmul.f32 %v1804, 0.35355338
    %v1810 = vadd.f32 %v1809, %v363
    %v1811 = vsel %vm312, %v1810, -inf
    %1812 = vmax.xlane.f32.xlu0 %v1811
    %v1813 = vpop.xlane.xlu0 %1812
    %v1814 = vsub.f32 %v1810, %v1813
    %v1815 = vmul.f32 %v1814, 1.442695
    %v1816 = vpow.pop %v1815
    %v1817 = vsel %vm312, %v1816, 0.0
    %1818 = vadd.xlane.f32.xlu0 %v1817
    %v1819 = vpop.xlane.xlu0 %1818
    %v1820 = vrcp.pop %v1819
    %v1821 = vmul.f32 %v1816, %v1820
    %v1822 = vpack.c.bf16 %v1821, %v1821
    %1823 = vrot.lane.b32.xlu0 %v1647, 56
    %v1824 = vpop.permute.xlu0 %1823
    %v1826 = vsel %vm312, %v1822, 0
    %v1829 = vsel %vm382, %v1824, 0
    %1831 = vmatprep.subr.bf16.mxu0 0
    %1832 = vmatpush1.bf16.msra.mxu0 0
    %1833 = vmatprep.subr.bf16.mxu0 0
    %1834 = vmatpush1.bf16.msra.mxu0 0
    %1835 = vmatprep.subr.bf16.mxu0 0
    %1836 = vmatpush1.bf16.msra.mxu0 0
    %1837 = vmatprep.subr.bf16.mxu0 0
    %1838 = vmatpush1.bf16.msra.mxu0 0
    %1839 = vmatprep.subr.bf16.mxu0 0
    %1840 = vmatpush1.bf16.msra.mxu0 0
    %1841 = vmatprep.subr.bf16.mxu0 0
    %1842 = vmatpush1.bf16.msra.mxu0 0
    %1843 = vmatprep.subr.bf16.mxu0 0
    %1844 = vmatpush1.bf16.msra.mxu0 0
    %1845 = vmatprep.subr.bf16.mxu0 0
    %1846 = vmatpush1.bf16.msra.mxu0 %v1829
    %1847 = vmatprep.subr.bf16.mxu0 0
    %1848 = vmatpush2.bf16.msra.mxu0 0
    %1849 = vmatprep.subr.bf16.mxu0 0
    %1850 = vmatpush2.bf16.msra.mxu0 0
    %1851 = vmatprep.subr.bf16.mxu0 0
    %1852 = vmatpush2.bf16.msra.mxu0 0
    %1853 = vmatprep.subr.bf16.mxu0 0
    %1854 = vmatpush2.bf16.msra.mxu0 0
    %1855 = vmatprep.subr.bf16.mxu0 0
    %1856 = vmatpush2.bf16.msra.mxu0 0
    %1857 = vmatprep.subr.bf16.mxu0 0
    %1858 = vmatpush2.bf16.msra.mxu0 0
    %1859 = vmatprep.subr.bf16.mxu0 0
    %1860 = vmatpush2.bf16.msra.mxu0 0
    %1861 = vmatprep.subr.bf16.mxu0 0
    %1862 = vmatpush2.bf16.msra.mxu0 0
    %1863 = vmatprep.mubr.bf16.mxu0 0
    %1864 = vmatmul.mubr.bf16.gmra.mxu0 %v1826
    %v1865 = vpop.f32.mrf.mxu0
    %v1866 = vadd.f32 0.0, %v1865
    %v1867 = vpop.f32.mrf.mxu0
    %v1868 = vpop.f32.mrf.mxu0
    %v1869 = vpop.f32.mrf.mxu0
    %1870 = vdwg.mxu0
    %1871 = vrot.lane.b32.xlu0 %v1647, 112
    %v1872 = vpop.permute.xlu0 %1871
    %1873 = vrot.lane.b32.xlu0 %v1647, 80
    %v1874 = vpop.permute.xlu0 %1873
    %v1876 = vsel %vm312, %v1872, 0
    %v1879 = vsel %vm312, %v1874, 0
    %1881 = vmatprep.subr.bf16.mxu0 0
    %1882 = vmatpush1.bf16.xpose.msra.mxu0 0
    %1883 = vmatprep.subr.bf16.mxu0 0
    %1884 = vmatpush1.bf16.xpose.msra.mxu0 0
    %1885 = vmatprep.subr.bf16.mxu0 0
    %1886 = vmatpush1.bf16.xpose.msra.mxu0 0
    %1887 = vmatprep.subr.bf16.mxu0 0
    %1888 = vmatpush1.bf16.xpose.msra.mxu0 0
    %1889 = vmatprep.subr.bf16.mxu0 0
    %1890 = vmatpush1.bf16.xpose.msra.mxu0 0
    %1891 = vmatprep.subr.bf16.mxu0 0
    %1892 = vmatpush1.bf16.xpose.msra.mxu0 0
    %1893 = vmatprep.subr.bf16.mxu0 0
    %1894 = vmatpush1.bf16.xpose.msra.mxu0 0
    %1895 = vmatprep.subr.bf16.mxu0 0
    %1896 = vmatpush1.bf16.xpose.msra.mxu0 %v1879
    %1897 = vmatprep.subr.bf16.mxu0 0
    %1898 = vmatpush2.bf16.xpose.msra.mxu0 0
    %1899 = vmatprep.subr.bf16.mxu0 0
    %1900 = vmatpush2.bf16.xpose.msra.mxu0 0
    %1901 = vmatprep.subr.bf16.mxu0 0
    %1902 = vmatpush2.bf16.xpose.msra.mxu0 0
    %1903 = vmatprep.subr.bf16.mxu0 0
    %1904 = vmatpush2.bf16.xpose.msra.mxu0 0
    %1905 = vmatprep.subr.bf16.mxu0 0
    %1906 = vmatpush2.bf16.xpose.msra.mxu0 0
    %1907 = vmatprep.subr.bf16.mxu0 0
    %1908 = vmatpush2.bf16.xpose.msra.mxu0 0
    %1909 = vmatprep.subr.bf16.mxu0 0
    %1910 = vmatpush2.bf16.xpose.msra.mxu0 0
    %1911 = vmatprep.subr.bf16.mxu0 0
    %1912 = vmatpush2.bf16.xpose.msra.mxu0 0
    %1913 = vmatprep.mubr.bf16.mxu0 0
    %1914 = vmatmul.mubr.bf16.gmra.mxu0 %v1876
    %v1915 = vpop.f32.mrf.mxu0
    %v1916 = vadd.f32 0.0, %v1915
    %v1917 = vpop.f32.mrf.mxu0
    %v1918 = vpop.f32.mrf.mxu0
    %v1919 = vpop.f32.mrf.mxu0
    %1920 = vdwg.mxu0
    %v1921 = vmul.f32 %v1916, 0.35355338
    %v1922 = vadd.f32 %v1921, %v363
    %v1923 = vsel %vm312, %v1922, -inf
    %1924 = vmax.xlane.f32.xlu0 %v1923
    %v1925 = vpop.xlane.xlu0 %1924
    %v1926 = vsub.f32 %v1922, %v1925
    %v1927 = vmul.f32 %v1926, 1.442695
    %v1928 = vpow.pop %v1927
    %v1929 = vsel %vm312, %v1928, 0.0
    %1930 = vadd.xlane.f32.xlu0 %v1929
    %v1931 = vpop.xlane.xlu0 %1930
    %v1932 = vrcp.pop %v1931
    %v1933 = vmul.f32 %v1928, %v1932
    %v1934 = vpack.c.bf16 %v1933, %v1933
    %1935 = vrot.lane.b32.xlu0 %v1647, 48
    %v1936 = vpop.permute.xlu0 %1935
    %v1938 = vsel %vm312, %v1934, 0
    %v1941 = vsel %vm382, %v1936, 0
    %1943 = vmatprep.subr.bf16.mxu0 0
    %1944 = vmatpush1.bf16.msra.mxu0 0
    %1945 = vmatprep.subr.bf16.mxu0 0
    %1946 = vmatpush1.bf16.msra.mxu0 0
    %1947 = vmatprep.subr.bf16.mxu0 0
    %1948 = vmatpush1.bf16.msra.mxu0 0
    %1949 = vmatprep.subr.bf16.mxu0 0
    %1950 = vmatpush1.bf16.msra.mxu0 0
    %1951 = vmatprep.subr.bf16.mxu0 0
    %1952 = vmatpush1.bf16.msra.mxu0 0
    %1953 = vmatprep.subr.bf16.mxu0 0
    %1954 = vmatpush1.bf16.msra.mxu0 0
    %1955 = vmatprep.subr.bf16.mxu0 0
    %1956 = vmatpush1.bf16.msra.mxu0 0
    %1957 = vmatprep.subr.bf16.mxu0 0
    %1958 = vmatpush1.bf16.msra.mxu0 %v1941
    %1959 = vmatprep.subr.bf16.mxu0 0
    %1960 = vmatpush2.bf16.msra.mxu0 0
    %1961 = vmatprep.subr.bf16.mxu0 0
    %1962 = vmatpush2.bf16.msra.mxu0 0
    %1963 = vmatprep.subr.bf16.mxu0 0
    %1964 = vmatpush2.bf16.msra.mxu0 0
    %1965 = vmatprep.subr.bf16.mxu0 0
    %1966 = vmatpush2.bf16.msra.mxu0 0
    %1967 = vmatprep.subr.bf16.mxu0 0
    %1968 = vmatpush2.bf16.msra.mxu0 0
    %1969 = vmatprep.subr.bf16.mxu0 0
    %1970 = vmatpush2.bf16.msra.mxu0 0
    %1971 = vmatprep.subr.bf16.mxu0 0
    %1972 = vmatpush2.bf16.msra.mxu0 0
    %1973 = vmatprep.subr.bf16.mxu0 0
    %1974 = vmatpush2.bf16.msra.mxu0 0
    %1975 = vmatprep.mubr.bf16.mxu0 0
    %1976 = vmatmul.mubr.bf16.gmra.mxu0 %v1938
    %v1977 = vpop.f32.mrf.mxu0
    %v1978 = vadd.f32 0.0, %v1977
    %v1979 = vpop.f32.mrf.mxu0
    %v1980 = vpop.f32.mrf.mxu0
    %v1981 = vpop.f32.mrf.mxu0
    %1982 = vdwg.mxu0
    %1983 = vrot.lane.b32.xlu0 %v1647, 104
    %v1984 = vpop.permute.xlu0 %1983
    %1985 = vrot.lane.b32.xlu0 %v1647, 72
    %v1986 = vpop.permute.xlu0 %1985
    %v1988 = vsel %vm312, %v1984, 0
    %v1991 = vsel %vm312, %v1986, 0
    %1993 = vmatprep.subr.bf16.mxu0 0
    %1994 = vmatpush1.bf16.xpose.msra.mxu0 0
    %1995 = vmatprep.subr.bf16.mxu0 0
    %1996 = vmatpush1.bf16.xpose.msra.mxu0 0
    %1997 = vmatprep.subr.bf16.mxu0 0
    %1998 = vmatpush1.bf16.xpose.msra.mxu0 0
    %1999 = vmatprep.subr.bf16.mxu0 0
    %2000 = vmatpush1.bf16.xpose.msra.mxu0 0
    %2001 = vmatprep.subr.bf16.mxu0 0
    %2002 = vmatpush1.bf16.xpose.msra.mxu0 0
    %2003 = vmatprep.subr.bf16.mxu0 0
    %2004 = vmatpush1.bf16.xpose.msra.mxu0 0
    %2005 = vmatprep.subr.bf16.mxu0 0
    %2006 = vmatpush1.bf16.xpose.msra.mxu0 0
    %2007 = vmatprep.subr.bf16.mxu0 0
    %2008 = vmatpush1.bf16.xpose.msra.mxu0 %v1991
    %2009 = vmatprep.subr.bf16.mxu0 0
    %2010 = vmatpush2.bf16.xpose.msra.mxu0 0
    %2011 = vmatprep.subr.bf16.mxu0 0
    %2012 = vmatpush2.bf16.xpose.msra.mxu0 0
    %2013 = vmatprep.subr.bf16.mxu0 0
    %2014 = vmatpush2.bf16.xpose.msra.mxu0 0
    %2015 = vmatprep.subr.bf16.mxu0 0
    %2016 = vmatpush2.bf16.xpose.msra.mxu0 0
    %2017 = vmatprep.subr.bf16.mxu0 0
    %2018 = vmatpush2.bf16.xpose.msra.mxu0 0
    %2019 = vmatprep.subr.bf16.mxu0 0
    %2020 = vmatpush2.bf16.xpose.msra.mxu0 0
    %2021 = vmatprep.subr.bf16.mxu0 0
    %2022 = vmatpush2.bf16.xpose.msra.mxu0 0
    %2023 = vmatprep.subr.bf16.mxu0 0
    %2024 = vmatpush2.bf16.xpose.msra.mxu0 0
    %2025 = vmatprep.mubr.bf16.mxu0 0
    %2026 = vmatmul.mubr.bf16.gmra.mxu0 %v1988
    %v2027 = vpop.f32.mrf.mxu0
    %v2028 = vadd.f32 0.0, %v2027
    %v2029 = vpop.f32.mrf.mxu0
    %v2030 = vpop.f32.mrf.mxu0
    %v2031 = vpop.f32.mrf.mxu0
    %2032 = vdwg.mxu0
    %v2033 = vmul.f32 %v2028, 0.35355338
    %v2034 = vadd.f32 %v2033, %v363
    %v2035 = vsel %vm312, %v2034, -inf
    %2036 = vmax.xlane.f32.xlu0 %v2035
    %v2037 = vpop.xlane.xlu0 %2036
    %v2038 = vsub.f32 %v2034, %v2037
    %v2039 = vmul.f32 %v2038, 1.442695
    %v2040 = vpow.pop %v2039
    %v2041 = vsel %vm312, %v2040, 0.0
    %2042 = vadd.xlane.f32.xlu0 %v2041
    %v2043 = vpop.xlane.xlu0 %2042
    %v2044 = vrcp.pop %v2043
    %v2045 = vmul.f32 %v2040, %v2044
    %v2046 = vpack.c.bf16 %v2045, %v2045
    %2047 = vrot.lane.b32.xlu0 %v1647, 40
    %v2048 = vpop.permute.xlu0 %2047
    %v2050 = vsel %vm312, %v2046, 0
    %v2053 = vsel %vm382, %v2048, 0
    %2055 = vmatprep.subr.bf16.mxu0 0
    %2056 = vmatpush1.bf16.msra.mxu0 0
    %2057 = vmatprep.subr.bf16.mxu0 0
    %2058 = vmatpush1.bf16.msra.mxu0 0
    %2059 = vmatprep.subr.bf16.mxu0 0
    %2060 = vmatpush1.bf16.msra.mxu0 0
    %2061 = vmatprep.subr.bf16.mxu0 0
    %2062 = vmatpush1.bf16.msra.mxu0 0
    %2063 = vmatprep.subr.bf16.mxu0 0
    %2064 = vmatpush1.bf16.msra.mxu0 0
    %2065 = vmatprep.subr.bf16.mxu0 0
    %2066 = vmatpush1.bf16.msra.mxu0 0
    %2067 = vmatprep.subr.bf16.mxu0 0
    %2068 = vmatpush1.bf16.msra.mxu0 0
    %2069 = vmatprep.subr.bf16.mxu0 0
    %2070 = vmatpush1.bf16.msra.mxu0 %v2053
    %2071 = vmatprep.subr.bf16.mxu0 0
    %2072 = vmatpush2.bf16.msra.mxu0 0
    %2073 = vmatprep.subr.bf16.mxu0 0
    %2074 = vmatpush2.bf16.msra.mxu0 0
    %2075 = vmatprep.subr.bf16.mxu0 0
    %2076 = vmatpush2.bf16.msra.mxu0 0
    %2077 = vmatprep.subr.bf16.mxu0 0
    %2078 = vmatpush2.bf16.msra.mxu0 0
    %2079 = vmatprep.subr.bf16.mxu0 0
    %2080 = vmatpush2.bf16.msra.mxu0 0
    %2081 = vmatprep.subr.bf16.mxu0 0
    %2082 = vmatpush2.bf16.msra.mxu0 0
    %2083 = vmatprep.subr.bf16.mxu0 0
    %2084 = vmatpush2.bf16.msra.mxu0 0
    %2085 = vmatprep.subr.bf16.mxu0 0
    %2086 = vmatpush2.bf16.msra.mxu0 0
    %2087 = vmatprep.mubr.bf16.mxu0 0
    %2088 = vmatmul.mubr.bf16.gmra.mxu0 %v2050
    %v2089 = vpop.f32.mrf.mxu0
    %v2090 = vadd.f32 0.0, %v2089
    %v2091 = vpop.f32.mrf.mxu0
    %v2092 = vpop.f32.mrf.mxu0
    %v2093 = vpop.f32.mrf.mxu0
    %2094 = vdwg.mxu0
    %2096 = vrot.lane.b32.xlu0 %v1866, 8
    %v2097 = vpop.permute.xlu0 %2096
    %2100 = vrot.lane.b32.xlu0 %v1978, 16
    %v2101 = vpop.permute.xlu0 %2100
    %2104 = vrot.lane.b32.xlu0 %v2090, 24
    %v2105 = vpop.permute.xlu0 %2104
    %v2107 = vsel %vm312, %v1754, %v2097
    %v2108 = vsel %vm775, %v2107, %v2101
    %v2109 = vsel %vm777, %v2108, %v2105
    %v2110 = vpack.c.bf16 %v1644, %v1644
    %2112 = vrot.lane.b32.xlu0 %v2110, 96
    %v2113 = vpop.permute.xlu0 %2112
    %v2115 = vsel %vm312, %v2110, 0
    %v2118 = vsel %vm312, %v2113, 0
    %2120 = vmatprep.subr.bf16.mxu0 0
    %2121 = vmatpush1.bf16.xpose.msra.mxu0 0
    %2122 = vmatprep.subr.bf16.mxu0 0
    %2123 = vmatpush1.bf16.xpose.msra.mxu0 0
    %2124 = vmatprep.subr.bf16.mxu0 0
    %2125 = vmatpush1.bf16.xpose.msra.mxu0 0
    %2126 = vmatprep.subr.bf16.mxu0 0
    %2127 = vmatpush1.bf16.xpose.msra.mxu0 0
    %2128 = vmatprep.subr.bf16.mxu0 0
    %2129 = vmatpush1.bf16.xpose.msra.mxu0 0
    %2130 = vmatprep.subr.bf16.mxu0 0
    %2131 = vmatpush1.bf16.xpose.msra.mxu0 0
    %2132 = vmatprep.subr.bf16.mxu0 0
    %2133 = vmatpush1.bf16.xpose.msra.mxu0 0
    %2134 = vmatprep.subr.bf16.mxu0 0
    %2135 = vmatpush1.bf16.xpose.msra.mxu0 %v2118
    %2136 = vmatprep.subr.bf16.mxu0 0
    %2137 = vmatpush2.bf16.xpose.msra.mxu0 0
    %2138 = vmatprep.subr.bf16.mxu0 0
    %2139 = vmatpush2.bf16.xpose.msra.mxu0 0
    %2140 = vmatprep.subr.bf16.mxu0 0
    %2141 = vmatpush2.bf16.xpose.msra.mxu0 0
    %2142 = vmatprep.subr.bf16.mxu0 0
    %2143 = vmatpush2.bf16.xpose.msra.mxu0 0
    %2144 = vmatprep.subr.bf16.mxu0 0
    %2145 = vmatpush2.bf16.xpose.msra.mxu0 0
    %2146 = vmatprep.subr.bf16.mxu0 0
    %2147 = vmatpush2.bf16.xpose.msra.mxu0 0
    %2148 = vmatprep.subr.bf16.mxu0 0
    %2149 = vmatpush2.bf16.xpose.msra.mxu0 0
    %2150 = vmatprep.subr.bf16.mxu0 0
    %2151 = vmatpush2.bf16.xpose.msra.mxu0 0
    %2152 = vmatprep.mubr.bf16.mxu0 0
    %2153 = vmatmul.mubr.bf16.gmra.mxu0 %v2115
    %v2154 = vpop.f32.mrf.mxu0
    %v2155 = vadd.f32 0.0, %v2154
    %v2156 = vpop.f32.mrf.mxu0
    %v2157 = vpop.f32.mrf.mxu0
    %v2158 = vpop.f32.mrf.mxu0
    %2159 = vdwg.mxu0
    %v2160 = vmul.f32 %v2155, 0.35355338
    %v2161 = vadd.f32 %v2160, %v833
    %v2162 = vsel %vm312, %v2161, -inf
    %2163 = vmax.xlane.f32.xlu0 %v2162
    %v2164 = vpop.xlane.xlu0 %2163
    %v2165 = vsub.f32 %v2161, %v2164
    %v2166 = vmul.f32 %v2165, 1.442695
    %v2167 = vpow.pop %v2166
    %v2168 = vsel %vm312, %v2167, 0.0
    %2169 = vadd.xlane.f32.xlu0 %v2168
    %v2170 = vpop.xlane.xlu0 %2169
    %v2171 = vrcp.pop %v2170
    %v2172 = vmul.f32 %v2167, %v2171
    %v2173 = vpack.c.bf16 %v2172, %v2172
    %2174 = vrot.lane.b32.xlu0 %v2110, 64
    %v2175 = vpop.permute.xlu0 %2174
    %v2177 = vsel %vm312, %v2173, 0
    %v2180 = vsel %vm382, %v2175, 0
    %2182 = vmatprep.subr.bf16.mxu0 0
    %2183 = vmatpush1.bf16.msra.mxu0 0
    %2184 = vmatprep.subr.bf16.mxu0 0
    %2185 = vmatpush1.bf16.msra.mxu0 0
    %2186 = vmatprep.subr.bf16.mxu0 0
    %2187 = vmatpush1.bf16.msra.mxu0 0
    %2188 = vmatprep.subr.bf16.mxu0 0
    %2189 = vmatpush1.bf16.msra.mxu0 0
    %2190 = vmatprep.subr.bf16.mxu0 0
    %2191 = vmatpush1.bf16.msra.mxu0 0
    %2192 = vmatprep.subr.bf16.mxu0 0
    %2193 = vmatpush1.bf16.msra.mxu0 0
    %2194 = vmatprep.subr.bf16.mxu0 0
    %2195 = vmatpush1.bf16.msra.mxu0 0
    %2196 = vmatprep.subr.bf16.mxu0 0
    %2197 = vmatpush1.bf16.msra.mxu0 %v2180
    %2198 = vmatprep.subr.bf16.mxu0 0
    %2199 = vmatpush2.bf16.msra.mxu0 0
    %2200 = vmatprep.subr.bf16.mxu0 0
    %2201 = vmatpush2.bf16.msra.mxu0 0
    %2202 = vmatprep.subr.bf16.mxu0 0
    %2203 = vmatpush2.bf16.msra.mxu0 0
    %2204 = vmatprep.subr.bf16.mxu0 0
    %2205 = vmatpush2.bf16.msra.mxu0 0
    %2206 = vmatprep.subr.bf16.mxu0 0
    %2207 = vmatpush2.bf16.msra.mxu0 0
    %2208 = vmatprep.subr.bf16.mxu0 0
    %2209 = vmatpush2.bf16.msra.mxu0 0
    %2210 = vmatprep.subr.bf16.mxu0 0
    %2211 = vmatpush2.bf16.msra.mxu0 0
    %2212 = vmatprep.subr.bf16.mxu0 0
    %2213 = vmatpush2.bf16.msra.mxu0 0
    %2214 = vmatprep.mubr.bf16.mxu0 0
    %2215 = vmatmul.mubr.bf16.gmra.mxu0 %v2177
    %v2216 = vpop.f32.mrf.mxu0
    %v2217 = vadd.f32 0.0, %v2216
    %v2218 = vpop.f32.mrf.mxu0
    %v2219 = vpop.f32.mrf.mxu0
    %v2220 = vpop.f32.mrf.mxu0
    %2221 = vdwg.mxu0
    %2222 = vrot.lane.b32.xlu0 %v2110, 120
    %v2223 = vpop.permute.xlu0 %2222
    %2224 = vrot.lane.b32.xlu0 %v2110, 88
    %v2225 = vpop.permute.xlu0 %2224
    %v2227 = vsel %vm312, %v2223, 0
    %v2230 = vsel %vm312, %v2225, 0
    %2232 = vmatprep.subr.bf16.mxu0 0
    %2233 = vmatpush1.bf16.xpose.msra.mxu0 0
    %2234 = vmatprep.subr.bf16.mxu0 0
    %2235 = vmatpush1.bf16.xpose.msra.mxu0 0
    %2236 = vmatprep.subr.bf16.mxu0 0
    %2237 = vmatpush1.bf16.xpose.msra.mxu0 0
    %2238 = vmatprep.subr.bf16.mxu0 0
    %2239 = vmatpush1.bf16.xpose.msra.mxu0 0
    %2240 = vmatprep.subr.bf16.mxu0 0
    %2241 = vmatpush1.bf16.xpose.msra.mxu0 0
    %2242 = vmatprep.subr.bf16.mxu0 0
    %2243 = vmatpush1.bf16.xpose.msra.mxu0 0
    %2244 = vmatprep.subr.bf16.mxu0 0
    %2245 = vmatpush1.bf16.xpose.msra.mxu0 0
    %2246 = vmatprep.subr.bf16.mxu0 0
    %2247 = vmatpush1.bf16.xpose.msra.mxu0 %v2230
    %2248 = vmatprep.subr.bf16.mxu0 0
    %2249 = vmatpush2.bf16.xpose.msra.mxu0 0
    %2250 = vmatprep.subr.bf16.mxu0 0
    %2251 = vmatpush2.bf16.xpose.msra.mxu0 0
    %2252 = vmatprep.subr.bf16.mxu0 0
    %2253 = vmatpush2.bf16.xpose.msra.mxu0 0
    %2254 = vmatprep.subr.bf16.mxu0 0
    %2255 = vmatpush2.bf16.xpose.msra.mxu0 0
    %2256 = vmatprep.subr.bf16.mxu0 0
    %2257 = vmatpush2.bf16.xpose.msra.mxu0 0
    %2258 = vmatprep.subr.bf16.mxu0 0
    %2259 = vmatpush2.bf16.xpose.msra.mxu0 0
    %2260 = vmatprep.subr.bf16.mxu0 0
    %2261 = vmatpush2.bf16.xpose.msra.mxu0 0
    %2262 = vmatprep.subr.bf16.mxu0 0
    %2263 = vmatpush2.bf16.xpose.msra.mxu0 0
    %2264 = vmatprep.mubr.bf16.mxu0 0
    %2265 = vmatmul.mubr.bf16.gmra.mxu0 %v2227
    %v2266 = vpop.f32.mrf.mxu0
    %v2267 = vadd.f32 0.0, %v2266
    %v2268 = vpop.f32.mrf.mxu0
    %v2269 = vpop.f32.mrf.mxu0
    %v2270 = vpop.f32.mrf.mxu0
    %2271 = vdwg.mxu0
    %v2272 = vmul.f32 %v2267, 0.35355338
    %v2273 = vadd.f32 %v2272, %v833
    %v2274 = vsel %vm312, %v2273, -inf
    %2275 = vmax.xlane.f32.xlu0 %v2274
    %v2276 = vpop.xlane.xlu0 %2275
    %v2277 = vsub.f32 %v2273, %v2276
    %v2278 = vmul.f32 %v2277, 1.442695
    %v2279 = vpow.pop %v2278
    %v2280 = vsel %vm312, %v2279, 0.0
    %2281 = vadd.xlane.f32.xlu0 %v2280
    %v2282 = vpop.xlane.xlu0 %2281
    %v2283 = vrcp.pop %v2282
    %v2284 = vmul.f32 %v2279, %v2283
    %v2285 = vpack.c.bf16 %v2284, %v2284
    %2286 = vrot.lane.b32.xlu0 %v2110, 56
    %v2287 = vpop.permute.xlu0 %2286
    %v2289 = vsel %vm312, %v2285, 0
    %v2292 = vsel %vm382, %v2287, 0
    %2294 = vmatprep.subr.bf16.mxu0 0
    %2295 = vmatpush1.bf16.msra.mxu0 0
    %2296 = vmatprep.subr.bf16.mxu0 0
    %2297 = vmatpush1.bf16.msra.mxu0 0
    %2298 = vmatprep.subr.bf16.mxu0 0
    %2299 = vmatpush1.bf16.msra.mxu0 0
    %2300 = vmatprep.subr.bf16.mxu0 0
    %2301 = vmatpush1.bf16.msra.mxu0 0
    %2302 = vmatprep.subr.bf16.mxu0 0
    %2303 = vmatpush1.bf16.msra.mxu0 0
    %2304 = vmatprep.subr.bf16.mxu0 0
    %2305 = vmatpush1.bf16.msra.mxu0 0
    %2306 = vmatprep.subr.bf16.mxu0 0
    %2307 = vmatpush1.bf16.msra.mxu0 0
    %2308 = vmatprep.subr.bf16.mxu0 0
    %2309 = vmatpush1.bf16.msra.mxu0 %v2292
    %2310 = vmatprep.subr.bf16.mxu0 0
    %2311 = vmatpush2.bf16.msra.mxu0 0
    %2312 = vmatprep.subr.bf16.mxu0 0
    %2313 = vmatpush2.bf16.msra.mxu0 0
    %2314 = vmatprep.subr.bf16.mxu0 0
    %2315 = vmatpush2.bf16.msra.mxu0 0
    %2316 = vmatprep.subr.bf16.mxu0 0
    %2317 = vmatpush2.bf16.msra.mxu0 0
    %2318 = vmatprep.subr.bf16.mxu0 0
    %2319 = vmatpush2.bf16.msra.mxu0 0
    %2320 = vmatprep.subr.bf16.mxu0 0
    %2321 = vmatpush2.bf16.msra.mxu0 0
    %2322 = vmatprep.subr.bf16.mxu0 0
    %2323 = vmatpush2.bf16.msra.mxu0 0
    %2324 = vmatprep.subr.bf16.mxu0 0
    %2325 = vmatpush2.bf16.msra.mxu0 0
    %2326 = vmatprep.mubr.bf16.mxu0 0
    %2327 = vmatmul.mubr.bf16.gmra.mxu0 %v2289
    %v2328 = vpop.f32.mrf.mxu0
    %v2329 = vadd.f32 0.0, %v2328
    %v2330 = vpop.f32.mrf.mxu0
    %v2331 = vpop.f32.mrf.mxu0
    %v2332 = vpop.f32.mrf.mxu0
    %2333 = vdwg.mxu0
    %2334 = vrot.lane.b32.xlu0 %v2110, 112
    %v2335 = vpop.permute.xlu0 %2334
    %2336 = vrot.lane.b32.xlu0 %v2110, 80
    %v2337 = vpop.permute.xlu0 %2336
    %v2339 = vsel %vm312, %v2335, 0
    %v2342 = vsel %vm312, %v2337, 0
    %2344 = vmatprep.subr.bf16.mxu0 0
    %2345 = vmatpush1.bf16.xpose.msra.mxu0 0
    %2346 = vmatprep.subr.bf16.mxu0 0
    %2347 = vmatpush1.bf16.xpose.msra.mxu0 0
    %2348 = vmatprep.subr.bf16.mxu0 0
    %2349 = vmatpush1.bf16.xpose.msra.mxu0 0
    %2350 = vmatprep.subr.bf16.mxu0 0
    %2351 = vmatpush1.bf16.xpose.msra.mxu0 0
    %2352 = vmatprep.subr.bf16.mxu0 0
    %2353 = vmatpush1.bf16.xpose.msra.mxu0 0
    %2354 = vmatprep.subr.bf16.mxu0 0
    %2355 = vmatpush1.bf16.xpose.msra.mxu0 0
    %2356 = vmatprep.subr.bf16.mxu0 0
    %2357 = vmatpush1.bf16.xpose.msra.mxu0 0
    %2358 = vmatprep.subr.bf16.mxu0 0
    %2359 = vmatpush1.bf16.xpose.msra.mxu0 %v2342
    %2360 = vmatprep.subr.bf16.mxu0 0
    %2361 = vmatpush2.bf16.xpose.msra.mxu0 0
    %2362 = vmatprep.subr.bf16.mxu0 0
    %2363 = vmatpush2.bf16.xpose.msra.mxu0 0
    %2364 = vmatprep.subr.bf16.mxu0 0
    %2365 = vmatpush2.bf16.xpose.msra.mxu0 0
    %2366 = vmatprep.subr.bf16.mxu0 0
    %2367 = vmatpush2.bf16.xpose.msra.mxu0 0
    %2368 = vmatprep.subr.bf16.mxu0 0
    %2369 = vmatpush2.bf16.xpose.msra.mxu0 0
    %2370 = vmatprep.subr.bf16.mxu0 0
    %2371 = vmatpush2.bf16.xpose.msra.mxu0 0
    %2372 = vmatprep.subr.bf16.mxu0 0
    %2373 = vmatpush2.bf16.xpose.msra.mxu0 0
    %2374 = vmatprep.subr.bf16.mxu0 0
    %2375 = vmatpush2.bf16.xpose.msra.mxu0 0
    %2376 = vmatprep.mubr.bf16.mxu0 0
    %2377 = vmatmul.mubr.bf16.gmra.mxu0 %v2339
    %v2378 = vpop.f32.mrf.mxu0
    %v2379 = vadd.f32 0.0, %v2378
    %v2380 = vpop.f32.mrf.mxu0
    %v2381 = vpop.f32.mrf.mxu0
    %v2382 = vpop.f32.mrf.mxu0
    %2383 = vdwg.mxu0
    %v2384 = vmul.f32 %v2379, 0.35355338
    %v2385 = vadd.f32 %v2384, %v833
    %v2386 = vsel %vm312, %v2385, -inf
    %2387 = vmax.xlane.f32.xlu0 %v2386
    %v2388 = vpop.xlane.xlu0 %2387
    %v2389 = vsub.f32 %v2385, %v2388
    %v2390 = vmul.f32 %v2389, 1.442695
    %v2391 = vpow.pop %v2390
    %v2392 = vsel %vm312, %v2391, 0.0
    %2393 = vadd.xlane.f32.xlu0 %v2392
    %v2394 = vpop.xlane.xlu0 %2393
    %v2395 = vrcp.pop %v2394
    %v2396 = vmul.f32 %v2391, %v2395
    %v2397 = vpack.c.bf16 %v2396, %v2396
    %2398 = vrot.lane.b32.xlu0 %v2110, 48
    %v2399 = vpop.permute.xlu0 %2398
    %v2401 = vsel %vm312, %v2397, 0
    %v2404 = vsel %vm382, %v2399, 0
    %2406 = vmatprep.subr.bf16.mxu0 0
    %2407 = vmatpush1.bf16.msra.mxu0 0
    %2408 = vmatprep.subr.bf16.mxu0 0
    %2409 = vmatpush1.bf16.msra.mxu0 0
    %2410 = vmatprep.subr.bf16.mxu0 0
    %2411 = vmatpush1.bf16.msra.mxu0 0
    %2412 = vmatprep.subr.bf16.mxu0 0
    %2413 = vmatpush1.bf16.msra.mxu0 0
    %2414 = vmatprep.subr.bf16.mxu0 0
    %2415 = vmatpush1.bf16.msra.mxu0 0
    %2416 = vmatprep.subr.bf16.mxu0 0
    %2417 = vmatpush1.bf16.msra.mxu0 0
    %2418 = vmatprep.subr.bf16.mxu0 0
    %2419 = vmatpush1.bf16.msra.mxu0 0
    %2420 = vmatprep.subr.bf16.mxu0 0
    %2421 = vmatpush1.bf16.msra.mxu0 %v2404
    %2422 = vmatprep.subr.bf16.mxu0 0
    %2423 = vmatpush2.bf16.msra.mxu0 0
    %2424 = vmatprep.subr.bf16.mxu0 0
    %2425 = vmatpush2.bf16.msra.mxu0 0
    %2426 = vmatprep.subr.bf16.mxu0 0
    %2427 = vmatpush2.bf16.msra.mxu0 0
    %2428 = vmatprep.subr.bf16.mxu0 0
    %2429 = vmatpush2.bf16.msra.mxu0 0
    %2430 = vmatprep.subr.bf16.mxu0 0
    %2431 = vmatpush2.bf16.msra.mxu0 0
    %2432 = vmatprep.subr.bf16.mxu0 0
    %2433 = vmatpush2.bf16.msra.mxu0 0
    %2434 = vmatprep.subr.bf16.mxu0 0
    %2435 = vmatpush2.bf16.msra.mxu0 0
    %2436 = vmatprep.subr.bf16.mxu0 0
    %2437 = vmatpush2.bf16.msra.mxu0 0
    %2438 = vmatprep.mubr.bf16.mxu0 0
    %2439 = vmatmul.mubr.bf16.gmra.mxu0 %v2401
    %v2440 = vpop.f32.mrf.mxu0
    %v2441 = vadd.f32 0.0, %v2440
    %v2442 = vpop.f32.mrf.mxu0
    %v2443 = vpop.f32.mrf.mxu0
    %v2444 = vpop.f32.mrf.mxu0
    %2445 = vdwg.mxu0
    %2446 = vrot.lane.b32.xlu0 %v2110, 104
    %v2447 = vpop.permute.xlu0 %2446
    %2448 = vrot.lane.b32.xlu0 %v2110, 72
    %v2449 = vpop.permute.xlu0 %2448
    %v2451 = vsel %vm312, %v2447, 0
    %v2454 = vsel %vm312, %v2449, 0
    %2456 = vmatprep.subr.bf16.mxu0 0
    %2457 = vmatpush1.bf16.xpose.msra.mxu0 0
    %2458 = vmatprep.subr.bf16.mxu0 0
    %2459 = vmatpush1.bf16.xpose.msra.mxu0 0
    %2460 = vmatprep.subr.bf16.mxu0 0
    %2461 = vmatpush1.bf16.xpose.msra.mxu0 0
    %2462 = vmatprep.subr.bf16.mxu0 0
    %2463 = vmatpush1.bf16.xpose.msra.mxu0 0
    %2464 = vmatprep.subr.bf16.mxu0 0
    %2465 = vmatpush1.bf16.xpose.msra.mxu0 0
    %2466 = vmatprep.subr.bf16.mxu0 0
    %2467 = vmatpush1.bf16.xpose.msra.mxu0 0
    %2468 = vmatprep.subr.bf16.mxu0 0
    %2469 = vmatpush1.bf16.xpose.msra.mxu0 0
    %2470 = vmatprep.subr.bf16.mxu0 0
    %2471 = vmatpush1.bf16.xpose.msra.mxu0 %v2454
    %2472 = vmatprep.subr.bf16.mxu0 0
    %2473 = vmatpush2.bf16.xpose.msra.mxu0 0
    %2474 = vmatprep.subr.bf16.mxu0 0
    %2475 = vmatpush2.bf16.xpose.msra.mxu0 0
    %2476 = vmatprep.subr.bf16.mxu0 0
    %2477 = vmatpush2.bf16.xpose.msra.mxu0 0
    %2478 = vmatprep.subr.bf16.mxu0 0
    %2479 = vmatpush2.bf16.xpose.msra.mxu0 0
    %2480 = vmatprep.subr.bf16.mxu0 0
    %2481 = vmatpush2.bf16.xpose.msra.mxu0 0
    %2482 = vmatprep.subr.bf16.mxu0 0
    %2483 = vmatpush2.bf16.xpose.msra.mxu0 0
    %2484 = vmatprep.subr.bf16.mxu0 0
    %2485 = vmatpush2.bf16.xpose.msra.mxu0 0
    %2486 = vmatprep.subr.bf16.mxu0 0
    %2487 = vmatpush2.bf16.xpose.msra.mxu0 0
    %2488 = vmatprep.mubr.bf16.mxu0 0
    %2489 = vmatmul.mubr.bf16.gmra.mxu0 %v2451
    %v2490 = vpop.f32.mrf.mxu0
    %v2491 = vadd.f32 0.0, %v2490
    %v2492 = vpop.f32.mrf.mxu0
    %v2493 = vpop.f32.mrf.mxu0
    %v2494 = vpop.f32.mrf.mxu0
    %2495 = vdwg.mxu0
    %v2496 = vmul.f32 %v2491, 0.35355338
    %v2497 = vadd.f32 %v2496, %v833
    %v2498 = vsel %vm312, %v2497, -inf
    %2499 = vmax.xlane.f32.xlu0 %v2498
    %v2500 = vpop.xlane.xlu0 %2499
    %v2501 = vsub.f32 %v2497, %v2500
    %v2502 = vmul.f32 %v2501, 1.442695
    %v2503 = vpow.pop %v2502
    %v2504 = vsel %vm312, %v2503, 0.0
    %2505 = vadd.xlane.f32.xlu0 %v2504
    %v2506 = vpop.xlane.xlu0 %2505
    %v2507 = vrcp.pop %v2506
    %v2508 = vmul.f32 %v2503, %v2507
    %v2509 = vpack.c.bf16 %v2508, %v2508
    %2510 = vrot.lane.b32.xlu0 %v2110, 40
    %v2511 = vpop.permute.xlu0 %2510
    %v2513 = vsel %vm312, %v2509, 0
    %v2516 = vsel %vm382, %v2511, 0
    %2518 = vmatprep.subr.bf16.mxu0 0
    %2519 = vmatpush1.bf16.msra.mxu0 0
    %2520 = vmatprep.subr.bf16.mxu0 0
    %2521 = vmatpush1.bf16.msra.mxu0 0
    %2522 = vmatprep.subr.bf16.mxu0 0
    %2523 = vmatpush1.bf16.msra.mxu0 0
    %2524 = vmatprep.subr.bf16.mxu0 0
    %2525 = vmatpush1.bf16.msra.mxu0 0
    %2526 = vmatprep.subr.bf16.mxu0 0
    %2527 = vmatpush1.bf16.msra.mxu0 0
    %2528 = vmatprep.subr.bf16.mxu0 0
    %2529 = vmatpush1.bf16.msra.mxu0 0
    %2530 = vmatprep.subr.bf16.mxu0 0
    %2531 = vmatpush1.bf16.msra.mxu0 0
    %2532 = vmatprep.subr.bf16.mxu0 0
    %2533 = vmatpush1.bf16.msra.mxu0 %v2516
    %2534 = vmatprep.subr.bf16.mxu0 0
    %2535 = vmatpush2.bf16.msra.mxu0 0
    %2536 = vmatprep.subr.bf16.mxu0 0
    %2537 = vmatpush2.bf16.msra.mxu0 0
    %2538 = vmatprep.subr.bf16.mxu0 0
    %2539 = vmatpush2.bf16.msra.mxu0 0
    %2540 = vmatprep.subr.bf16.mxu0 0
    %2541 = vmatpush2.bf16.msra.mxu0 0
    %2542 = vmatprep.subr.bf16.mxu0 0
    %2543 = vmatpush2.bf16.msra.mxu0 0
    %2544 = vmatprep.subr.bf16.mxu0 0
    %2545 = vmatpush2.bf16.msra.mxu0 0
    %2546 = vmatprep.subr.bf16.mxu0 0
    %2547 = vmatpush2.bf16.msra.mxu0 0
    %2548 = vmatprep.subr.bf16.mxu0 0
    %2549 = vmatpush2.bf16.msra.mxu0 0
    %2550 = vmatprep.mubr.bf16.mxu0 0
    %2551 = vmatmul.mubr.bf16.gmra.mxu0 %v2513
    %v2552 = vpop.f32.mrf.mxu0
    %v2553 = vadd.f32 0.0, %v2552
    %v2554 = vpop.f32.mrf.mxu0
    %v2555 = vpop.f32.mrf.mxu0
    %v2556 = vpop.f32.mrf.mxu0
    %2557 = vdwg.mxu0
    %2559 = vrot.lane.b32.xlu0 %v2329, 8
    %v2560 = vpop.permute.xlu0 %2559
    %2563 = vrot.lane.b32.xlu0 %v2441, 16
    %v2564 = vpop.permute.xlu0 %2563
    %2567 = vrot.lane.b32.xlu0 %v2553, 24
    %v2568 = vpop.permute.xlu0 %2567
    %v2570 = vsel %vm312, %v2217, %v2560
    %v2571 = vsel %vm775, %v2570, %v2564
    %v2572 = vsel %vm777, %v2571, %v2568
    %s2573 = scalar_lea.vmem %s9, 16
    %v2574 = vld [vmem:[%s2573] sm:$0xf]
    %v2575 = vld [vmem:[%s2573 + $0x4] sm:$0xf]
    %v2576 = vld [vmem:[%s2573 + $0x8] sm:$0xf]
    %v2577 = vld [vmem:[%s2573 + $0xc] sm:$0xf]
    %v2578 = vpack.c.bf16 %v2572, %v2109
    %s2579 = scalar_lea.vmem %s10, 1
    %v2580 = vld [vmem:[%s2579] sm:$0x1]
    %v2582 = vlaneseq
    %v2583 = vshrl.u32 %v2582, 7
    %v2584 = vsub.s32 0, %v2583
    %v2585 = vrot.slane %v2580, %v2584
    %v2591 = vunpack.c.l.b16 %v2574
    %v2592 = vunpack.c.l.b16 %v2575
    %v2593 = vunpack.c.l.b16 %v2576
    %v2594 = vunpack.c.l.b16 %v2577
    %v2595 = vpack.c.b16 %v2592, %v2591
    %v2596 = vpack.c.b16 %v2594, %v2593
    %v2600 = vsel %vm193, %v2578, 0
    %2602 = vmatprep.subr.bf16.mxu0 0
    %2603 = vmatpush1.bf16.msra.mxu0 0
    %2604 = vmatprep.subr.bf16.mxu0 0
    %2605 = vmatpush1.bf16.msra.mxu0 0
    %2606 = vmatprep.subr.bf16.mxu0 0
    %2607 = vmatpush1.bf16.msra.mxu0 0
    %2608 = vmatprep.subr.bf16.mxu0 0
    %2609 = vmatpush1.bf16.msra.mxu0 0
    %2610 = vmatprep.subr.bf16.mxu0 0
    %2611 = vmatpush1.bf16.msra.mxu0 0
    %2612 = vmatprep.subr.bf16.mxu0 0
    %2613 = vmatpush1.bf16.msra.mxu0 0
    %2614 = vmatprep.subr.bf16.mxu0 0
    %2615 = vmatpush1.bf16.msra.mxu0 %v2596
    %2616 = vmatprep.subr.bf16.mxu0 0
    %2617 = vmatpush1.bf16.msra.mxu0 %v2595
    %2618 = vmatprep.subr.bf16.mxu0 0
    %2619 = vmatpush2.bf16.msra.mxu0 0
    %2620 = vmatprep.subr.bf16.mxu0 0
    %2621 = vmatpush2.bf16.msra.mxu0 0
    %2622 = vmatprep.subr.bf16.mxu0 0
    %2623 = vmatpush2.bf16.msra.mxu0 0
    %2624 = vmatprep.subr.bf16.mxu0 0
    %2625 = vmatpush2.bf16.msra.mxu0 0
    %2626 = vmatprep.subr.bf16.mxu0 0
    %2627 = vmatpush2.bf16.msra.mxu0 0
    %2628 = vmatprep.subr.bf16.mxu0 0
    %2629 = vmatpush2.bf16.msra.mxu0 0
    %2630 = vmatprep.subr.bf16.mxu0 0
    %2631 = vmatpush2.bf16.msra.mxu0 0
    %2632 = vmatprep.subr.bf16.mxu0 0
    %2633 = vmatpush2.bf16.msra.mxu0 0
    %2634 = vmatprep.mubr.bf16.mxu0 0
    %2635 = vmatmul.mubr.bf16.gmra.mxu0 %v2600
    %v2636 = vpop.f32.mrf.mxu0
    %v2637 = vadd.f32 %v2585, %v2636
    %v2638 = vpop.f32.mrf.mxu0
    %v2639 = vpop.f32.mrf.mxu0
    %v2640 = vadd.f32 %v2585, %v2639
    %v2641 = vpop.f32.mrf.mxu0
    %2642 = vdwg.mxu0
    %v2643 = vadd.f32 %v1575, %v2637
    %v2644 = vadd.f32 %v1576, %v2640
    %s2645 = scalar_lea.vmem %s11, 1
    %v2646 = vld [vmem:[%s2645] sm:$0x1]
    %s2647 = scalar_lea.vmem %s12, 1
    %v2648 = vld [vmem:[%s2647] sm:$0x1]
    %v2649 = vsel %vm193, %v2643, 0.0
    %2650 = vadd.xlane.f32.xlu0 %v2649
    %v2651 = vpop.xlane.xlu0 %2650
    %v2652 = vsel %vm193, %v2644, 0.0
    %2653 = vadd.xlane.f32.xlu0 %v2652
    %v2654 = vpop.xlane.xlu0 %2653
    %v2655 = vmul.f32 %v2651, %v200
    %v2656 = vmul.f32 %v2654, %v200
    %v2657 = vsub.f32 %v2643, %v2655
    %v2658 = vsub.f32 %v2644, %v2656
    %v2659 = vmul.f32 %v2657, %v2657
    %v2660 = vmul.f32 %v2658, %v2658
    %v2661 = vsel %vm193, %v2659, 0.0
    %2662 = vadd.xlane.f32.xlu0 %v2661
    %v2663 = vpop.xlane.xlu0 %2662
    %v2664 = vsel %vm193, %v2660, 0.0
    %2665 = vadd.xlane.f32.xlu0 %v2664
    %v2666 = vpop.xlane.xlu0 %2665
    %v2667 = vmul.f32 %v2663, %v200
    %v2668 = vmul.f32 %v2666, %v200
    %v2669 = vadd.f32 %v2667, 1e-12
    %v2670 = vadd.f32 %v2668, 1e-12
    %v2671 = vrsqrt.pop %v2669
    %v2672 = vrsqrt.pop %v2670
    %v2673 = vmul.f32 %v2657, %v2671
    %v2674 = vmul.f32 %v2658, %v2672
    %v2676 = vlaneseq
    %v2677 = vshrl.u32 %v2676, 7
    %v2678 = vsub.s32 0, %v2677
    %v2679 = vrot.slane %v2646, %v2678
    %v2681 = vmul.f32 %v2673, %v2679
    %v2682 = vmul.f32 %v2674, %v2679
    %v2684 = vlaneseq
    %v2685 = vshrl.u32 %v2684, 7
    %v2686 = vsub.s32 0, %v2685
    %v2687 = vrot.slane %v2648, %v2686
    %v2689 = vadd.f32 %v2681, %v2687
    %v2690 = vadd.f32 %v2682, %v2687
    %s2691 = scalar_lea.vmem %s13, 16
    %v2692 = vld [vmem:[%s2691] sm:$0xf]
    %v2693 = vld [vmem:[%s2691 + $0x4] sm:$0xf]
    %v2694 = vld [vmem:[%s2691 + $0x8] sm:$0xf]
    %v2695 = vld [vmem:[%s2691 + $0xc] sm:$0xf]
    %v2696 = vpack.c.bf16 %v2690, %v2689
    %s2697 = scalar_lea.vmem %s14, 1
    %v2698 = vld [vmem:[%s2697] sm:$0x1]
    %v2700 = vlaneseq
    %v2701 = vshrl.u32 %v2700, 7
    %v2702 = vsub.s32 0, %v2701
    %v2703 = vrot.slane %v2698, %v2702
    %v2709 = vunpack.c.l.b16 %v2692
    %v2710 = vunpack.c.l.b16 %v2693
    %v2711 = vunpack.c.l.b16 %v2694
    %v2712 = vunpack.c.l.b16 %v2695
    %v2713 = vpack.c.b16 %v2710, %v2709
    %v2714 = vpack.c.b16 %v2712, %v2711
    %v2718 = vsel %vm193, %v2696, 0
    %2720 = vmatprep.subr.bf16.mxu0 0
    %2721 = vmatpush1.bf16.msra.mxu0 0
    %2722 = vmatprep.subr.bf16.mxu0 0
    %2723 = vmatpush1.bf16.msra.mxu0 0
    %2724 = vmatprep.subr.bf16.mxu0 0
    %2725 = vmatpush1.bf16.msra.mxu0 0
    %2726 = vmatprep.subr.bf16.mxu0 0
    %2727 = vmatpush1.bf16.msra.mxu0 0
    %2728 = vmatprep.subr.bf16.mxu0 0
    %2729 = vmatpush1.bf16.msra.mxu0 0
    %2730 = vmatprep.subr.bf16.mxu0 0
    %2731 = vmatpush1.bf16.msra.mxu0 0
    %2732 = vmatprep.subr.bf16.mxu0 0
    %2733 = vmatpush1.bf16.msra.mxu0 %v2714
    %2734 = vmatprep.subr.bf16.mxu0 0
    %2735 = vmatpush1.bf16.msra.mxu0 %v2713
    %2736 = vmatprep.subr.bf16.mxu0 0
    %2737 = vmatpush2.bf16.msra.mxu0 0
    %2738 = vmatprep.subr.bf16.mxu0 0
    %2739 = vmatpush2.bf16.msra.mxu0 0
    %2740 = vmatprep.subr.bf16.mxu0 0
    %2741 = vmatpush2.bf16.msra.mxu0 0
    %2742 = vmatprep.subr.bf16.mxu0 0
    %2743 = vmatpush2.bf16.msra.mxu0 0
    %2744 = vmatprep.subr.bf16.mxu0 0
    %2745 = vmatpush2.bf16.msra.mxu0 0
    %2746 = vmatprep.subr.bf16.mxu0 0
    %2747 = vmatpush2.bf16.msra.mxu0 0
    %2748 = vmatprep.subr.bf16.mxu0 0
    %2749 = vmatpush2.bf16.msra.mxu0 0
    %2750 = vmatprep.subr.bf16.mxu0 0
    %2751 = vmatpush2.bf16.msra.mxu0 0
    %2752 = vmatprep.mubr.bf16.mxu0 0
    %2753 = vmatmul.mubr.bf16.gmra.mxu0 %v2718
    %v2754 = vpop.f32.mrf.mxu0
    %v2755 = vadd.f32 %v2703, %v2754
    %v2756 = vpop.f32.mrf.mxu0
    %v2757 = vpop.f32.mrf.mxu0
    %v2758 = vadd.f32 %v2703, %v2757
    %v2759 = vpop.f32.mrf.mxu0
    %2760 = vdwg.mxu0
    %v2761 = vmul.f32 %v2755, 0.5
    %v2762 = vmul.f32 %v2758, 0.5
    %v2763 = vmul.f32 %v2755, 0.044715
    %v2764 = vmul.f32 %v2758, 0.044715
    %v2765 = vmul.f32 %v2763, %v2755
    %v2766 = vmul.f32 %v2764, %v2758
    %v2767 = vmul.f32 %v2765, %v2755
    %v2768 = vmul.f32 %v2766, %v2758
    %v2769 = vadd.f32 %v2755, %v2767
    %v2770 = vadd.f32 %v2758, %v2768
    %v2771 = vmul.f32 %v2769, 0.7978846
    %v2772 = vmul.f32 %v2770, 0.7978846
    %v2773 = vtanh.pop %v2771
    %v2774 = vtanh.pop %v2772
    %v2775 = vadd.f32 %v2773, 1.0
    %v2776 = vadd.f32 %v2774, 1.0
    %v2777 = vmul.f32 %v2761, %v2775
    %v2778 = vmul.f32 %v2762, %v2776
    %s2779 = scalar_lea.vmem %s15, 32
    %v2780 = vld [vmem:[%s2779] sm:$0xf]
    %v2781 = vld [vmem:[%s2779 + $0x4] sm:$0xf]
    %v2782 = vld [vmem:[%s2779 + $0x8] sm:$0xf]
    %v2783 = vld [vmem:[%s2779 + $0xc] sm:$0xf]
    %v2784 = vld [vmem:[%s2779 + $0x10] sm:$0xf]
    %v2785 = vld [vmem:[%s2779 + $0x14] sm:$0xf]
    %v2786 = vld [vmem:[%s2779 + $0x18] sm:$0xf]
    %v2787 = vld [vmem:[%s2779 + $0x1c] sm:$0xf]
    %v2788 = vpack.c.bf16 %v2778, %v2777
    %s2789 = scalar_lea.vmem %s16, 1
    %v2790 = vld [vmem:[%s2789] sm:$0x1]
    %v2792 = vlaneseq
    %v2793 = vshrl.u32 %v2792, 7
    %v2794 = vsub.s32 0, %v2793
    %v2795 = vrot.slane %v2790, %v2794
    %v2805 = vunpack.c.l.b16 %v2780
    %v2806 = vunpack.c.l.b16 %v2781
    %v2807 = vunpack.c.l.b16 %v2782
    %v2808 = vunpack.c.l.b16 %v2783
    %v2809 = vunpack.c.l.b16 %v2784
    %v2810 = vunpack.c.l.b16 %v2785
    %v2811 = vunpack.c.l.b16 %v2786
    %v2812 = vunpack.c.l.b16 %v2787
    %v2813 = vpack.c.b16 %v2806, %v2805
    %v2814 = vpack.c.b16 %v2808, %v2807
    %v2815 = vpack.c.b16 %v2810, %v2809
    %v2816 = vpack.c.b16 %v2812, %v2811
    %v2822 = vsel %vm1486, %v2788, 0
    %2824 = vmatprep.subr.bf16.mxu0 0
    %2825 = vmatpush1.bf16.msra.mxu0 0
    %2826 = vmatprep.subr.bf16.mxu0 0
    %2827 = vmatpush1.bf16.msra.mxu0 0
    %2828 = vmatprep.subr.bf16.mxu0 0
    %2829 = vmatpush1.bf16.msra.mxu0 0
    %2830 = vmatprep.subr.bf16.mxu0 0
    %2831 = vmatpush1.bf16.msra.mxu0 0
    %2832 = vmatprep.subr.bf16.mxu0 0
    %2833 = vmatpush1.bf16.msra.mxu0 %v2816
    %2834 = vmatprep.subr.bf16.mxu0 0
    %2835 = vmatpush1.bf16.msra.mxu0 %v2815
    %2836 = vmatprep.subr.bf16.mxu0 0
    %2837 = vmatpush1.bf16.msra.mxu0 %v2814
    %2838 = vmatprep.subr.bf16.mxu0 0
    %2839 = vmatpush1.bf16.msra.mxu0 %v2813
    %2840 = vmatprep.subr.bf16.mxu0 0
    %2841 = vmatpush2.bf16.msra.mxu0 0
    %2842 = vmatprep.subr.bf16.mxu0 0
    %2843 = vmatpush2.bf16.msra.mxu0 0
    %2844 = vmatprep.subr.bf16.mxu0 0
    %2845 = vmatpush2.bf16.msra.mxu0 0
    %2846 = vmatprep.subr.bf16.mxu0 0
    %2847 = vmatpush2.bf16.msra.mxu0 0
    %2848 = vmatprep.subr.bf16.mxu0 0
    %2849 = vmatpush2.bf16.msra.mxu0 0
    %2850 = vmatprep.subr.bf16.mxu0 0
    %2851 = vmatpush2.bf16.msra.mxu0 0
    %2852 = vmatprep.subr.bf16.mxu0 0
    %2853 = vmatpush2.bf16.msra.mxu0 0
    %2854 = vmatprep.subr.bf16.mxu0 0
    %2855 = vmatpush2.bf16.msra.mxu0 0
    %2856 = vmatprep.mubr.bf16.mxu0 0
    %2857 = vmatmul.mubr.bf16.gmra.mxu0 %v2822
    %v2858 = vpop.f32.mrf.mxu0
    %v2859 = vadd.f32 %v2795, %v2858
    %v2860 = vpop.f32.mrf.mxu0
    %v2861 = vpop.f32.mrf.mxu0
    %v2862 = vadd.f32 %v2795, %v2861
    %v2863 = vpop.f32.mrf.mxu0
    %2864 = vdwg.mxu0
    %v2865 = vadd.f32 %v2689, %v2859
    %v2866 = vadd.f32 %v2690, %v2862
    %s2867 = scalar_lea.vmem %s17, 1
    %v2868 = vld [vmem:[%s2867] sm:$0x1]
    %s2869 = scalar_lea.vmem %s18, 1
    %v2870 = vld [vmem:[%s2869] sm:$0x1]
    %v2871 = vsel %vm193, %v2865, 0.0
    %2872 = vadd.xlane.f32.xlu0 %v2871
    %v2873 = vpop.xlane.xlu0 %2872
    %v2874 = vsel %vm193, %v2866, 0.0
    %2875 = vadd.xlane.f32.xlu0 %v2874
    %v2876 = vpop.xlane.xlu0 %2875
    %v2877 = vmul.f32 %v2873, %v200
    %v2878 = vmul.f32 %v2876, %v200
    %v2879 = vsub.f32 %v2865, %v2877
    %v2880 = vsub.f32 %v2866, %v2878
    %v2881 = vmul.f32 %v2879, %v2879
    %v2882 = vmul.f32 %v2880, %v2880
    %v2883 = vsel %vm193, %v2881, 0.0
    %2884 = vadd.xlane.f32.xlu0 %v2883
    %v2885 = vpop.xlane.xlu0 %2884
    %v2886 = vsel %vm193, %v2882, 0.0
    %2887 = vadd.xlane.f32.xlu0 %v2886
    %v2888 = vpop.xlane.xlu0 %2887
    %v2889 = vmul.f32 %v2885, %v200
    %v2890 = vmul.f32 %v2888, %v200
    %v2891 = vadd.f32 %v2889, 1e-12
    %v2892 = vadd.f32 %v2890, 1e-12
    %v2893 = vrsqrt.pop %v2891
    %v2894 = vrsqrt.pop %v2892
    %v2895 = vmul.f32 %v2879, %v2893
    %v2896 = vmul.f32 %v2880, %v2894
    %v2898 = vlaneseq
    %v2899 = vshrl.u32 %v2898, 7
    %v2900 = vsub.s32 0, %v2899
    %v2901 = vrot.slane %v2868, %v2900
    %v2903 = vmul.f32 %v2895, %v2901
    %v2904 = vmul.f32 %v2896, %v2901
    %v2906 = vlaneseq
    %v2907 = vshrl.u32 %v2906, 7
    %v2908 = vsub.s32 0, %v2907
    %v2909 = vrot.slane %v2870, %v2908
    %v2911 = vadd.f32 %v2903, %v2909
    %v2912 = vadd.f32 %v2904, %v2909
    %v2913 = vld [vmem:[%s2] sm:$0x3]
    %v2915 = vsel %vm775, %v2913, 0
    %2917 = vmatprep.subr.mxu0 0.0
    %2918 = vmatpush1.msra.mxu0 0.0
    %2919 = vmatprep.subr.mxu0 0.0
    %2920 = vmatpush1.msra.mxu0 0.0
    %2921 = vmatprep.subr.mxu0 0.0
    %2922 = vmatpush1.msra.mxu0 0.0
    %2923 = vmatprep.subr.mxu0 0.0
    %2924 = vmatpush1.msra.mxu0 0.0
    %2925 = vmatprep.subr.mxu0 0.0
    %2926 = vmatpush1.msra.mxu0 0.0
    %2927 = vmatprep.subr.mxu0 0.0
    %2928 = vmatpush1.msra.mxu0 0.0
    %2929 = vmatprep.subr.mxu0 0.0
    %2930 = vmatpush1.msra.mxu0 0.0
    %2931 = vmatprep.subr.mxu0 0.0
    %2932 = vmatpush1.msra.mxu0 0.0
    %2933 = vmatprep.subr.mxu0 0.0
    %2934 = vmatpush1.msra.mxu0 0.0
    %2935 = vmatprep.subr.mxu0 0.0
    %2936 = vmatpush1.msra.mxu0 0.0
    %2937 = vmatprep.subr.mxu0 0.0
    %2938 = vmatpush1.msra.mxu0 0.0
    %2939 = vmatprep.subr.mxu0 0.0
    %2940 = vmatpush1.msra.mxu0 0.0
    %2941 = vmatprep.subr.mxu0 0.0
    %2942 = vmatpush1.msra.mxu0 0.0
    %2943 = vmatprep.subr.mxu0 0.0
    %2944 = vmatpush1.msra.mxu0 0.0
    %2945 = vmatprep.subr.mxu0 0.0
    %2946 = vmatpush1.msra.mxu0 %v2912
    %2947 = vmatprep.subr.mxu0 0.0
    %2948 = vmatpush1.msra.mxu0 %v2911
    %2949 = vmatprep.subr.mxu0 0.0
    %2950 = vmatpush2.msra.mxu0 0.0
    %2951 = vmatprep.subr.mxu0 0.0
    %2952 = vmatpush2.msra.mxu0 0.0
    %2953 = vmatprep.subr.mxu0 0.0
    %2954 = vmatpush2.msra.mxu0 0.0
    %2955 = vmatprep.subr.mxu0 0.0
    %2956 = vmatpush2.msra.mxu0 0.0
    %2957 = vmatprep.subr.mxu0 0.0
    %2958 = vmatpush2.msra.mxu0 0.0
    %2959 = vmatprep.subr.mxu0 0.0
    %2960 = vmatpush2.msra.mxu0 0.0
    %2961 = vmatprep.subr.mxu0 0.0
    %2962 = vmatpush2.msra.mxu0 0.0
    %2963 = vmatprep.subr.mxu0 0.0
    %2964 = vmatpush2.msra.mxu0 0.0
    %2965 = vmatprep.subr.mxu0 0.0
    %2966 = vmatpush2.msra.mxu0 0.0
    %2967 = vmatprep.subr.mxu0 0.0
    %2968 = vmatpush2.msra.mxu0 0.0
    %2969 = vmatprep.subr.mxu0 0.0
    %2970 = vmatpush2.msra.mxu0 0.0
    %2971 = vmatprep.subr.mxu0 0.0
    %2972 = vmatpush2.msra.mxu0 0.0
    %2973 = vmatprep.subr.mxu0 0.0
    %2974 = vmatpush2.msra.mxu0 0.0
    %2975 = vmatprep.subr.mxu0 0.0
    %2976 = vmatpush2.msra.mxu0 0.0
    %2977 = vmatprep.subr.mxu0 0.0
    %2978 = vmatpush2.msra.mxu0 0.0
    %2979 = vmatprep.subr.mxu0 0.0
    %2980 = vmatpush2.msra.mxu0 0.0
    %2981 = vmatprep.mubr.f32.mxu0 0.0
    %2982 = vmatmul.mubr.f32.gmra.mxu0 %v2915
    %v2983 = vpop.f32.mrf.mxu0
    %v2984 = vadd.f32 0.0, %v2983
    %v2985 = vpop.f32.mrf.mxu0
    %2986 = vdwg.mxu0
    %vm2987 = vcmask 123904
    %v2988 = vsel %vm2987, %v2913, 0.0
    %2989 = vadd.xlane.f32.xlu0 %v2988
    %v2990 = vpop.xlane.xlu0 %2989
    %v2991 = vmax.f32 %v2990, 1.0
    %v2992 = vrcp.pop %v2991
    %v2993 = vmul.f32 %v2984, %v2992
    %v2994 = vld [vmem:[%s19] sm:$0xf]
    %v2995 = vld [vmem:[%s19 + $0x4] sm:$0xf]
    %v2996 = vld [vmem:[%s19 + $0x8] sm:$0xf]
    %v2997 = vld [vmem:[%s19 + $0xc] sm:$0xf]
    %v2998 = vpack.c.bf16 %v2993, %v2993
    %v2999 = vld [vmem:[%s20] sm:$0x1]
    %v3001 = vlaneseq
    %v3002 = vshrl.u32 %v3001, 7
    %v3003 = vsub.s32 0, %v3002
    %v3004 = vrot.slane %v2999, %v3003
    %v3010 = vunpack.c.l.b16 %v2994
    %v3011 = vunpack.c.l.b16 %v2995
    %v3012 = vunpack.c.l.b16 %v2996
    %v3013 = vunpack.c.l.b16 %v2997
    %v3014 = vpack.c.b16 %v3011, %v3010
    %v3015 = vpack.c.b16 %v3013, %v3012
    %v3019 = vsel %vm193, %v2998, 0
    %3021 = vmatprep.subr.bf16.mxu0 0
    %3022 = vmatpush1.bf16.msra.mxu0 0
    %3023 = vmatprep.subr.bf16.mxu0 0
    %3024 = vmatpush1.bf16.msra.mxu0 0
    %3025 = vmatprep.subr.bf16.mxu0 0
    %3026 = vmatpush1.bf16.msra.mxu0 0
    %3027 = vmatprep.subr.bf16.mxu0 0
    %3028 = vmatpush1.bf16.msra.mxu0 0
    %3029 = vmatprep.subr.bf16.mxu0 0
    %3030 = vmatpush1.bf16.msra.mxu0 0
    %3031 = vmatprep.subr.bf16.mxu0 0
    %3032 = vmatpush1.bf16.msra.mxu0 0
    %3033 = vmatprep.subr.bf16.mxu0 0
    %3034 = vmatpush1.bf16.msra.mxu0 %v3015
    %3035 = vmatprep.subr.bf16.mxu0 0
    %3036 = vmatpush1.bf16.msra.mxu0 %v3014
    %3037 = vmatprep.subr.bf16.mxu0 0
    %3038 = vmatpush2.bf16.msra.mxu0 0
    %3039 = vmatprep.subr.bf16.mxu0 0
    %3040 = vmatpush2.bf16.msra.mxu0 0
    %3041 = vmatprep.subr.bf16.mxu0 0
    %3042 = vmatpush2.bf16.msra.mxu0 0
    %3043 = vmatprep.subr.bf16.mxu0 0
    %3044 = vmatpush2.bf16.msra.mxu0 0
    %3045 = vmatprep.subr.bf16.mxu0 0
    %3046 = vmatpush2.bf16.msra.mxu0 0
    %3047 = vmatprep.subr.bf16.mxu0 0
    %3048 = vmatpush2.bf16.msra.mxu0 0
    %3049 = vmatprep.subr.bf16.mxu0 0
    %3050 = vmatpush2.bf16.msra.mxu0 0
    %3051 = vmatprep.subr.bf16.mxu0 0
    %3052 = vmatpush2.bf16.msra.mxu0 0
    %3053 = vmatprep.mubr.bf16.mxu0 0
    %3054 = vmatmul.mubr.bf16.gmra.mxu0 %v3019
    %v3055 = vpop.f32.mrf.mxu0
    %v3056 = vadd.f32 %v3004, %v3055
    %v3057 = vpop.f32.mrf.mxu0
    %v3058 = vpop.f32.mrf.mxu0
    %v3059 = vpop.f32.mrf.mxu0
    %3060 = vdwg.mxu0
    %v3061 = vmax.f32 %v3056, 0.0
    %v3062 = vld [vmem:[%s21] sm:$0xf]
    %v3063 = vld [vmem:[%s21 + $0x4] sm:$0xf]
    %v3064 = vld [vmem:[%s21 + $0x8] sm:$0xf]
    %v3065 = vld [vmem:[%s21 + $0xc] sm:$0xf]
    %v3066 = vpack.c.bf16 %v3061, %v3061
    %v3067 = vld [vmem:[%s22] sm:$0x1]
    %v3069 = vlaneseq
    %v3070 = vshrl.u32 %v3069, 7
    %v3071 = vsub.s32 0, %v3070
    %v3072 = vrot.slane %v3067, %v3071
    %v3078 = vunpack.c.l.b16 %v3062
    %v3079 = vunpack.c.l.b16 %v3063
    %v3080 = vunpack.c.l.b16 %v3064
    %v3081 = vunpack.c.l.b16 %v3065
    %v3082 = vpack.c.b16 %v3079, %v3078
    %v3083 = vpack.c.b16 %v3081, %v3080
    %v3087 = vsel %vm193, %v3066, 0
    %3089 = vmatprep.subr.bf16.mxu0 0
    %3090 = vmatpush1.bf16.msra.mxu0 0
    %3091 = vmatprep.subr.bf16.mxu0 0
    %3092 = vmatpush1.bf16.msra.mxu0 0
    %3093 = vmatprep.subr.bf16.mxu0 0
    %3094 = vmatpush1.bf16.msra.mxu0 0
    %3095 = vmatprep.subr.bf16.mxu0 0
    %3096 = vmatpush1.bf16.msra.mxu0 0
    %3097 = vmatprep.subr.bf16.mxu0 0
    %3098 = vmatpush1.bf16.msra.mxu0 0
    %3099 = vmatprep.subr.bf16.mxu0 0
    %3100 = vmatpush1.bf16.msra.mxu0 0
    %3101 = vmatprep.subr.bf16.mxu0 0
    %3102 = vmatpush1.bf16.msra.mxu0 %v3083
    %3103 = vmatprep.subr.bf16.mxu0 0
    %3104 = vmatpush1.bf16.msra.mxu0 %v3082
    %3105 = vmatprep.subr.bf16.mxu0 0
    %3106 = vmatpush2.bf16.msra.mxu0 0
    %3107 = vmatprep.subr.bf16.mxu0 0
    %3108 = vmatpush2.bf16.msra.mxu0 0
    %3109 = vmatprep.subr.bf16.mxu0 0
    %3110 = vmatpush2.bf16.msra.mxu0 0
    %3111 = vmatprep.subr.bf16.mxu0 0
    %3112 = vmatpush2.bf16.msra.mxu0 0
    %3113 = vmatprep.subr.bf16.mxu0 0
    %3114 = vmatpush2.bf16.msra.mxu0 0
    %3115 = vmatprep.subr.bf16.mxu0 0
    %3116 = vmatpush2.bf16.msra.mxu0 0
    %3117 = vmatprep.subr.bf16.mxu0 0
    %3118 = vmatpush2.bf16.msra.mxu0 0
    %3119 = vmatprep.subr.bf16.mxu0 0
    %3120 = vmatpush2.bf16.msra.mxu0 0
    %3121 = vmatprep.mubr.bf16.mxu0 0
    %3122 = vmatmul.mubr.bf16.gmra.mxu0 %v3087
    %v3123 = vpop.f32.mrf.mxu0
    %v3124 = vadd.f32 %v3072, %v3123
    %v3125 = vpop.f32.mrf.mxu0
    %v3126 = vpop.f32.mrf.mxu0
    %v3127 = vpop.f32.mrf.mxu0
    %3128 = vdwg.mxu0
    %v3129 = vmax.f32 %v3124, 0.0
    %v3130 = vld [vmem:[%s23] sm:$0xf]
    %v3131 = vld [vmem:[%s23 + $0x4] sm:$0xf]
    %v3132 = vld [vmem:[%s23 + $0x8] sm:$0xf]
    %v3133 = vld [vmem:[%s23 + $0xc] sm:$0xf]
    %v3134 = vpack.c.bf16 %v3129, %v3129
    %v3135 = vld [vmem:[%s24] sm:$0x1]
    %v3137 = vlaneseq
    %v3138 = vshrl.u32 %v3137, 7
    %v3139 = vsub.s32 0, %v3138
    %v3140 = vrot.slane %v3135, %v3139
    %v3146 = vunpack.c.l.b16 %v3130
    %v3147 = vunpack.c.l.b16 %v3131
    %v3148 = vunpack.c.l.b16 %v3132
    %v3149 = vunpack.c.l.b16 %v3133
    %v3150 = vpack.c.b16 %v3147, %v3146
    %v3151 = vpack.c.b16 %v3149, %v3148
    %v3155 = vsel %vm193, %v3134, 0
    %3157 = vmatprep.subr.bf16.mxu0 0
    %3158 = vmatpush1.bf16.msra.mxu0 0
    %3159 = vmatprep.subr.bf16.mxu0 0
    %3160 = vmatpush1.bf16.msra.mxu0 0
    %3161 = vmatprep.subr.bf16.mxu0 0
    %3162 = vmatpush1.bf16.msra.mxu0 0
    %3163 = vmatprep.subr.bf16.mxu0 0
    %3164 = vmatpush1.bf16.msra.mxu0 0
    %3165 = vmatprep.subr.bf16.mxu0 0
    %3166 = vmatpush1.bf16.msra.mxu0 0
    %3167 = vmatprep.subr.bf16.mxu0 0
    %3168 = vmatpush1.bf16.msra.mxu0 0
    %3169 = vmatprep.subr.bf16.mxu0 0
    %3170 = vmatpush1.bf16.msra.mxu0 %v3151
    %3171 = vmatprep.subr.bf16.mxu0 0
    %3172 = vmatpush1.bf16.msra.mxu0 %v3150
    %3173 = vmatprep.subr.bf16.mxu0 0
    %3174 = vmatpush2.bf16.msra.mxu0 0
    %3175 = vmatprep.subr.bf16.mxu0 0
    %3176 = vmatpush2.bf16.msra.mxu0 0
    %3177 = vmatprep.subr.bf16.mxu0 0
    %3178 = vmatpush2.bf16.msra.mxu0 0
    %3179 = vmatprep.subr.bf16.mxu0 0
    %3180 = vmatpush2.bf16.msra.mxu0 0
    %3181 = vmatprep.subr.bf16.mxu0 0
    %3182 = vmatpush2.bf16.msra.mxu0 0
    %3183 = vmatprep.subr.bf16.mxu0 0
    %3184 = vmatpush2.bf16.msra.mxu0 0
    %3185 = vmatprep.subr.bf16.mxu0 0
    %3186 = vmatpush2.bf16.msra.mxu0 0
    %3187 = vmatprep.subr.bf16.mxu0 0
    %3188 = vmatpush2.bf16.msra.mxu0 0
    %3189 = vmatprep.mubr.bf16.mxu0 0
    %3190 = vmatmul.mubr.bf16.gmra.mxu0 %v3155
    %v3191 = vpop.f32.mrf.mxu0
    %v3192 = vadd.f32 %v3140, %v3191
    %v3193 = vpop.f32.mrf.mxu0
    %v3194 = vpop.f32.mrf.mxu0
    %v3195 = vpop.f32.mrf.mxu0
    %3196 = vdwg.mxu0
    %vm3197 = vcmask 25600
    %3198 = vst.msk [vmem:[#allocation2] sm:$0x3] %vm3197, %v3192
    // Predicated region
    $region102: #{bert_classifier_forward.1} parent=1 // pred_check
      _
    $region103: #{bert_classifier_forward.1} parent=1 // pred_check_branch
      %3200 = sbr.rel (0) target = $region105
    $region104: #{bert_classifier_forward.1} parent=1 // pred_region
      %s3202 = ssub.s32 32, 32
      %3203 = vsyncadd [#allocation3], %s3202
      %s3205 = sshll.u32 [#allocation2], 4
      %s3206 = int_to_ptr.vmem [resolvable:$true] %s3205
      %3208 = dma.vmem_to_hbm [thread:$0]  %s3206, 32, %s25, [#allocation3]
    $region105: #{bert_classifier_forward.1} parent=1 // pred_fallthru
      _
    // Predicated region
    $region106: #{bert_classifier_forward.1} parent=1 // pred_check
      _
    $region107: #{bert_classifier_forward.1} parent=1 // pred_check_branch
      %3210 = sbr.rel (0) target = $region109
    $region108: #{bert_classifier_forward.1} parent=1 // pred_region
      %3211 = dma.done [#allocation3], 32
    $region109: #{bert_classifier_forward.1} parent=1 // pred_fallthru
      _
    %3212 = vsyncpa [#allocation3], 1

</llo_original>
